<compile_context>
chip_gen: v7x
topology: tpu7x:2x2x1
jax: 0.10.0
libtpu: 0.0.40
codegen_flags: <defaults>
</compile_context>

<pallas_src>
import functools

import jax
import jax.numpy as jnp
from jax import lax
from jax.experimental import pallas as pl
from jax.experimental.pallas import tpu as pltpu

RNN_DIM = 40       # rnn_dim default from the module
NUM_CLASS = 3      # num_class (chosen small)
EMB_DIM = 32
VOCAB = 50

H_PAD = 128        # per-gate lane padding (one full vreg lane width)
C_PAD = 128        # lane-dense logits store width


def bilstm_classifier_kernel(x2d_ref, mask_ref, win_ref, whh_ref, b_ref,
                             wl_ref, bl_ref, out_ref, gx_ref, *, T, Bp, HP):
    """Fused bidirectional LSTM recurrence + output projection.

    x2d_ref  : [T*Bp, 2E]    time-major (fwd | time-reversed bwd) features
    mask_ref : [T*Bp, 2*HP]  per-step validity, pre-broadcast over gate lanes
    win_ref  : [2E, 8*HP]    block-diag input->gates weights (both directions)
    whh_ref  : [2*HP, 8*HP]  block-diag hidden->gates weights (both directions)
    b_ref    : [1, 8*HP]
    wl_ref   : [2*HP, C_PAD], bl_ref : [1, C_PAD]
    gx_ref   : [T*Bp, 8*HP]  VMEM scratch: precomputed input gate slab
    """
    S2, S4, S6 = 2 * HP, 4 * HP, 6 * HP

    # Hoisted input projection: one parallel MXU matmul covering every timestep
    # and both directions (M = T*Bp rows actually fills the MXU).
    gx_ref[...] = (jnp.dot(x2d_ref[...], win_ref[...],
                           preferred_element_type=jnp.float32) + b_ref[...])

    whh = whh_ref[...]

    def step(t, carry):
        h, c = carry                                      # [Bp, 2*HP] each
        row = pl.multiple_of(t * Bp, 8)                   # sublane-aligned slab row
        gates = gx_ref[pl.ds(row, Bp), :] + jnp.dot(
            h, whh, preferred_element_type=jnp.float32)   # [Bp, 8*HP]
        ifo = jax.nn.sigmoid(gates[:, :S6])               # i|f|o, both dirs, one slab
        g = jnp.tanh(gates[:, S6:])
        i, f, o = ifo[:, :S2], ifo[:, S2:S4], ifo[:, S4:S6]
        c_new = f * c + i * g
        h_new = o * jnp.tanh(c_new)
        # Past the sentence end carry previous state (pack_padded_sequence
        # final-hidden semantics for both directions).
        m = mask_ref[pl.ds(row, Bp), :]
        h = jnp.where(m > 0.0, h_new, h)
        c = jnp.where(m > 0.0, c_new, c)
        return h, c

    zeros = jnp.zeros((Bp, 2 * HP), jnp.float32)
    h, _ = lax.fori_loop(0, T, step, (zeros, zeros), unroll=True)

    out_ref[...] = (jnp.dot(h, wl_ref[...], preferred_element_type=jnp.float32)
                    + bl_ref[...])


def neural_network_forward(params, embed_ids, sentence_len):
    H, HP, C = RNN_DIM, H_PAD, NUM_CLASS
    E = params["emb_matrix"].shape[1]
    G = 8 * HP

    # Glue: embedding lookup.
    x = params["emb_matrix"][embed_ids].astype(jnp.float32)        # [B, T, E]
    B, T, _ = x.shape
    Bp = max(8, ((B + 7) // 8) * 8)                                # sublane-pad batch

    # ---- pack weights into lane-aligned fused layouts (one-time, plain JAX) ----
    def split_gates(w):   # [K, 4H] in PyTorch i|f|g|o order -> per-gate [K, H]
        return {"i": w[:, 0:H], "f": w[:, H:2 * H],
                "g": w[:, 2 * H:3 * H], "o": w[:, 3 * H:4 * H]}

    gi_f, gi_b = split_gates(params["wih_f"]), split_gates(params["wih_b"])
    gh_f, gh_b = split_gates(params["whh_f"]), split_gates(params["whh_b"])
    gb_f, gb_b = split_gates(params["b_f"]), split_gates(params["b_b"])

    gate_order = ("i", "f", "o", "g")   # (i,f,o) contiguous -> single sigmoid slab
    w_in = jnp.zeros((2 * E, G), jnp.float32)
    w_hh = jnp.zeros((2 * HP, G), jnp.float32)
    b_c = jnp.zeros((1, G), jnp.float32)
    col = 0
    for gname in gate_order:
        # forward-direction block
        w_in = w_in.at[0:E, col:col + H].set(gi_f[gname])
        w_hh = w_hh.at[0:H, col:col + H].set(gh_f[gname])
        b_c = b_c.at[:, col:col + H].set(gb_f[gname])
        col += HP
        # backward-direction block
        w_in = w_in.at[E:2 * E, col:col + H].set(gi_b[gname])
        w_hh = w_hh.at[HP:HP + H, col:col + H].set(gh_b[gname])
        b_c = b_c.at[:, col:col + H].set(gb_b[gname])
        col += HP

    wl_p = jnp.zeros((2 * HP, C_PAD), jnp.float32)
    wl_p = wl_p.at[0:H, 0:C].set(params["wl"][0:H])
    wl_p = wl_p.at[HP:HP + H, 0:C].set(params["wl"][H:2 * H])
    bl_p = jnp.zeros((1, C_PAD), jnp.float32).at[:, 0:C].set(params["bl"])

    # ---- time-major, batch-padded activations + pre-broadcast validity mask ----
    x_tm = jnp.transpose(x, (1, 0, 2))                     # [T, B, E]
    x_pair = jnp.concatenate([x_tm, x_tm[::-1]], axis=-1)  # fwd | time-reversed bwd
    x_pair = jnp.pad(x_pair, ((0, 0), (0, Bp - B), (0, 0)))
    x2d = x_pair.reshape(T * Bp, 2 * E)

    mask = (jnp.arange(T)[None, :] < sentence_len[:, None]).astype(jnp.float32)
    mask = jnp.pad(mask, ((0, Bp - B), (0, 0)))            # padded rows -> all invalid
    m_f = mask.T                                           # [T, Bp] mask at step t
    m_b = mask.T[::-1]                                     # [T, Bp] mask at step T-1-t
    mask_slab = jnp.concatenate(
        [jnp.broadcast_to(m_f[:, :, None], (T, Bp, HP)),
         jnp.broadcast_to(m_b[:, :, None], (T, Bp, HP))],
        axis=-1).reshape(T * Bp, 2 * HP)

    kernel = functools.partial(bilstm_classifier_kernel, T=T, Bp=Bp, HP=HP)
    vmem = pl.BlockSpec(memory_space=pltpu.MemorySpace.VMEM)
    args = (x2d, mask_slab, w_in, w_hh, b_c, wl_p, bl_p)

    out = pl.pallas_call(
        kernel,
        out_shape=jax.ShapeDtypeStruct((Bp, C_PAD), jnp.float32),
        in_specs=[vmem] * len(args),
        out_specs=vmem,
        scratch_shapes=[pltpu.VMEM((T * Bp, G), jnp.float32)],
    )(*args)

    return out[:B, :C]


def init_params(key):
    ks = jax.random.split(key, 9)

    def u(k, shape, scale=0.1):
        return jax.random.uniform(k, shape, jnp.float32, -scale, scale)

    H = RNN_DIM
    return dict(
        emb_matrix=u(ks[0], (VOCAB, EMB_DIM), 0.5),
        wih_f=u(ks[1], (EMB_DIM, 4 * H)),
        whh_f=u(ks[2], (H, 4 * H)),
        b_f=u(ks[3], (1, 4 * H)),
        wih_b=u(ks[4], (EMB_DIM, 4 * H)),
        whh_b=u(ks[5], (H, 4 * H)),
        b_b=u(ks[6], (1, 4 * H)),
        wl=u(ks[7], (2 * H, NUM_CLASS)),
        bl=u(ks[8], (1, NUM_CLASS)),
    )


def reference_forward(params, embed_ids, sentence_len):
    # Pure-JAX reference of the same math (for a sanity check).
    x = params["emb_matrix"][embed_ids].astype(jnp.float32)
    B, T, _ = x.shape
    H = RNN_DIM
    mask = (jnp.arange(T)[None, :] < sentence_len[:, None]).astype(jnp.float32)

    def cell(x_t, h, c, wih, whh, b, m_t):
        g = x_t @ wih + h @ whh + b
        i = jax.nn.sigmoid(g[:, :H])
        f = jax.nn.sigmoid(g[:, H:2 * H])
        gg = jnp.tanh(g[:, 2 * H:3 * H])
        o = jax.nn.sigmoid(g[:, 3 * H:])
        c_new = f * c + i * gg
        h_new = o * jnp.tanh(c_new)
        m_t = m_t[:, None]
        return m_t * h_new + (1 - m_t) * h, m_t * c_new + (1 - m_t) * c

    h = c = jnp.zeros((B, H), jnp.float32)
    for t in range(T):
        h, c = cell(x[:, t], h, c, params["wih_f"], params["whh_f"],
                    params["b_f"], mask[:, t])
    h_f = h
    h = c = jnp.zeros((B, H), jnp.float32)
    for t in range(T - 1, -1, -1):
        h, c = cell(x[:, t], h, c, params["wih_b"], params["whh_b"],
                    params["b_b"], mask[:, t])
    h_b = h
    return jnp.concatenate([h_f, h_b], axis=1) @ params["wl"] + params["bl"]


if __name__ == "__main__":
    key = jax.random.PRNGKey(0)
    pkey, ikey = jax.random.split(key)
    params = init_params(pkey)

    B, T = 2, 8
    embed_ids = jax.random.randint(ikey, (B, T), 0, VOCAB, dtype=jnp.int32)
    sentence_len = jnp.array([8, 5], dtype=jnp.int32)

    logits = neural_network_forward(params, embed_ids, sentence_len)
    logits = jax.block_until_ready(logits)

    ref = reference_forward(params, embed_ids, sentence_len)
    assert logits.shape == (B, NUM_CLASS)
    assert jnp.allclose(logits, ref, atol=1e-2, rtol=1e-2)

    print("KERNEL_OK")
</pallas_src>

<mosaic_0001>
module attributes {stable_mosaic.version = 11 : i64} {
  func.func @bilstm_classifier_kernel(%arg0: memref<64x64xf32, #tpu.memory_space<vmem>>, %arg1: memref<64x256xf32, #tpu.memory_space<vmem>>, %arg2: memref<64x1024xf32, #tpu.memory_space<vmem>>, %arg3: memref<256x1024xf32, #tpu.memory_space<vmem>>, %arg4: memref<1x1024xf32, #tpu.memory_space<vmem>>, %arg5: memref<256x128xf32, #tpu.memory_space<vmem>>, %arg6: memref<1x128xf32, #tpu.memory_space<vmem>>, %arg7: memref<8x128xf32, #tpu.memory_space<vmem>>, %arg8: memref<64x1024xf32, #tpu.memory_space<vmem>>) attributes {dimension_semantics = [], scalar_prefetch = 0 : i64, scratch_operands = 1 : i64, tpu.core_type = #tpu.core_type<tc>} {
    %c0 = arith.constant 0 : index
    %c0_0 = arith.constant 0 : index
    %0 = vector.load %arg0[%c0, %c0_0] : memref<64x64xf32, #tpu.memory_space<vmem>>, vector<64x64xf32>
    %c0_1 = arith.constant 0 : index
    %c0_2 = arith.constant 0 : index
    %1 = vector.load %arg2[%c0_1, %c0_2] : memref<64x1024xf32, #tpu.memory_space<vmem>>, vector<64x1024xf32>
    %cst = arith.constant dense<0.000000e+00> : vector<64x1024xf32>
    %2 = tpu.matmul %0, %1, %cst {dimension_numbers = #tpu.dot_dimension_numbers<[1], [0], [0], [1], [0, 0, 1, 1], [], []>} : vector<64x64xf32>, vector<64x1024xf32>, vector<64x1024xf32> -> vector<64x1024xf32>
    %c0_3 = arith.constant 0 : index
    %c0_4 = arith.constant 0 : index
    %3 = vector.load %arg4[%c0_3, %c0_4] : memref<1x1024xf32, #tpu.memory_space<vmem>>, vector<1x1024xf32>
    %4 = vector.broadcast %3 : vector<1x1024xf32> to vector<64x1024xf32>
    %5 = arith.addf %2, %4 : vector<64x1024xf32>
    %c0_5 = arith.constant 0 : index
    %c0_6 = arith.constant 0 : index
    %6 = vector.load %arg8[%c0_5, %c0_6] : memref<64x1024xf32, #tpu.memory_space<vmem>>, vector<64x1024xf32>
    tpu.vector_store %arg8[%c0_5, %c0_6], %5 {strides = array<i32>} : memref<64x1024xf32, #tpu.memory_space<vmem>>, vector<64x1024xf32>,
    %c0_7 = arith.constant 0 : index
    %c0_8 = arith.constant 0 : index
    %7 = vector.load %arg3[%c0_7, %c0_8] : memref<256x1024xf32, #tpu.memory_space<vmem>>, vector<256x1024xf32>
    %cst_9 = arith.constant 0.000000e+00 : f32
    %8 = vector.broadcast %cst_9 : f32 to vector<8x256xf32>
    %c0_i32 = arith.constant 0 : i32
    %c8_i32 = arith.constant 8 : i32
    %9 = arith.muli %c0_i32, %c8_i32 : i32
    %10 = tpu.assume_multiple %9, 8 : i32
    %11 = arith.index_cast %10 : i32 to index
    %c0_10 = arith.constant 0 : index
    %12 = vector.load %arg8[%11, %c0_10] : memref<64x1024xf32, #tpu.memory_space<vmem>>, vector<8x1024xf32>
    %cst_11 = arith.constant dense<0.000000e+00> : vector<8x1024xf32>
    %13 = tpu.matmul %8, %7, %cst_11 {dimension_numbers = #tpu.dot_dimension_numbers<[1], [0], [0], [1], [0, 0, 1, 1], [], []>} : vector<8x256xf32>, vector<256x1024xf32>, vector<8x1024xf32> -> vector<8x1024xf32>
    %14 = arith.addf %12, %13 : vector<8x1024xf32>
    %15 = vector.extract_strided_slice %14 {offsets = [0, 0], sizes = [8, 768], strides = [1, 1]} : vector<8x1024xf32> to vector<8x768xf32>
    %16 = arith.negf %15 : vector<8x768xf32>
    %17 = math.exp %16 : vector<8x768xf32>
    %cst_12 = arith.constant 1.000000e+00 : f32
    %18 = vector.broadcast %cst_12 : f32 to vector<8x768xf32>
    %19 = arith.addf %18, %17 : vector<8x768xf32>
    %20 = arith.divf %18, %19 : vector<8x768xf32>
    %21 = vector.extract_strided_slice %14 {offsets = [0, 768], sizes = [8, 256], strides = [1, 1]} : vector<8x1024xf32> to vector<8x256xf32>
    %22 = math.tanh %21 : vector<8x256xf32>
    %23 = vector.extract_strided_slice %20 {offsets = [0, 0], sizes = [8, 256], strides = [1, 1]} : vector<8x768xf32> to vector<8x256xf32>
    %24 = vector.extract_strided_slice %20 {offsets = [0, 256], sizes = [8, 256], strides = [1, 1]} : vector<8x768xf32> to vector<8x256xf32>
    %25 = vector.extract_strided_slice %20 {offsets = [0, 512], sizes = [8, 256], strides = [1, 1]} : vector<8x768xf32> to vector<8x256xf32>
    %26 = arith.mulf %24, %8 : vector<8x256xf32>
    %27 = arith.mulf %23, %22 : vector<8x256xf32>
    %28 = arith.addf %26, %27 : vector<8x256xf32>
    %29 = math.tanh %28 : vector<8x256xf32>
    %30 = arith.mulf %25, %29 : vector<8x256xf32>
    %31 = arith.index_cast %10 : i32 to index
    %c0_13 = arith.constant 0 : index
    %32 = vector.load %arg1[%31, %c0_13] : memref<64x256xf32, #tpu.memory_space<vmem>>, vector<8x256xf32>
    %cst_14 = arith.constant 0.000000e+00 : f32
    %33 = vector.broadcast %cst_14 : f32 to vector<8x256xf32>
    %34 = arith.cmpf ogt, %32, %33 : vector<8x256xf32>
    %35 = arith.select %34, %30, %8 : vector<8x256xi1>, vector<8x256xf32>
    %cst_15 = arith.constant 0.000000e+00 : f32
    %36 = vector.broadcast %cst_15 : f32 to vector<8x256xf32>
    %37 = arith.cmpf ogt, %32, %36 : vector<8x256xf32>
    %38 = arith.select %37, %28, %8 : vector<8x256xi1>, vector<8x256xf32>
    %c1_i32 = arith.constant 1 : i32
    %c8_i32_16 = arith.constant 8 : i32
    %39 = arith.muli %c1_i32, %c8_i32_16 : i32
    %40 = tpu.assume_multiple %39, 8 : i32
    %41 = arith.index_cast %40 : i32 to index
    %c0_17 = arith.constant 0 : index
    %42 = vector.load %arg8[%41, %c0_17] : memref<64x1024xf32, #tpu.memory_space<vmem>>, vector<8x1024xf32>
    %cst_18 = arith.constant dense<0.000000e+00> : vector<8x1024xf32>
    %43 = tpu.matmul %35, %7, %cst_18 {dimension_numbers = #tpu.dot_dimension_numbers<[1], [0], [0], [1], [0, 0, 1, 1], [], []>} : vector<8x256xf32>, vector<256x1024xf32>, vector<8x1024xf32> -> vector<8x1024xf32>
    %44 = arith.addf %42, %43 : vector<8x1024xf32>
    %45 = vector.extract_strided_slice %44 {offsets = [0, 0], sizes = [8, 768], strides = [1, 1]} : vector<8x1024xf32> to vector<8x768xf32>
    %46 = arith.negf %45 : vector<8x768xf32>
    %47 = math.exp %46 : vector<8x768xf32>
    %cst_19 = arith.constant 1.000000e+00 : f32
    %48 = vector.broadcast %cst_19 : f32 to vector<8x768xf32>
    %49 = arith.addf %48, %47 : vector<8x768xf32>
    %50 = arith.divf %48, %49 : vector<8x768xf32>
    %51 = vector.extract_strided_slice %44 {offsets = [0, 768], sizes = [8, 256], strides = [1, 1]} : vector<8x1024xf32> to vector<8x256xf32>
    %52 = math.tanh %51 : vector<8x256xf32>
    %53 = vector.extract_strided_slice %50 {offsets = [0, 0], sizes = [8, 256], strides = [1, 1]} : vector<8x768xf32> to vector<8x256xf32>
    %54 = vector.extract_strided_slice %50 {offsets = [0, 256], sizes = [8, 256], strides = [1, 1]} : vector<8x768xf32> to vector<8x256xf32>
    %55 = vector.extract_strided_slice %50 {offsets = [0, 512], sizes = [8, 256], strides = [1, 1]} : vector<8x768xf32> to vector<8x256xf32>
    %56 = arith.mulf %54, %38 : vector<8x256xf32>
    %57 = arith.mulf %53, %52 : vector<8x256xf32>
    %58 = arith.addf %56, %57 : vector<8x256xf32>
    %59 = math.tanh %58 : vector<8x256xf32>
    %60 = arith.mulf %55, %59 : vector<8x256xf32>
    %61 = arith.index_cast %40 : i32 to index
    %c0_20 = arith.constant 0 : index
    %62 = vector.load %arg1[%61, %c0_20] : memref<64x256xf32, #tpu.memory_space<vmem>>, vector<8x256xf32>
    %cst_21 = arith.constant 0.000000e+00 : f32
    %63 = vector.broadcast %cst_21 : f32 to vector<8x256xf32>
    %64 = arith.cmpf ogt, %62, %63 : vector<8x256xf32>
    %65 = arith.select %64, %60, %35 : vector<8x256xi1>, vector<8x256xf32>
    %cst_22 = arith.constant 0.000000e+00 : f32
    %66 = vector.broadcast %cst_22 : f32 to vector<8x256xf32>
    %67 = arith.cmpf ogt, %62, %66 : vector<8x256xf32>
    %68 = arith.select %67, %58, %38 : vector<8x256xi1>, vector<8x256xf32>
    %c2_i32 = arith.constant 2 : i32
    %c8_i32_23 = arith.constant 8 : i32
    %69 = arith.muli %c2_i32, %c8_i32_23 : i32
    %70 = tpu.assume_multiple %69, 8 : i32
    %71 = arith.index_cast %70 : i32 to index
    %c0_24 = arith.constant 0 : index
    %72 = vector.load %arg8[%71, %c0_24] : memref<64x1024xf32, #tpu.memory_space<vmem>>, vector<8x1024xf32>
    %cst_25 = arith.constant dense<0.000000e+00> : vector<8x1024xf32>
    %73 = tpu.matmul %65, %7, %cst_25 {dimension_numbers = #tpu.dot_dimension_numbers<[1], [0], [0], [1], [0, 0, 1, 1], [], []>} : vector<8x256xf32>, vector<256x1024xf32>, vector<8x1024xf32> -> vector<8x1024xf32>
    %74 = arith.addf %72, %73 : vector<8x1024xf32>
    %75 = vector.extract_strided_slice %74 {offsets = [0, 0], sizes = [8, 768], strides = [1, 1]} : vector<8x1024xf32> to vector<8x768xf32>
    %76 = arith.negf %75 : vector<8x768xf32>
    %77 = math.exp %76 : vector<8x768xf32>
    %cst_26 = arith.constant 1.000000e+00 : f32
    %78 = vector.broadcast %cst_26 : f32 to vector<8x768xf32>
    %79 = arith.addf %78, %77 : vector<8x768xf32>
    %80 = arith.divf %78, %79 : vector<8x768xf32>
    %81 = vector.extract_strided_slice %74 {offsets = [0, 768], sizes = [8, 256], strides = [1, 1]} : vector<8x1024xf32> to vector<8x256xf32>
    %82 = math.tanh %81 : vector<8x256xf32>
    %83 = vector.extract_strided_slice %80 {offsets = [0, 0], sizes = [8, 256], strides = [1, 1]} : vector<8x768xf32> to vector<8x256xf32>
    %84 = vector.extract_strided_slice %80 {offsets = [0, 256], sizes = [8, 256], strides = [1, 1]} : vector<8x768xf32> to vector<8x256xf32>
    %85 = vector.extract_strided_slice %80 {offsets = [0, 512], sizes = [8, 256], strides = [1, 1]} : vector<8x768xf32> to vector<8x256xf32>
    %86 = arith.mulf %84, %68 : vector<8x256xf32>
    %87 = arith.mulf %83, %82 : vector<8x256xf32>
    %88 = arith.addf %86, %87 : vector<8x256xf32>
    %89 = math.tanh %88 : vector<8x256xf32>
    %90 = arith.mulf %85, %89 : vector<8x256xf32>
    %91 = arith.index_cast %70 : i32 to index
    %c0_27 = arith.constant 0 : index
    %92 = vector.load %arg1[%91, %c0_27] : memref<64x256xf32, #tpu.memory_space<vmem>>, vector<8x256xf32>
    %cst_28 = arith.constant 0.000000e+00 : f32
    %93 = vector.broadcast %cst_28 : f32 to vector<8x256xf32>
    %94 = arith.cmpf ogt, %92, %93 : vector<8x256xf32>
    %95 = arith.select %94, %90, %65 : vector<8x256xi1>, vector<8x256xf32>
    %cst_29 = arith.constant 0.000000e+00 : f32
    %96 = vector.broadcast %cst_29 : f32 to vector<8x256xf32>
    %97 = arith.cmpf ogt, %92, %96 : vector<8x256xf32>
    %98 = arith.select %97, %88, %68 : vector<8x256xi1>, vector<8x256xf32>
    %c3_i32 = arith.constant 3 : i32
    %c8_i32_30 = arith.constant 8 : i32
    %99 = arith.muli %c3_i32, %c8_i32_30 : i32
    %100 = tpu.assume_multiple %99, 8 : i32
    %101 = arith.index_cast %100 : i32 to index
    %c0_31 = arith.constant 0 : index
    %102 = vector.load %arg8[%101, %c0_31] : memref<64x1024xf32, #tpu.memory_space<vmem>>, vector<8x1024xf32>
    %cst_32 = arith.constant dense<0.000000e+00> : vector<8x1024xf32>
    %103 = tpu.matmul %95, %7, %cst_32 {dimension_numbers = #tpu.dot_dimension_numbers<[1], [0], [0], [1], [0, 0, 1, 1], [], []>} : vector<8x256xf32>, vector<256x1024xf32>, vector<8x1024xf32> -> vector<8x1024xf32>
    %104 = arith.addf %102, %103 : vector<8x1024xf32>
    %105 = vector.extract_strided_slice %104 {offsets = [0, 0], sizes = [8, 768], strides = [1, 1]} : vector<8x1024xf32> to vector<8x768xf32>
    %106 = arith.negf %105 : vector<8x768xf32>
    %107 = math.exp %106 : vector<8x768xf32>
    %cst_33 = arith.constant 1.000000e+00 : f32
    %108 = vector.broadcast %cst_33 : f32 to vector<8x768xf32>
    %109 = arith.addf %108, %107 : vector<8x768xf32>
    %110 = arith.divf %108, %109 : vector<8x768xf32>
    %111 = vector.extract_strided_slice %104 {offsets = [0, 768], sizes = [8, 256], strides = [1, 1]} : vector<8x1024xf32> to vector<8x256xf32>
    %112 = math.tanh %111 : vector<8x256xf32>
    %113 = vector.extract_strided_slice %110 {offsets = [0, 0], sizes = [8, 256], strides = [1, 1]} : vector<8x768xf32> to vector<8x256xf32>
    %114 = vector.extract_strided_slice %110 {offsets = [0, 256], sizes = [8, 256], strides = [1, 1]} : vector<8x768xf32> to vector<8x256xf32>
    %115 = vector.extract_strided_slice %110 {offsets = [0, 512], sizes = [8, 256], strides = [1, 1]} : vector<8x768xf32> to vector<8x256xf32>
    %116 = arith.mulf %114, %98 : vector<8x256xf32>
    %117 = arith.mulf %113, %112 : vector<8x256xf32>
    %118 = arith.addf %116, %117 : vector<8x256xf32>
    %119 = math.tanh %118 : vector<8x256xf32>
    %120 = arith.mulf %115, %119 : vector<8x256xf32>
    %121 = arith.index_cast %100 : i32 to index
    %c0_34 = arith.constant 0 : index
    %122 = vector.load %arg1[%121, %c0_34] : memref<64x256xf32, #tpu.memory_space<vmem>>, vector<8x256xf32>
    %cst_35 = arith.constant 0.000000e+00 : f32
    %123 = vector.broadcast %cst_35 : f32 to vector<8x256xf32>
    %124 = arith.cmpf ogt, %122, %123 : vector<8x256xf32>
    %125 = arith.select %124, %120, %95 : vector<8x256xi1>, vector<8x256xf32>
    %cst_36 = arith.constant 0.000000e+00 : f32
    %126 = vector.broadcast %cst_36 : f32 to vector<8x256xf32>
    %127 = arith.cmpf ogt, %122, %126 : vector<8x256xf32>
    %128 = arith.select %127, %118, %98 : vector<8x256xi1>, vector<8x256xf32>
    %c4_i32 = arith.constant 4 : i32
    %c8_i32_37 = arith.constant 8 : i32
    %129 = arith.muli %c4_i32, %c8_i32_37 : i32
    %130 = tpu.assume_multiple %129, 8 : i32
    %131 = arith.index_cast %130 : i32 to index
    %c0_38 = arith.constant 0 : index
    %132 = vector.load %arg8[%131, %c0_38] : memref<64x1024xf32, #tpu.memory_space<vmem>>, vector<8x1024xf32>
    %cst_39 = arith.constant dense<0.000000e+00> : vector<8x1024xf32>
    %133 = tpu.matmul %125, %7, %cst_39 {dimension_numbers = #tpu.dot_dimension_numbers<[1], [0], [0], [1], [0, 0, 1, 1], [], []>} : vector<8x256xf32>, vector<256x1024xf32>, vector<8x1024xf32> -> vector<8x1024xf32>
    %134 = arith.addf %132, %133 : vector<8x1024xf32>
    %135 = vector.extract_strided_slice %134 {offsets = [0, 0], sizes = [8, 768], strides = [1, 1]} : vector<8x1024xf32> to vector<8x768xf32>
    %136 = arith.negf %135 : vector<8x768xf32>
    %137 = math.exp %136 : vector<8x768xf32>
    %cst_40 = arith.constant 1.000000e+00 : f32
    %138 = vector.broadcast %cst_40 : f32 to vector<8x768xf32>
    %139 = arith.addf %138, %137 : vector<8x768xf32>
    %140 = arith.divf %138, %139 : vector<8x768xf32>
    %141 = vector.extract_strided_slice %134 {offsets = [0, 768], sizes = [8, 256], strides = [1, 1]} : vector<8x1024xf32> to vector<8x256xf32>
    %142 = math.tanh %141 : vector<8x256xf32>
    %143 = vector.extract_strided_slice %140 {offsets = [0, 0], sizes = [8, 256], strides = [1, 1]} : vector<8x768xf32> to vector<8x256xf32>
    %144 = vector.extract_strided_slice %140 {offsets = [0, 256], sizes = [8, 256], strides = [1, 1]} : vector<8x768xf32> to vector<8x256xf32>
    %145 = vector.extract_strided_slice %140 {offsets = [0, 512], sizes = [8, 256], strides = [1, 1]} : vector<8x768xf32> to vector<8x256xf32>
    %146 = arith.mulf %144, %128 : vector<8x256xf32>
    %147 = arith.mulf %143, %142 : vector<8x256xf32>
    %148 = arith.addf %146, %147 : vector<8x256xf32>
    %149 = math.tanh %148 : vector<8x256xf32>
    %150 = arith.mulf %145, %149 : vector<8x256xf32>
    %151 = arith.index_cast %130 : i32 to index
    %c0_41 = arith.constant 0 : index
    %152 = vector.load %arg1[%151, %c0_41] : memref<64x256xf32, #tpu.memory_space<vmem>>, vector<8x256xf32>
    %cst_42 = arith.constant 0.000000e+00 : f32
    %153 = vector.broadcast %cst_42 : f32 to vector<8x256xf32>
    %154 = arith.cmpf ogt, %152, %153 : vector<8x256xf32>
    %155 = arith.select %154, %150, %125 : vector<8x256xi1>, vector<8x256xf32>
    %cst_43 = arith.constant 0.000000e+00 : f32
    %156 = vector.broadcast %cst_43 : f32 to vector<8x256xf32>
    %157 = arith.cmpf ogt, %152, %156 : vector<8x256xf32>
    %158 = arith.select %157, %148, %128 : vector<8x256xi1>, vector<8x256xf32>
    %c5_i32 = arith.constant 5 : i32
    %c8_i32_44 = arith.constant 8 : i32
    %159 = arith.muli %c5_i32, %c8_i32_44 : i32
    %160 = tpu.assume_multiple %159, 8 : i32
    %161 = arith.index_cast %160 : i32 to index
    %c0_45 = arith.constant 0 : index
    %162 = vector.load %arg8[%161, %c0_45] : memref<64x1024xf32, #tpu.memory_space<vmem>>, vector<8x1024xf32>
    %cst_46 = arith.constant dense<0.000000e+00> : vector<8x1024xf32>
    %163 = tpu.matmul %155, %7, %cst_46 {dimension_numbers = #tpu.dot_dimension_numbers<[1], [0], [0], [1], [0, 0, 1, 1], [], []>} : vector<8x256xf32>, vector<256x1024xf32>, vector<8x1024xf32> -> vector<8x1024xf32>
    %164 = arith.addf %162, %163 : vector<8x1024xf32>
    %165 = vector.extract_strided_slice %164 {offsets = [0, 0], sizes = [8, 768], strides = [1, 1]} : vector<8x1024xf32> to vector<8x768xf32>
    %166 = arith.negf %165 : vector<8x768xf32>
    %167 = math.exp %166 : vector<8x768xf32>
    %cst_47 = arith.constant 1.000000e+00 : f32
    %168 = vector.broadcast %cst_47 : f32 to vector<8x768xf32>
    %169 = arith.addf %168, %167 : vector<8x768xf32>
    %170 = arith.divf %168, %169 : vector<8x768xf32>
    %171 = vector.extract_strided_slice %164 {offsets = [0, 768], sizes = [8, 256], strides = [1, 1]} : vector<8x1024xf32> to vector<8x256xf32>
    %172 = math.tanh %171 : vector<8x256xf32>
    %173 = vector.extract_strided_slice %170 {offsets = [0, 0], sizes = [8, 256], strides = [1, 1]} : vector<8x768xf32> to vector<8x256xf32>
    %174 = vector.extract_strided_slice %170 {offsets = [0, 256], sizes = [8, 256], strides = [1, 1]} : vector<8x768xf32> to vector<8x256xf32>
    %175 = vector.extract_strided_slice %170 {offsets = [0, 512], sizes = [8, 256], strides = [1, 1]} : vector<8x768xf32> to vector<8x256xf32>
    %176 = arith.mulf %174, %158 : vector<8x256xf32>
    %177 = arith.mulf %173, %172 : vector<8x256xf32>
    %178 = arith.addf %176, %177 : vector<8x256xf32>
    %179 = math.tanh %178 : vector<8x256xf32>
    %180 = arith.mulf %175, %179 : vector<8x256xf32>
    %181 = arith.index_cast %160 : i32 to index
    %c0_48 = arith.constant 0 : index
    %182 = vector.load %arg1[%181, %c0_48] : memref<64x256xf32, #tpu.memory_space<vmem>>, vector<8x256xf32>
    %cst_49 = arith.constant 0.000000e+00 : f32
    %183 = vector.broadcast %cst_49 : f32 to vector<8x256xf32>
    %184 = arith.cmpf ogt, %182, %183 : vector<8x256xf32>
    %185 = arith.select %184, %180, %155 : vector<8x256xi1>, vector<8x256xf32>
    %cst_50 = arith.constant 0.000000e+00 : f32
    %186 = vector.broadcast %cst_50 : f32 to vector<8x256xf32>
    %187 = arith.cmpf ogt, %182, %186 : vector<8x256xf32>
    %188 = arith.select %187, %178, %158 : vector<8x256xi1>, vector<8x256xf32>
    %c6_i32 = arith.constant 6 : i32
    %c8_i32_51 = arith.constant 8 : i32
    %189 = arith.muli %c6_i32, %c8_i32_51 : i32
    %190 = tpu.assume_multiple %189, 8 : i32
    %191 = arith.index_cast %190 : i32 to index
    %c0_52 = arith.constant 0 : index
    %192 = vector.load %arg8[%191, %c0_52] : memref<64x1024xf32, #tpu.memory_space<vmem>>, vector<8x1024xf32>
    %cst_53 = arith.constant dense<0.000000e+00> : vector<8x1024xf32>
    %193 = tpu.matmul %185, %7, %cst_53 {dimension_numbers = #tpu.dot_dimension_numbers<[1], [0], [0], [1], [0, 0, 1, 1], [], []>} : vector<8x256xf32>, vector<256x1024xf32>, vector<8x1024xf32> -> vector<8x1024xf32>
    %194 = arith.addf %192, %193 : vector<8x1024xf32>
    %195 = vector.extract_strided_slice %194 {offsets = [0, 0], sizes = [8, 768], strides = [1, 1]} : vector<8x1024xf32> to vector<8x768xf32>
    %196 = arith.negf %195 : vector<8x768xf32>
    %197 = math.exp %196 : vector<8x768xf32>
    %cst_54 = arith.constant 1.000000e+00 : f32
    %198 = vector.broadcast %cst_54 : f32 to vector<8x768xf32>
    %199 = arith.addf %198, %197 : vector<8x768xf32>
    %200 = arith.divf %198, %199 : vector<8x768xf32>
    %201 = vector.extract_strided_slice %194 {offsets = [0, 768], sizes = [8, 256], strides = [1, 1]} : vector<8x1024xf32> to vector<8x256xf32>
    %202 = math.tanh %201 : vector<8x256xf32>
    %203 = vector.extract_strided_slice %200 {offsets = [0, 0], sizes = [8, 256], strides = [1, 1]} : vector<8x768xf32> to vector<8x256xf32>
    %204 = vector.extract_strided_slice %200 {offsets = [0, 256], sizes = [8, 256], strides = [1, 1]} : vector<8x768xf32> to vector<8x256xf32>
    %205 = vector.extract_strided_slice %200 {offsets = [0, 512], sizes = [8, 256], strides = [1, 1]} : vector<8x768xf32> to vector<8x256xf32>
    %206 = arith.mulf %204, %188 : vector<8x256xf32>
    %207 = arith.mulf %203, %202 : vector<8x256xf32>
    %208 = arith.addf %206, %207 : vector<8x256xf32>
    %209 = math.tanh %208 : vector<8x256xf32>
    %210 = arith.mulf %205, %209 : vector<8x256xf32>
    %211 = arith.index_cast %190 : i32 to index
    %c0_55 = arith.constant 0 : index
    %212 = vector.load %arg1[%211, %c0_55] : memref<64x256xf32, #tpu.memory_space<vmem>>, vector<8x256xf32>
    %cst_56 = arith.constant 0.000000e+00 : f32
    %213 = vector.broadcast %cst_56 : f32 to vector<8x256xf32>
    %214 = arith.cmpf ogt, %212, %213 : vector<8x256xf32>
    %215 = arith.select %214, %210, %185 : vector<8x256xi1>, vector<8x256xf32>
    %cst_57 = arith.constant 0.000000e+00 : f32
    %216 = vector.broadcast %cst_57 : f32 to vector<8x256xf32>
    %217 = arith.cmpf ogt, %212, %216 : vector<8x256xf32>
    %218 = arith.select %217, %208, %188 : vector<8x256xi1>, vector<8x256xf32>
    %c7_i32 = arith.constant 7 : i32
    %c8_i32_58 = arith.constant 8 : i32
    %219 = arith.muli %c7_i32, %c8_i32_58 : i32
    %220 = tpu.assume_multiple %219, 8 : i32
    %221 = arith.index_cast %220 : i32 to index
    %c0_59 = arith.constant 0 : index
    %222 = vector.load %arg8[%221, %c0_59] : memref<64x1024xf32, #tpu.memory_space<vmem>>, vector<8x1024xf32>
    %cst_60 = arith.constant dense<0.000000e+00> : vector<8x1024xf32>
    %223 = tpu.matmul %215, %7, %cst_60 {dimension_numbers = #tpu.dot_dimension_numbers<[1], [0], [0], [1], [0, 0, 1, 1], [], []>} : vector<8x256xf32>, vector<256x1024xf32>, vector<8x1024xf32> -> vector<8x1024xf32>
    %224 = arith.addf %222, %223 : vector<8x1024xf32>
    %225 = vector.extract_strided_slice %224 {offsets = [0, 0], sizes = [8, 768], strides = [1, 1]} : vector<8x1024xf32> to vector<8x768xf32>
    %226 = arith.negf %225 : vector<8x768xf32>
    %227 = math.exp %226 : vector<8x768xf32>
    %cst_61 = arith.constant 1.000000e+00 : f32
    %228 = vector.broadcast %cst_61 : f32 to vector<8x768xf32>
    %229 = arith.addf %228, %227 : vector<8x768xf32>
    %230 = arith.divf %228, %229 : vector<8x768xf32>
    %231 = vector.extract_strided_slice %224 {offsets = [0, 768], sizes = [8, 256], strides = [1, 1]} : vector<8x1024xf32> to vector<8x256xf32>
    %232 = math.tanh %231 : vector<8x256xf32>
    %233 = vector.extract_strided_slice %230 {offsets = [0, 0], sizes = [8, 256], strides = [1, 1]} : vector<8x768xf32> to vector<8x256xf32>
    %234 = vector.extract_strided_slice %230 {offsets = [0, 256], sizes = [8, 256], strides = [1, 1]} : vector<8x768xf32> to vector<8x256xf32>
    %235 = vector.extract_strided_slice %230 {offsets = [0, 512], sizes = [8, 256], strides = [1, 1]} : vector<8x768xf32> to vector<8x256xf32>
    %236 = arith.mulf %234, %218 : vector<8x256xf32>
    %237 = arith.mulf %233, %232 : vector<8x256xf32>
    %238 = arith.addf %236, %237 : vector<8x256xf32>
    %239 = math.tanh %238 : vector<8x256xf32>
    %240 = arith.mulf %235, %239 : vector<8x256xf32>
    %241 = arith.index_cast %220 : i32 to index
    %c0_62 = arith.constant 0 : index
    %242 = vector.load %arg1[%241, %c0_62] : memref<64x256xf32, #tpu.memory_space<vmem>>, vector<8x256xf32>
    %cst_63 = arith.constant 0.000000e+00 : f32
    %243 = vector.broadcast %cst_63 : f32 to vector<8x256xf32>
    %244 = arith.cmpf ogt, %242, %243 : vector<8x256xf32>
    %245 = arith.select %244, %240, %215 : vector<8x256xi1>, vector<8x256xf32>
    %cst_64 = arith.constant 0.000000e+00 : f32
    %246 = vector.broadcast %cst_64 : f32 to vector<8x256xf32>
    %247 = arith.cmpf ogt, %242, %246 : vector<8x256xf32>
    %248 = arith.select %247, %238, %218 : vector<8x256xi1>, vector<8x256xf32>
    %c8_i32_65 = arith.constant 8 : i32
    %c0_66 = arith.constant 0 : index
    %c0_67 = arith.constant 0 : index
    %249 = vector.load %arg5[%c0_66, %c0_67] : memref<256x128xf32, #tpu.memory_space<vmem>>, vector<256x128xf32>
    %cst_68 = arith.constant dense<0.000000e+00> : vector<8x128xf32>
    %250 = tpu.matmul %245, %249, %cst_68 {dimension_numbers = #tpu.dot_dimension_numbers<[1], [0], [0], [1], [0, 0, 1, 1], [], []>} : vector<8x256xf32>, vector<256x128xf32>, vector<8x128xf32> -> vector<8x128xf32>
    %c0_69 = arith.constant 0 : index
    %c0_70 = arith.constant 0 : index
    %251 = vector.load %arg6[%c0_69, %c0_70] : memref<1x128xf32, #tpu.memory_space<vmem>>, vector<1x128xf32>
    %252 = vector.broadcast %251 : vector<1x128xf32> to vector<8x128xf32>
    %253 = arith.addf %250, %252 : vector<8x128xf32>
    %c0_71 = arith.constant 0 : index
    %c0_72 = arith.constant 0 : index
    %254 = vector.load %arg7[%c0_71, %c0_72] : memref<8x128xf32, #tpu.memory_space<vmem>>, vector<8x128xf32>
    tpu.vector_store %arg7[%c0_71, %c0_72], %253 {strides = array<i32>} : memref<8x128xf32, #tpu.memory_space<vmem>>, vector<8x128xf32>,
    return
  }
}

</mosaic_0001>

<llo_original>
// kernel: tpu_custom_call.1
$region0: #{tpu_custom_call.1}
  #allocation0 [shape = 'u32[]', space=smem, size = 0x4, offset = 0x4, fixed_abs, tag = 'smem constant byte address 0x4 - core index']
  #allocation1 [shape = 'u32[144,128]{1,0:T(1,128)}', space=vmem, size = 0x12000, scoped, tag = 'internal scratch']
  #allocation2 [shape = 'f32[64,1024]{1,0:T(8,128)}', space=vmem, size = 0x40000, scoped, tag = 'scratch operand']
  %s0 = inlined_call_operand.hbm [shape: f32[64,64], index: 0, kind: input, shape index: {}]
  %s1 = inlined_call_operand.hbm [shape: f32[64,256], index: 1, kind: input, shape index: {}]
  %s2 = inlined_call_operand.hbm [shape: f32[64,1024], index: 2, kind: input, shape index: {}]
  %s3 = inlined_call_operand.hbm [shape: f32[256,1024], index: 3, kind: input, shape index: {}]
  %s4 = inlined_call_operand.vmem [shape: f32[1,1024], index: 4, kind: input, shape index: {}]
  %s5 = inlined_call_operand.hbm [shape: f32[256,128], index: 5, kind: input, shape index: {}]
  %s6 = inlined_call_operand.vmem [shape: f32[1,128], index: 6, kind: input, shape index: {}]
  %s7 = inlined_call_operand.hbm [shape: f32[8,128], index: 7, kind: output, shape index: {}]
  %s8 = sld [smem:[#allocation0]]
  $region58: #{tpu_custom_call.1} parent=0
    _
  %s10 = ssub.s32 1, %s8
  %s11 = scalar_select 0, %s10, %s8
  $region1: #{tpu_custom_call.1} parent=0
    #allocation3 [shape = 'u8[32768]{0}', space=vmem, size = 0x8000, scoped, tag = 'input window, operand 0, single buffered']
    #allocation4 [shape = 's32[1]{0}', space=sflag, size = 0x4, scoped, tag = 'scoped memory for tpu_custom_call.1']
    #allocation5 [shape = 's32[1]{0}', space=sflag, size = 0x4, scoped, tag = 'scoped memory for tpu_custom_call.1']
    #allocation6 [shape = 'u8[65536]{0}', space=vmem, size = 0x10000, scoped, tag = 'input window, operand 1, single buffered']
    #allocation7 [shape = 's32[1]{0}', space=sflag, size = 0x4, scoped, tag = 'scoped memory for tpu_custom_call.1']
    #allocation8 [shape = 'u8[262144]{0}', space=vmem, size = 0x40000, scoped, tag = 'input window, operand 2, single buffered']
    #allocation9 [shape = 'u8[1048576]{0}', space=vmem, size = 0x100000, scoped, tag = 'input window, operand 3, single buffered']
    #allocation10 [shape = 's32[1]{0}', space=sflag, size = 0x4, scoped, tag = 'scoped memory for tpu_custom_call.1']
    #allocation11 [shape = 'u8[131072]{0}', space=vmem, size = 0x20000, scoped, tag = 'input window, operand 5, single buffered']
    #allocation12 [shape = 'u8[4096]{0}', space=vmem, size = 0x1000, scoped, tag = 'output window, operand 0, single buffered']
    %12 = vsyncpa [#allocation4], 0
    %13 = vsyncpa [#allocation7], 0
    %14 = vsyncpa [#allocation10], 0
    %15 = vsyncpa [#allocation5], 0
    // Predicated region
    $region2: #{tpu_custom_call.1} parent=1 // pred_check
      _
    $region3: #{tpu_custom_call.1} parent=1 // pred_check_branch
      %17 = sbr.rel (0) target = $region5
    $region4: #{tpu_custom_call.1} parent=1 // pred_region
      %s19 = ssub.s32 1024, 1024
      %20 = vsyncadd [#allocation4], %s19
      %s21 = sshll.u32 [#allocation3], 4
      %s22 = int_to_ptr.vmem [resolvable:$true] %s21
      %27 = dma.hbm_to_vmem [thread:$0]  %s0, 1024, %s22, [#allocation4], 128, 128, 8
    $region5: #{tpu_custom_call.1} parent=1 // pred_fallthru
      _
    // Predicated region
    $region6: #{tpu_custom_call.1} parent=1 // pred_check
      _
    $region7: #{tpu_custom_call.1} parent=1 // pred_check_branch
      %29 = sbr.rel (0) target = $region9
    $region8: #{tpu_custom_call.1} parent=1 // pred_region
      %s31 = ssub.s32 2048, 2048
      %32 = vsyncadd [#allocation7], %s31
      %s33 = sshll.u32 [#allocation6], 4
      %s34 = int_to_ptr.vmem [resolvable:$true] %s33
      %39 = dma.hbm_to_vmem [thread:$0]  %s1, 2048, %s34, [#allocation7], 256, 256, 16
    $region9: #{tpu_custom_call.1} parent=1 // pred_fallthru
      _
    // Predicated region
    $region10: #{tpu_custom_call.1} parent=1 // pred_check
      _
    $region11: #{tpu_custom_call.1} parent=1 // pred_check_branch
      %41 = sbr.rel (0) target = $region13
    $region12: #{tpu_custom_call.1} parent=1 // pred_region
      %s43 = ssub.s32 8192, 8192
      %44 = vsyncadd [#allocation7], %s43
      %s45 = sshll.u32 [#allocation8], 4
      %s46 = int_to_ptr.vmem [resolvable:$true] %s45
      %51 = dma.hbm_to_vmem [thread:$0]  %s2, 8192, %s46, [#allocation7], 1024, 1024, 64
    $region13: #{tpu_custom_call.1} parent=1 // pred_fallthru
      _
    // Predicated region
    $region14: #{tpu_custom_call.1} parent=1 // pred_check
      _
    $region15: #{tpu_custom_call.1} parent=1 // pred_check_branch
      %53 = sbr.rel (0) target = $region17
    $region16: #{tpu_custom_call.1} parent=1 // pred_region
      %s55 = ssub.s32 32768, 32768
      %56 = vsyncadd [#allocation10], %s55
      %s57 = sshll.u32 [#allocation9], 4
      %s58 = int_to_ptr.vmem [resolvable:$true] %s57
      %63 = dma.hbm_to_vmem [thread:$0]  %s3, 32768, %s58, [#allocation10], 1024, 1024, 64
    $region17: #{tpu_custom_call.1} parent=1 // pred_fallthru
      _
    // Predicated region
    $region18: #{tpu_custom_call.1} parent=1 // pred_check
      _
    $region19: #{tpu_custom_call.1} parent=1 // pred_check_branch
      %65 = sbr.rel (0) target = $region21
    $region20: #{tpu_custom_call.1} parent=1 // pred_region
      _
    $region21: #{tpu_custom_call.1} parent=1 // pred_fallthru
      _
    // Predicated region
    $region22: #{tpu_custom_call.1} parent=1 // pred_check
      _
    $region23: #{tpu_custom_call.1} parent=1 // pred_check_branch
      %67 = sbr.rel (0) target = $region25
    $region24: #{tpu_custom_call.1} parent=1 // pred_region
      %s69 = ssub.s32 4096, 4096
      %70 = vsyncadd [#allocation10], %s69
      %s71 = sshll.u32 [#allocation11], 4
      %s72 = int_to_ptr.vmem [resolvable:$true] %s71
      %77 = dma.hbm_to_vmem [thread:$0]  %s5, 4096, %s72, [#allocation10], 128, 128, 8
    $region25: #{tpu_custom_call.1} parent=1 // pred_fallthru
      _
    // Predicated region
    $region26: #{tpu_custom_call.1} parent=1 // pred_check
      _
    $region27: #{tpu_custom_call.1} parent=1 // pred_check_branch
      %79 = sbr.rel (0) target = $region29
    $region28: #{tpu_custom_call.1} parent=1 // pred_region
      _
    $region29: #{tpu_custom_call.1} parent=1 // pred_fallthru
      _
    // Predicated region
    $region30: #{tpu_custom_call.1} parent=1 // pred_check
      _
    $region31: #{tpu_custom_call.1} parent=1 // pred_check_branch
      %81 = sbr.rel (0) target = $region33
    $region32: #{tpu_custom_call.1} parent=1 // pred_region
      %82 = dma.done [#allocation4], 1024
    $region33: #{tpu_custom_call.1} parent=1 // pred_fallthru
      _
    // Predicated region
    $region34: #{tpu_custom_call.1} parent=1 // pred_check
      _
    $region35: #{tpu_custom_call.1} parent=1 // pred_check_branch
      %84 = sbr.rel (0) target = $region37
    $region36: #{tpu_custom_call.1} parent=1 // pred_region
      %85 = dma.done [#allocation7], 2048
    $region37: #{tpu_custom_call.1} parent=1 // pred_fallthru
      _
    // Predicated region
    $region38: #{tpu_custom_call.1} parent=1 // pred_check
      _
    $region39: #{tpu_custom_call.1} parent=1 // pred_check_branch
      %87 = sbr.rel (0) target = $region41
    $region40: #{tpu_custom_call.1} parent=1 // pred_region
      %88 = dma.done [#allocation7], 8192
    $region41: #{tpu_custom_call.1} parent=1 // pred_fallthru
      _
    // Predicated region
    $region42: #{tpu_custom_call.1} parent=1 // pred_check
      _
    $region43: #{tpu_custom_call.1} parent=1 // pred_check_branch
      %90 = sbr.rel (0) target = $region45
    $region44: #{tpu_custom_call.1} parent=1 // pred_region
      %91 = dma.done [#allocation10], 32768
    $region45: #{tpu_custom_call.1} parent=1 // pred_fallthru
      _
    // Predicated region
    $region46: #{tpu_custom_call.1} parent=1 // pred_check
      _
    $region47: #{tpu_custom_call.1} parent=1 // pred_check_branch
      %93 = sbr.rel (0) target = $region49
    $region48: #{tpu_custom_call.1} parent=1 // pred_region
      %94 = dma.done [#allocation10], 4096
    $region49: #{tpu_custom_call.1} parent=1 // pred_fallthru
      _
    %v95 = vld [vmem:[#allocation3] sm:$0xff]
    %v96 = vld [vmem:[#allocation3 + $0x8] sm:$0xff]
    %v97 = vld [vmem:[#allocation3 + $0x10] sm:$0xff]
    %v98 = vld [vmem:[#allocation3 + $0x18] sm:$0xff]
    %v99 = vld [vmem:[#allocation3 + $0x20] sm:$0xff]
    %v100 = vld [vmem:[#allocation3 + $0x28] sm:$0xff]
    %v101 = vld [vmem:[#allocation3 + $0x30] sm:$0xff]
    %v102 = vld [vmem:[#allocation3 + $0x38] sm:$0xff]
    %v103 = vld [vmem:[#allocation8] sm:$0xff]
    %v104 = vld [vmem:[#allocation8 + $0x8] sm:$0xff]
    %v105 = vld [vmem:[#allocation8 + $0x10] sm:$0xff]
    %v106 = vld [vmem:[#allocation8 + $0x18] sm:$0xff]
    %v107 = vld [vmem:[#allocation8 + $0x20] sm:$0xff]
    %v108 = vld [vmem:[#allocation8 + $0x28] sm:$0xff]
    %v109 = vld [vmem:[#allocation8 + $0x30] sm:$0xff]
    %v110 = vld [vmem:[#allocation8 + $0x38] sm:$0xff]
    %v111 = vld [vmem:[#allocation8 + $0x40] sm:$0xff]
    %v112 = vld [vmem:[#allocation8 + $0x48] sm:$0xff]
    %v113 = vld [vmem:[#allocation8 + $0x50] sm:$0xff]
    %v114 = vld [vmem:[#allocation8 + $0x58] sm:$0xff]
    %v115 = vld [vmem:[#allocation8 + $0x60] sm:$0xff]
    %v116 = vld [vmem:[#allocation8 + $0x68] sm:$0xff]
    %v117 = vld [vmem:[#allocation8 + $0x70] sm:$0xff]
    %v118 = vld [vmem:[#allocation8 + $0x78] sm:$0xff]
    %v119 = vld [vmem:[#allocation8 + $0x80] sm:$0xff]
    %v120 = vld [vmem:[#allocation8 + $0x88] sm:$0xff]
    %v121 = vld [vmem:[#allocation8 + $0x90] sm:$0xff]
    %v122 = vld [vmem:[#allocation8 + $0x98] sm:$0xff]
    %v123 = vld [vmem:[#allocation8 + $0xa0] sm:$0xff]
    %v124 = vld [vmem:[#allocation8 + $0xa8] sm:$0xff]
    %v125 = vld [vmem:[#allocation8 + $0xb0] sm:$0xff]
    %v126 = vld [vmem:[#allocation8 + $0xb8] sm:$0xff]
    %v127 = vld [vmem:[#allocation8 + $0xc0] sm:$0xff]
    %v128 = vld [vmem:[#allocation8 + $0xc8] sm:$0xff]
    %v129 = vld [vmem:[#allocation8 + $0xd0] sm:$0xff]
    %v130 = vld [vmem:[#allocation8 + $0xd8] sm:$0xff]
    %v131 = vld [vmem:[#allocation8 + $0xe0] sm:$0xff]
    %v132 = vld [vmem:[#allocation8 + $0xe8] sm:$0xff]
    %v133 = vld [vmem:[#allocation8 + $0xf0] sm:$0xff]
    %v134 = vld [vmem:[#allocation8 + $0xf8] sm:$0xff]
    %v135 = vld [vmem:[#allocation8 + $0x100] sm:$0xff]
    %v136 = vld [vmem:[#allocation8 + $0x108] sm:$0xff]
    %v137 = vld [vmem:[#allocation8 + $0x110] sm:$0xff]
    %v138 = vld [vmem:[#allocation8 + $0x118] sm:$0xff]
    %v139 = vld [vmem:[#allocation8 + $0x120] sm:$0xff]
    %v140 = vld [vmem:[#allocation8 + $0x128] sm:$0xff]
    %v141 = vld [vmem:[#allocation8 + $0x130] sm:$0xff]
    %v142 = vld [vmem:[#allocation8 + $0x138] sm:$0xff]
    %v143 = vld [vmem:[#allocation8 + $0x140] sm:$0xff]
    %v144 = vld [vmem:[#allocation8 + $0x148] sm:$0xff]
    %v145 = vld [vmem:[#allocation8 + $0x150] sm:$0xff]
    %v146 = vld [vmem:[#allocation8 + $0x158] sm:$0xff]
    %v147 = vld [vmem:[#allocation8 + $0x160] sm:$0xff]
    %v148 = vld [vmem:[#allocation8 + $0x168] sm:$0xff]
    %v149 = vld [vmem:[#allocation8 + $0x170] sm:$0xff]
    %v150 = vld [vmem:[#allocation8 + $0x178] sm:$0xff]
    %v151 = vld [vmem:[#allocation8 + $0x180] sm:$0xff]
    %v152 = vld [vmem:[#allocation8 + $0x188] sm:$0xff]
    %v153 = vld [vmem:[#allocation8 + $0x190] sm:$0xff]
    %v154 = vld [vmem:[#allocation8 + $0x198] sm:$0xff]
    %v155 = vld [vmem:[#allocation8 + $0x1a0] sm:$0xff]
    %v156 = vld [vmem:[#allocation8 + $0x1a8] sm:$0xff]
    %v157 = vld [vmem:[#allocation8 + $0x1b0] sm:$0xff]
    %v158 = vld [vmem:[#allocation8 + $0x1b8] sm:$0xff]
    %v159 = vld [vmem:[#allocation8 + $0x1c0] sm:$0xff]
    %v160 = vld [vmem:[#allocation8 + $0x1c8] sm:$0xff]
    %v161 = vld [vmem:[#allocation8 + $0x1d0] sm:$0xff]
    %v162 = vld [vmem:[#allocation8 + $0x1d8] sm:$0xff]
    %v163 = vld [vmem:[#allocation8 + $0x1e0] sm:$0xff]
    %v164 = vld [vmem:[#allocation8 + $0x1e8] sm:$0xff]
    %v165 = vld [vmem:[#allocation8 + $0x1f0] sm:$0xff]
    %v166 = vld [vmem:[#allocation8 + $0x1f8] sm:$0xff]
    %v167 = vld [vmem:[%s4] sm:$0xff]
    %v169 = vlaneseq
    %v170 = vshrl.u32 %v169, 7
    %v171 = vsub.s32 0, %v170
    %v172 = vrot.slane %v167, %v171
    %v173 = vlaneseq
    %v174 = vshrl.u32 %v173, 7
    %v175 = vsub.s32 1, %v174
    %v176 = vrot.slane %v167, %v175
    %v177 = vlaneseq
    %v178 = vshrl.u32 %v177, 7
    %v179 = vsub.s32 2, %v178
    %v180 = vrot.slane %v167, %v179
    %v181 = vlaneseq
    %v182 = vshrl.u32 %v181, 7
    %v183 = vsub.s32 3, %v182
    %v184 = vrot.slane %v167, %v183
    %v185 = vlaneseq
    %v186 = vshrl.u32 %v185, 7
    %v187 = vsub.s32 4, %v186
    %v188 = vrot.slane %v167, %v187
    %v189 = vlaneseq
    %v190 = vshrl.u32 %v189, 7
    %v191 = vsub.s32 5, %v190
    %v192 = vrot.slane %v167, %v191
    %v193 = vlaneseq
    %v194 = vshrl.u32 %v193, 7
    %v195 = vsub.s32 6, %v194
    %v196 = vrot.slane %v167, %v195
    %v197 = vlaneseq
    %v198 = vshrl.u32 %v197, 7
    %v199 = vsub.s32 7, %v198
    %v200 = vrot.slane %v167, %v199
    %vm209 = vcmask 523264
    %v211 = vsel %vm209, %v95, 0
    %v214 = vsel %vm209, %v96, 0
    %v217 = vsel %vm209, %v97, 0
    %v220 = vsel %vm209, %v98, 0
    %v223 = vsel %vm209, %v99, 0
    %v226 = vsel %vm209, %v100, 0
    %v229 = vsel %vm209, %v101, 0
    %v232 = vsel %vm209, %v102, 0
    %234 = vmatprep.subr.mxu0 %v104
    %235 = vmatpush1.msra.mxu0 %v103
    %236 = vmatprep.subr.mxu0 %v112
    %237 = vmatpush1.msra.mxu0 %v111
    %238 = vmatprep.subr.mxu0 %v120
    %239 = vmatpush1.msra.mxu0 %v119
    %240 = vmatprep.subr.mxu0 %v128
    %241 = vmatpush1.msra.mxu0 %v127
    %242 = vmatprep.subr.mxu0 %v136
    %243 = vmatpush1.msra.mxu0 %v135
    %244 = vmatprep.subr.mxu0 %v144
    %245 = vmatpush1.msra.mxu0 %v143
    %246 = vmatprep.subr.mxu0 %v152
    %247 = vmatpush1.msra.mxu0 %v151
    %248 = vmatprep.subr.mxu0 %v160
    %249 = vmatpush1.msra.mxu0 %v159
    %250 = vmatprep.subr.mxu0 0.0
    %251 = vmatpush1.msra.mxu0 0.0
    %252 = vmatprep.subr.mxu0 0.0
    %253 = vmatpush1.msra.mxu0 0.0
    %254 = vmatprep.subr.mxu0 0.0
    %255 = vmatpush1.msra.mxu0 0.0
    %256 = vmatprep.subr.mxu0 0.0
    %257 = vmatpush1.msra.mxu0 0.0
    %258 = vmatprep.subr.mxu0 0.0
    %259 = vmatpush1.msra.mxu0 0.0
    %260 = vmatprep.subr.mxu0 0.0
    %261 = vmatpush1.msra.mxu0 0.0
    %262 = vmatprep.subr.mxu0 0.0
    %263 = vmatpush1.msra.mxu0 0.0
    %264 = vmatprep.subr.mxu0 0.0
    %265 = vmatpush1.msra.mxu0 0.0
    %266 = vmatprep.subr.mxu0 0.0
    %267 = vmatpush1.msra.mxu0 0.0
    %268 = vmatprep.subr.mxu0 0.0
    %269 = vmatpush1.msra.mxu0 0.0
    %270 = vmatprep.subr.mxu0 0.0
    %271 = vmatpush1.msra.mxu0 0.0
    %272 = vmatprep.subr.mxu0 0.0
    %273 = vmatpush1.msra.mxu0 0.0
    %274 = vmatprep.subr.mxu0 0.0
    %275 = vmatpush1.msra.mxu0 0.0
    %276 = vmatprep.subr.mxu0 0.0
    %277 = vmatpush1.msra.mxu0 0.0
    %278 = vmatprep.subr.mxu0 0.0
    %279 = vmatpush1.msra.mxu0 0.0
    %280 = vmatprep.subr.mxu0 0.0
    %281 = vmatpush1.msra.mxu0 0.0
    %282 = vmatprep.subr.mxu0 0.0
    %283 = vmatpush1.msra.mxu0 0.0
    %284 = vmatprep.subr.mxu0 0.0
    %285 = vmatpush1.msra.mxu0 0.0
    %286 = vmatprep.subr.mxu0 0.0
    %287 = vmatpush1.msra.mxu0 0.0
    %288 = vmatprep.subr.mxu0 0.0
    %289 = vmatpush1.msra.mxu0 0.0
    %290 = vmatprep.subr.mxu0 0.0
    %291 = vmatpush1.msra.mxu0 0.0
    %292 = vmatprep.subr.mxu0 0.0
    %293 = vmatpush1.msra.mxu0 0.0
    %294 = vmatprep.subr.mxu0 0.0
    %295 = vmatpush1.msra.mxu0 0.0
    %296 = vmatprep.subr.mxu0 0.0
    %297 = vmatpush1.msra.mxu0 0.0
    %298 = vmatprep.mubr.f32.mxu0 0.0
    %299 = vmatmul.mubr.f32.gmra.mrb[0].mxu0 %v211
    %v300 = vpop.f32.mrb[0].mxu0
    %v301 = vadd.f32 %v172, %v300
    %v302 = vpop.f32.mrb[0].mxu0
    %v303 = vadd.f32 %v176, %v302
    %304 = vmatprep.mubr.f32.mxu0 0.0
    %305 = vmatmul.mubr.f32.gmra.mrb[0].mxu0 %v214
    %v306 = vpop.f32.mrb[0].mxu0
    %v307 = vadd.f32 %v172, %v306
    %v308 = vpop.f32.mrb[0].mxu0
    %v309 = vadd.f32 %v176, %v308
    %310 = vmatprep.mubr.f32.mxu0 0.0
    %311 = vmatmul.mubr.f32.gmra.mrb[0].mxu0 %v217
    %v312 = vpop.f32.mrb[0].mxu0
    %v313 = vadd.f32 %v172, %v312
    %v314 = vpop.f32.mrb[0].mxu0
    %v315 = vadd.f32 %v176, %v314
    %316 = vmatprep.mubr.f32.mxu0 0.0
    %317 = vmatmul.mubr.f32.gmra.mrb[0].mxu0 %v220
    %v318 = vpop.f32.mrb[0].mxu0
    %v319 = vadd.f32 %v172, %v318
    %v320 = vpop.f32.mrb[0].mxu0
    %v321 = vadd.f32 %v176, %v320
    %322 = vmatprep.mubr.f32.mxu0 0.0
    %323 = vmatmul.mubr.f32.gmra.mrb[0].mxu0 %v223
    %v324 = vpop.f32.mrb[0].mxu0
    %v325 = vadd.f32 %v172, %v324
    %v326 = vpop.f32.mrb[0].mxu0
    %v327 = vadd.f32 %v176, %v326
    %328 = vmatprep.mubr.f32.mxu0 0.0
    %329 = vmatmul.mubr.f32.gmra.mrb[0].mxu0 %v226
    %v330 = vpop.f32.mrb[0].mxu0
    %v331 = vadd.f32 %v172, %v330
    %v332 = vpop.f32.mrb[0].mxu0
    %v333 = vadd.f32 %v176, %v332
    %334 = vmatprep.mubr.f32.mxu0 0.0
    %335 = vmatmul.mubr.f32.gmra.mrb[0].mxu0 %v229
    %v336 = vpop.f32.mrb[0].mxu0
    %v337 = vadd.f32 %v172, %v336
    %v338 = vpop.f32.mrb[0].mxu0
    %v339 = vadd.f32 %v176, %v338
    %340 = vmatprep.mubr.f32.mxu0 0.0
    %341 = vmatmul.mubr.f32.gmra.mrb[0].mxu0 %v232
    %v342 = vpop.f32.mrb[0].mxu0
    %v343 = vadd.f32 %v172, %v342
    %v344 = vpop.f32.mrb[0].mxu0
    %v345 = vadd.f32 %v176, %v344
    %346 = vdwg.mxu0
    %347 = vmatprep.subr.mxu0 %v106
    %348 = vmatpush1.msra.mxu0 %v105
    %349 = vmatprep.subr.mxu0 %v114
    %350 = vmatpush1.msra.mxu0 %v113
    %351 = vmatprep.subr.mxu0 %v122
    %352 = vmatpush1.msra.mxu0 %v121
    %353 = vmatprep.subr.mxu0 %v130
    %354 = vmatpush1.msra.mxu0 %v129
    %355 = vmatprep.subr.mxu0 %v138
    %356 = vmatpush1.msra.mxu0 %v137
    %357 = vmatprep.subr.mxu0 %v146
    %358 = vmatpush1.msra.mxu0 %v145
    %359 = vmatprep.subr.mxu0 %v154
    %360 = vmatpush1.msra.mxu0 %v153
    %361 = vmatprep.subr.mxu0 %v162
    %362 = vmatpush1.msra.mxu0 %v161
    %363 = vmatprep.subr.mxu0 0.0
    %364 = vmatpush1.msra.mxu0 0.0
    %365 = vmatprep.subr.mxu0 0.0
    %366 = vmatpush1.msra.mxu0 0.0
    %367 = vmatprep.subr.mxu0 0.0
    %368 = vmatpush1.msra.mxu0 0.0
    %369 = vmatprep.subr.mxu0 0.0
    %370 = vmatpush1.msra.mxu0 0.0
    %371 = vmatprep.subr.mxu0 0.0
    %372 = vmatpush1.msra.mxu0 0.0
    %373 = vmatprep.subr.mxu0 0.0
    %374 = vmatpush1.msra.mxu0 0.0
    %375 = vmatprep.subr.mxu0 0.0
    %376 = vmatpush1.msra.mxu0 0.0
    %377 = vmatprep.subr.mxu0 0.0
    %378 = vmatpush1.msra.mxu0 0.0
    %379 = vmatprep.subr.mxu0 0.0
    %380 = vmatpush1.msra.mxu0 0.0
    %381 = vmatprep.subr.mxu0 0.0
    %382 = vmatpush1.msra.mxu0 0.0
    %383 = vmatprep.subr.mxu0 0.0
    %384 = vmatpush1.msra.mxu0 0.0
    %385 = vmatprep.subr.mxu0 0.0
    %386 = vmatpush1.msra.mxu0 0.0
    %387 = vmatprep.subr.mxu0 0.0
    %388 = vmatpush1.msra.mxu0 0.0
    %389 = vmatprep.subr.mxu0 0.0
    %390 = vmatpush1.msra.mxu0 0.0
    %391 = vmatprep.subr.mxu0 0.0
    %392 = vmatpush1.msra.mxu0 0.0
    %393 = vmatprep.subr.mxu0 0.0
    %394 = vmatpush1.msra.mxu0 0.0
    %395 = vmatprep.subr.mxu0 0.0
    %396 = vmatpush1.msra.mxu0 0.0
    %397 = vmatprep.subr.mxu0 0.0
    %398 = vmatpush1.msra.mxu0 0.0
    %399 = vmatprep.subr.mxu0 0.0
    %400 = vmatpush1.msra.mxu0 0.0
    %401 = vmatprep.subr.mxu0 0.0
    %402 = vmatpush1.msra.mxu0 0.0
    %403 = vmatprep.subr.mxu0 0.0
    %404 = vmatpush1.msra.mxu0 0.0
    %405 = vmatprep.subr.mxu0 0.0
    %406 = vmatpush1.msra.mxu0 0.0
    %407 = vmatprep.subr.mxu0 0.0
    %408 = vmatpush1.msra.mxu0 0.0
    %409 = vmatprep.subr.mxu0 0.0
    %410 = vmatpush1.msra.mxu0 0.0
    %411 = vmatprep.mubr.f32.mxu0 0.0
    %412 = vmatmul.mubr.f32.gmra.mrb[0].mxu0 %v211
    %v413 = vpop.f32.mrb[0].mxu0
    %v414 = vadd.f32 %v180, %v413
    %v415 = vpop.f32.mrb[0].mxu0
    %v416 = vadd.f32 %v184, %v415
    %417 = vmatprep.mubr.f32.mxu0 0.0
    %418 = vmatmul.mubr.f32.gmra.mrb[0].mxu0 %v214
    %v419 = vpop.f32.mrb[0].mxu0
    %v420 = vadd.f32 %v180, %v419
    %v421 = vpop.f32.mrb[0].mxu0
    %v422 = vadd.f32 %v184, %v421
    %423 = vmatprep.mubr.f32.mxu0 0.0
    %424 = vmatmul.mubr.f32.gmra.mrb[0].mxu0 %v217
    %v425 = vpop.f32.mrb[0].mxu0
    %v426 = vadd.f32 %v180, %v425
    %v427 = vpop.f32.mrb[0].mxu0
    %v428 = vadd.f32 %v184, %v427
    %429 = vmatprep.mubr.f32.mxu0 0.0
    %430 = vmatmul.mubr.f32.gmra.mrb[0].mxu0 %v220
    %v431 = vpop.f32.mrb[0].mxu0
    %v432 = vadd.f32 %v180, %v431
    %v433 = vpop.f32.mrb[0].mxu0
    %v434 = vadd.f32 %v184, %v433
    %435 = vmatprep.mubr.f32.mxu0 0.0
    %436 = vmatmul.mubr.f32.gmra.mrb[0].mxu0 %v223
    %v437 = vpop.f32.mrb[0].mxu0
    %v438 = vadd.f32 %v180, %v437
    %v439 = vpop.f32.mrb[0].mxu0
    %v440 = vadd.f32 %v184, %v439
    %441 = vmatprep.mubr.f32.mxu0 0.0
    %442 = vmatmul.mubr.f32.gmra.mrb[0].mxu0 %v226
    %v443 = vpop.f32.mrb[0].mxu0
    %v444 = vadd.f32 %v180, %v443
    %v445 = vpop.f32.mrb[0].mxu0
    %v446 = vadd.f32 %v184, %v445
    %447 = vmatprep.mubr.f32.mxu0 0.0
    %448 = vmatmul.mubr.f32.gmra.mrb[0].mxu0 %v229
    %v449 = vpop.f32.mrb[0].mxu0
    %v450 = vadd.f32 %v180, %v449
    %v451 = vpop.f32.mrb[0].mxu0
    %v452 = vadd.f32 %v184, %v451
    %453 = vmatprep.mubr.f32.mxu0 0.0
    %454 = vmatmul.mubr.f32.gmra.mrb[0].mxu0 %v232
    %v455 = vpop.f32.mrb[0].mxu0
    %v456 = vadd.f32 %v180, %v455
    %v457 = vpop.f32.mrb[0].mxu0
    %v458 = vadd.f32 %v184, %v457
    %459 = vdwg.mxu0
    %460 = vmatprep.subr.mxu0 %v108
    %461 = vmatpush1.msra.mxu0 %v107
    %462 = vmatprep.subr.mxu0 %v116
    %463 = vmatpush1.msra.mxu0 %v115
    %464 = vmatprep.subr.mxu0 %v124
    %465 = vmatpush1.msra.mxu0 %v123
    %466 = vmatprep.subr.mxu0 %v132
    %467 = vmatpush1.msra.mxu0 %v131
    %468 = vmatprep.subr.mxu0 %v140
    %469 = vmatpush1.msra.mxu0 %v139
    %470 = vmatprep.subr.mxu0 %v148
    %471 = vmatpush1.msra.mxu0 %v147
    %472 = vmatprep.subr.mxu0 %v156
    %473 = vmatpush1.msra.mxu0 %v155
    %474 = vmatprep.subr.mxu0 %v164
    %475 = vmatpush1.msra.mxu0 %v163
    %476 = vmatprep.subr.mxu0 0.0
    %477 = vmatpush1.msra.mxu0 0.0
    %478 = vmatprep.subr.mxu0 0.0
    %479 = vmatpush1.msra.mxu0 0.0
    %480 = vmatprep.subr.mxu0 0.0
    %481 = vmatpush1.msra.mxu0 0.0
    %482 = vmatprep.subr.mxu0 0.0
    %483 = vmatpush1.msra.mxu0 0.0
    %484 = vmatprep.subr.mxu0 0.0
    %485 = vmatpush1.msra.mxu0 0.0
    %486 = vmatprep.subr.mxu0 0.0
    %487 = vmatpush1.msra.mxu0 0.0
    %488 = vmatprep.subr.mxu0 0.0
    %489 = vmatpush1.msra.mxu0 0.0
    %490 = vmatprep.subr.mxu0 0.0
    %491 = vmatpush1.msra.mxu0 0.0
    %492 = vmatprep.subr.mxu0 0.0
    %493 = vmatpush1.msra.mxu0 0.0
    %494 = vmatprep.subr.mxu0 0.0
    %495 = vmatpush1.msra.mxu0 0.0
    %496 = vmatprep.subr.mxu0 0.0
    %497 = vmatpush1.msra.mxu0 0.0
    %498 = vmatprep.subr.mxu0 0.0
    %499 = vmatpush1.msra.mxu0 0.0
    %500 = vmatprep.subr.mxu0 0.0
    %501 = vmatpush1.msra.mxu0 0.0
    %502 = vmatprep.subr.mxu0 0.0
    %503 = vmatpush1.msra.mxu0 0.0
    %504 = vmatprep.subr.mxu0 0.0
    %505 = vmatpush1.msra.mxu0 0.0
    %506 = vmatprep.subr.mxu0 0.0
    %507 = vmatpush1.msra.mxu0 0.0
    %508 = vmatprep.subr.mxu0 0.0
    %509 = vmatpush1.msra.mxu0 0.0
    %510 = vmatprep.subr.mxu0 0.0
    %511 = vmatpush1.msra.mxu0 0.0
    %512 = vmatprep.subr.mxu0 0.0
    %513 = vmatpush1.msra.mxu0 0.0
    %514 = vmatprep.subr.mxu0 0.0
    %515 = vmatpush1.msra.mxu0 0.0
    %516 = vmatprep.subr.mxu0 0.0
    %517 = vmatpush1.msra.mxu0 0.0
    %518 = vmatprep.subr.mxu0 0.0
    %519 = vmatpush1.msra.mxu0 0.0
    %520 = vmatprep.subr.mxu0 0.0
    %521 = vmatpush1.msra.mxu0 0.0
    %522 = vmatprep.subr.mxu0 0.0
    %523 = vmatpush1.msra.mxu0 0.0
    %524 = vmatprep.mubr.f32.mxu0 0.0
    %525 = vmatmul.mubr.f32.gmra.mrb[0].mxu0 %v211
    %v526 = vpop.f32.mrb[0].mxu0
    %v527 = vadd.f32 %v188, %v526
    %v528 = vpop.f32.mrb[0].mxu0
    %v529 = vadd.f32 %v192, %v528
    %530 = vmatprep.mubr.f32.mxu0 0.0
    %531 = vmatmul.mubr.f32.gmra.mrb[0].mxu0 %v214
    %v532 = vpop.f32.mrb[0].mxu0
    %v533 = vadd.f32 %v188, %v532
    %v534 = vpop.f32.mrb[0].mxu0
    %v535 = vadd.f32 %v192, %v534
    %536 = vmatprep.mubr.f32.mxu0 0.0
    %537 = vmatmul.mubr.f32.gmra.mrb[0].mxu0 %v217
    %v538 = vpop.f32.mrb[0].mxu0
    %v539 = vadd.f32 %v188, %v538
    %v540 = vpop.f32.mrb[0].mxu0
    %v541 = vadd.f32 %v192, %v540
    %542 = vmatprep.mubr.f32.mxu0 0.0
    %543 = vmatmul.mubr.f32.gmra.mrb[0].mxu0 %v220
    %v544 = vpop.f32.mrb[0].mxu0
    %v545 = vadd.f32 %v188, %v544
    %v546 = vpop.f32.mrb[0].mxu0
    %v547 = vadd.f32 %v192, %v546
    %548 = vmatprep.mubr.f32.mxu0 0.0
    %549 = vmatmul.mubr.f32.gmra.mrb[0].mxu0 %v223
    %v550 = vpop.f32.mrb[0].mxu0
    %v551 = vadd.f32 %v188, %v550
    %v552 = vpop.f32.mrb[0].mxu0
    %v553 = vadd.f32 %v192, %v552
    %554 = vmatprep.mubr.f32.mxu0 0.0
    %555 = vmatmul.mubr.f32.gmra.mrb[0].mxu0 %v226
    %v556 = vpop.f32.mrb[0].mxu0
    %v557 = vadd.f32 %v188, %v556
    %v558 = vpop.f32.mrb[0].mxu0
    %v559 = vadd.f32 %v192, %v558
    %560 = vmatprep.mubr.f32.mxu0 0.0
    %561 = vmatmul.mubr.f32.gmra.mrb[0].mxu0 %v229
    %v562 = vpop.f32.mrb[0].mxu0
    %v563 = vadd.f32 %v188, %v562
    %v564 = vpop.f32.mrb[0].mxu0
    %v565 = vadd.f32 %v192, %v564
    %566 = vmatprep.mubr.f32.mxu0 0.0
    %567 = vmatmul.mubr.f32.gmra.mrb[0].mxu0 %v232
    %v568 = vpop.f32.mrb[0].mxu0
    %v569 = vadd.f32 %v188, %v568
    %v570 = vpop.f32.mrb[0].mxu0
    %v571 = vadd.f32 %v192, %v570
    %572 = vdwg.mxu0
    %573 = vmatprep.subr.mxu0 %v110
    %574 = vmatpush1.msra.mxu0 %v109
    %575 = vmatprep.subr.mxu0 %v118
    %576 = vmatpush1.msra.mxu0 %v117
    %577 = vmatprep.subr.mxu0 %v126
    %578 = vmatpush1.msra.mxu0 %v125
    %579 = vmatprep.subr.mxu0 %v134
    %580 = vmatpush1.msra.mxu0 %v133
    %581 = vmatprep.subr.mxu0 %v142
    %582 = vmatpush1.msra.mxu0 %v141
    %583 = vmatprep.subr.mxu0 %v150
    %584 = vmatpush1.msra.mxu0 %v149
    %585 = vmatprep.subr.mxu0 %v158
    %586 = vmatpush1.msra.mxu0 %v157
    %587 = vmatprep.subr.mxu0 %v166
    %588 = vmatpush1.msra.mxu0 %v165
    %589 = vmatprep.subr.mxu0 0.0
    %590 = vmatpush1.msra.mxu0 0.0
    %591 = vmatprep.subr.mxu0 0.0
    %592 = vmatpush1.msra.mxu0 0.0
    %593 = vmatprep.subr.mxu0 0.0
    %594 = vmatpush1.msra.mxu0 0.0
    %595 = vmatprep.subr.mxu0 0.0
    %596 = vmatpush1.msra.mxu0 0.0
    %597 = vmatprep.subr.mxu0 0.0
    %598 = vmatpush1.msra.mxu0 0.0
    %599 = vmatprep.subr.mxu0 0.0
    %600 = vmatpush1.msra.mxu0 0.0
    %601 = vmatprep.subr.mxu0 0.0
    %602 = vmatpush1.msra.mxu0 0.0
    %603 = vmatprep.subr.mxu0 0.0
    %604 = vmatpush1.msra.mxu0 0.0
    %605 = vmatprep.subr.mxu0 0.0
    %606 = vmatpush1.msra.mxu0 0.0
    %607 = vmatprep.subr.mxu0 0.0
    %608 = vmatpush1.msra.mxu0 0.0
    %609 = vmatprep.subr.mxu0 0.0
    %610 = vmatpush1.msra.mxu0 0.0
    %611 = vmatprep.subr.mxu0 0.0
    %612 = vmatpush1.msra.mxu0 0.0
    %613 = vmatprep.subr.mxu0 0.0
    %614 = vmatpush1.msra.mxu0 0.0
    %615 = vmatprep.subr.mxu0 0.0
    %616 = vmatpush1.msra.mxu0 0.0
    %617 = vmatprep.subr.mxu0 0.0
    %618 = vmatpush1.msra.mxu0 0.0
    %619 = vmatprep.subr.mxu0 0.0
    %620 = vmatpush1.msra.mxu0 0.0
    %621 = vmatprep.subr.mxu0 0.0
    %622 = vmatpush1.msra.mxu0 0.0
    %623 = vmatprep.subr.mxu0 0.0
    %624 = vmatpush1.msra.mxu0 0.0
    %625 = vmatprep.subr.mxu0 0.0
    %626 = vmatpush1.msra.mxu0 0.0
    %627 = vmatprep.subr.mxu0 0.0
    %628 = vmatpush1.msra.mxu0 0.0
    %629 = vmatprep.subr.mxu0 0.0
    %630 = vmatpush1.msra.mxu0 0.0
    %631 = vmatprep.subr.mxu0 0.0
    %632 = vmatpush1.msra.mxu0 0.0
    %633 = vmatprep.subr.mxu0 0.0
    %634 = vmatpush1.msra.mxu0 0.0
    %635 = vmatprep.subr.mxu0 0.0
    %636 = vmatpush1.msra.mxu0 0.0
    %637 = vmatprep.mubr.f32.mxu0 0.0
    %638 = vmatmul.mubr.f32.gmra.mrb[0].mxu0 %v211
    %v639 = vpop.f32.mrb[0].mxu0
    %v640 = vadd.f32 %v196, %v639
    %v641 = vpop.f32.mrb[0].mxu0
    %v642 = vadd.f32 %v200, %v641
    %643 = vmatprep.mubr.f32.mxu0 0.0
    %644 = vmatmul.mubr.f32.gmra.mrb[0].mxu0 %v214
    %v645 = vpop.f32.mrb[0].mxu0
    %v646 = vadd.f32 %v196, %v645
    %v647 = vpop.f32.mrb[0].mxu0
    %v648 = vadd.f32 %v200, %v647
    %649 = vmatprep.mubr.f32.mxu0 0.0
    %650 = vmatmul.mubr.f32.gmra.mrb[0].mxu0 %v217
    %v651 = vpop.f32.mrb[0].mxu0
    %v652 = vadd.f32 %v196, %v651
    %v653 = vpop.f32.mrb[0].mxu0
    %v654 = vadd.f32 %v200, %v653
    %655 = vmatprep.mubr.f32.mxu0 0.0
    %656 = vmatmul.mubr.f32.gmra.mrb[0].mxu0 %v220
    %v657 = vpop.f32.mrb[0].mxu0
    %v658 = vadd.f32 %v196, %v657
    %v659 = vpop.f32.mrb[0].mxu0
    %v660 = vadd.f32 %v200, %v659
    %661 = vmatprep.mubr.f32.mxu0 0.0
    %662 = vmatmul.mubr.f32.gmra.mrb[0].mxu0 %v223
    %v663 = vpop.f32.mrb[0].mxu0
    %v664 = vadd.f32 %v196, %v663
    %v665 = vpop.f32.mrb[0].mxu0
    %v666 = vadd.f32 %v200, %v665
    %667 = vmatprep.mubr.f32.mxu0 0.0
    %668 = vmatmul.mubr.f32.gmra.mrb[0].mxu0 %v226
    %v669 = vpop.f32.mrb[0].mxu0
    %v670 = vadd.f32 %v196, %v669
    %v671 = vpop.f32.mrb[0].mxu0
    %v672 = vadd.f32 %v200, %v671
    %673 = vmatprep.mubr.f32.mxu0 0.0
    %674 = vmatmul.mubr.f32.gmra.mrb[0].mxu0 %v229
    %v675 = vpop.f32.mrb[0].mxu0
    %v676 = vadd.f32 %v196, %v675
    %v677 = vpop.f32.mrb[0].mxu0
    %v678 = vadd.f32 %v200, %v677
    %679 = vmatprep.mubr.f32.mxu0 0.0
    %680 = vmatmul.mubr.f32.gmra.mrb[0].mxu0 %v232
    %v681 = vpop.f32.mrb[0].mxu0
    %v682 = vadd.f32 %v196, %v681
    %v683 = vpop.f32.mrb[0].mxu0
    %v684 = vadd.f32 %v200, %v683
    %685 = vdwg.mxu0
    %686 = vst [vmem:[#allocation2] sm:$0xff] %v301
    %687 = vst [vmem:[#allocation2 + $0x8] sm:$0xff] %v303
    %688 = vst [vmem:[#allocation2 + $0x10] sm:$0xff] %v414
    %689 = vst [vmem:[#allocation2 + $0x18] sm:$0xff] %v416
    %690 = vst [vmem:[#allocation2 + $0x20] sm:$0xff] %v527
    %691 = vst [vmem:[#allocation2 + $0x28] sm:$0xff] %v529
    %692 = vst [vmem:[#allocation2 + $0x30] sm:$0xff] %v640
    %693 = vst [vmem:[#allocation2 + $0x38] sm:$0xff] %v642
    %694 = vst [vmem:[#allocation2 + $0x40] sm:$0xff] %v307
    %695 = vst [vmem:[#allocation2 + $0x48] sm:$0xff] %v309
    %696 = vst [vmem:[#allocation2 + $0x50] sm:$0xff] %v420
    %697 = vst [vmem:[#allocation2 + $0x58] sm:$0xff] %v422
    %698 = vst [vmem:[#allocation2 + $0x60] sm:$0xff] %v533
    %699 = vst [vmem:[#allocation2 + $0x68] sm:$0xff] %v535
    %700 = vst [vmem:[#allocation2 + $0x70] sm:$0xff] %v646
    %701 = vst [vmem:[#allocation2 + $0x78] sm:$0xff] %v648
    %702 = vst [vmem:[#allocation2 + $0x80] sm:$0xff] %v313
    %703 = vst [vmem:[#allocation2 + $0x88] sm:$0xff] %v315
    %704 = vst [vmem:[#allocation2 + $0x90] sm:$0xff] %v426
    %705 = vst [vmem:[#allocation2 + $0x98] sm:$0xff] %v428
    %706 = vst [vmem:[#allocation2 + $0xa0] sm:$0xff] %v539
    %707 = vst [vmem:[#allocation2 + $0xa8] sm:$0xff] %v541
    %708 = vst [vmem:[#allocation2 + $0xb0] sm:$0xff] %v652
    %709 = vst [vmem:[#allocation2 + $0xb8] sm:$0xff] %v654
    %710 = vst [vmem:[#allocation2 + $0xc0] sm:$0xff] %v319
    %711 = vst [vmem:[#allocation2 + $0xc8] sm:$0xff] %v321
    %712 = vst [vmem:[#allocation2 + $0xd0] sm:$0xff] %v432
    %713 = vst [vmem:[#allocation2 + $0xd8] sm:$0xff] %v434
    %714 = vst [vmem:[#allocation2 + $0xe0] sm:$0xff] %v545
    %715 = vst [vmem:[#allocation2 + $0xe8] sm:$0xff] %v547
    %716 = vst [vmem:[#allocation2 + $0xf0] sm:$0xff] %v658
    %717 = vst [vmem:[#allocation2 + $0xf8] sm:$0xff] %v660
    %718 = vst [vmem:[#allocation2 + $0x100] sm:$0xff] %v325
    %719 = vst [vmem:[#allocation2 + $0x108] sm:$0xff] %v327
    %720 = vst [vmem:[#allocation2 + $0x110] sm:$0xff] %v438
    %721 = vst [vmem:[#allocation2 + $0x118] sm:$0xff] %v440
    %722 = vst [vmem:[#allocation2 + $0x120] sm:$0xff] %v551
    %723 = vst [vmem:[#allocation2 + $0x128] sm:$0xff] %v553
    %724 = vst [vmem:[#allocation2 + $0x130] sm:$0xff] %v664
    %725 = vst [vmem:[#allocation2 + $0x138] sm:$0xff] %v666
    %726 = vst [vmem:[#allocation2 + $0x140] sm:$0xff] %v331
    %727 = vst [vmem:[#allocation2 + $0x148] sm:$0xff] %v333
    %728 = vst [vmem:[#allocation2 + $0x150] sm:$0xff] %v444
    %729 = vst [vmem:[#allocation2 + $0x158] sm:$0xff] %v446
    %730 = vst [vmem:[#allocation2 + $0x160] sm:$0xff] %v557
    %731 = vst [vmem:[#allocation2 + $0x168] sm:$0xff] %v559
    %732 = vst [vmem:[#allocation2 + $0x170] sm:$0xff] %v670
    %733 = vst [vmem:[#allocation2 + $0x178] sm:$0xff] %v672
    %734 = vst [vmem:[#allocation2 + $0x180] sm:$0xff] %v337
    %735 = vst [vmem:[#allocation2 + $0x188] sm:$0xff] %v339
    %736 = vst [vmem:[#allocation2 + $0x190] sm:$0xff] %v450
    %737 = vst [vmem:[#allocation2 + $0x198] sm:$0xff] %v452
    %738 = vst [vmem:[#allocation2 + $0x1a0] sm:$0xff] %v563
    %739 = vst [vmem:[#allocation2 + $0x1a8] sm:$0xff] %v565
    %740 = vst [vmem:[#allocation2 + $0x1b0] sm:$0xff] %v676
    %741 = vst [vmem:[#allocation2 + $0x1b8] sm:$0xff] %v678
    %742 = vst [vmem:[#allocation2 + $0x1c0] sm:$0xff] %v343
    %743 = vst [vmem:[#allocation2 + $0x1c8] sm:$0xff] %v345
    %744 = vst [vmem:[#allocation2 + $0x1d0] sm:$0xff] %v456
    %745 = vst [vmem:[#allocation2 + $0x1d8] sm:$0xff] %v458
    %746 = vst [vmem:[#allocation2 + $0x1e0] sm:$0xff] %v569
    %747 = vst [vmem:[#allocation2 + $0x1e8] sm:$0xff] %v571
    %748 = vst [vmem:[#allocation2 + $0x1f0] sm:$0xff] %v682
    %749 = vst [vmem:[#allocation2 + $0x1f8] sm:$0xff] %v684
    %v750 = vld [vmem:[#allocation9] sm:$0xff]
    %v751 = vld [vmem:[#allocation9 + $0x8] sm:$0xff]
    %v752 = vld [vmem:[#allocation9 + $0x10] sm:$0xff]
    %v753 = vld [vmem:[#allocation9 + $0x18] sm:$0xff]
    %v754 = vld [vmem:[#allocation9 + $0x20] sm:$0xff]
    %v755 = vld [vmem:[#allocation9 + $0x28] sm:$0xff]
    %v756 = vld [vmem:[#allocation9 + $0x30] sm:$0xff]
    %v757 = vld [vmem:[#allocation9 + $0x38] sm:$0xff]
    %v758 = vld [vmem:[#allocation9 + $0x40] sm:$0xff]
    %v759 = vld [vmem:[#allocation9 + $0x48] sm:$0xff]
    %v760 = vld [vmem:[#allocation9 + $0x50] sm:$0xff]
    %v761 = vld [vmem:[#allocation9 + $0x58] sm:$0xff]
    %v762 = vld [vmem:[#allocation9 + $0x60] sm:$0xff]
    %v763 = vld [vmem:[#allocation9 + $0x68] sm:$0xff]
    %v764 = vld [vmem:[#allocation9 + $0x70] sm:$0xff]
    %v765 = vld [vmem:[#allocation9 + $0x78] sm:$0xff]
    %v766 = vld [vmem:[#allocation9 + $0x80] sm:$0xff]
    %v767 = vld [vmem:[#allocation9 + $0x88] sm:$0xff]
    %v768 = vld [vmem:[#allocation9 + $0x90] sm:$0xff]
    %v769 = vld [vmem:[#allocation9 + $0x98] sm:$0xff]
    %v770 = vld [vmem:[#allocation9 + $0xa0] sm:$0xff]
    %v771 = vld [vmem:[#allocation9 + $0xa8] sm:$0xff]
    %v772 = vld [vmem:[#allocation9 + $0xb0] sm:$0xff]
    %v773 = vld [vmem:[#allocation9 + $0xb8] sm:$0xff]
    %v774 = vld [vmem:[#allocation9 + $0xc0] sm:$0xff]
    %v775 = vld [vmem:[#allocation9 + $0xc8] sm:$0xff]
    %v776 = vld [vmem:[#allocation9 + $0xd0] sm:$0xff]
    %v777 = vld [vmem:[#allocation9 + $0xd8] sm:$0xff]
    %v778 = vld [vmem:[#allocation9 + $0xe0] sm:$0xff]
    %v779 = vld [vmem:[#allocation9 + $0xe8] sm:$0xff]
    %v780 = vld [vmem:[#allocation9 + $0xf0] sm:$0xff]
    %v781 = vld [vmem:[#allocation9 + $0xf8] sm:$0xff]
    %v782 = vld [vmem:[#allocation9 + $0x100] sm:$0xff]
    %v783 = vld [vmem:[#allocation9 + $0x108] sm:$0xff]
    %v784 = vld [vmem:[#allocation9 + $0x110] sm:$0xff]
    %v785 = vld [vmem:[#allocation9 + $0x118] sm:$0xff]
    %v786 = vld [vmem:[#allocation9 + $0x120] sm:$0xff]
    %v787 = vld [vmem:[#allocation9 + $0x128] sm:$0xff]
    %v788 = vld [vmem:[#allocation9 + $0x130] sm:$0xff]
    %v789 = vld [vmem:[#allocation9 + $0x138] sm:$0xff]
    %v790 = vld [vmem:[#allocation9 + $0x140] sm:$0xff]
    %v791 = vld [vmem:[#allocation9 + $0x148] sm:$0xff]
    %v792 = vld [vmem:[#allocation9 + $0x150] sm:$0xff]
    %v793 = vld [vmem:[#allocation9 + $0x158] sm:$0xff]
    %v794 = vld [vmem:[#allocation9 + $0x160] sm:$0xff]
    %v795 = vld [vmem:[#allocation9 + $0x168] sm:$0xff]
    %v796 = vld [vmem:[#allocation9 + $0x170] sm:$0xff]
    %v797 = vld [vmem:[#allocation9 + $0x178] sm:$0xff]
    %v798 = vld [vmem:[#allocation9 + $0x180] sm:$0xff]
    %v799 = vld [vmem:[#allocation9 + $0x188] sm:$0xff]
    %v800 = vld [vmem:[#allocation9 + $0x190] sm:$0xff]
    %v801 = vld [vmem:[#allocation9 + $0x198] sm:$0xff]
    %v802 = vld [vmem:[#allocation9 + $0x1a0] sm:$0xff]
    %v803 = vld [vmem:[#allocation9 + $0x1a8] sm:$0xff]
    %v804 = vld [vmem:[#allocation9 + $0x1b0] sm:$0xff]
    %v805 = vld [vmem:[#allocation9 + $0x1b8] sm:$0xff]
    %v806 = vld [vmem:[#allocation9 + $0x1c0] sm:$0xff]
    %v807 = vld [vmem:[#allocation9 + $0x1c8] sm:$0xff]
    %v808 = vld [vmem:[#allocation9 + $0x1d0] sm:$0xff]
    %v809 = vld [vmem:[#allocation9 + $0x1d8] sm:$0xff]
    %v810 = vld [vmem:[#allocation9 + $0x1e0] sm:$0xff]
    %v811 = vld [vmem:[#allocation9 + $0x1e8] sm:$0xff]
    %v812 = vld [vmem:[#allocation9 + $0x1f0] sm:$0xff]
    %v813 = vld [vmem:[#allocation9 + $0x1f8] sm:$0xff]
    %v814 = vld [vmem:[#allocation9 + $0x200] sm:$0xff]
    %v815 = vld [vmem:[#allocation9 + $0x208] sm:$0xff]
    %v816 = vld [vmem:[#allocation9 + $0x210] sm:$0xff]
    %v817 = vld [vmem:[#allocation9 + $0x218] sm:$0xff]
    %v818 = vld [vmem:[#allocation9 + $0x220] sm:$0xff]
    %v819 = vld [vmem:[#allocation9 + $0x228] sm:$0xff]
    %v820 = vld [vmem:[#allocation9 + $0x230] sm:$0xff]
    %v821 = vld [vmem:[#allocation9 + $0x238] sm:$0xff]
    %v822 = vld [vmem:[#allocation9 + $0x240] sm:$0xff]
    %v823 = vld [vmem:[#allocation9 + $0x248] sm:$0xff]
    %v824 = vld [vmem:[#allocation9 + $0x250] sm:$0xff]
    %v825 = vld [vmem:[#allocation9 + $0x258] sm:$0xff]
    %v826 = vld [vmem:[#allocation9 + $0x260] sm:$0xff]
    %v827 = vld [vmem:[#allocation9 + $0x268] sm:$0xff]
    %v828 = vld [vmem:[#allocation9 + $0x270] sm:$0xff]
    %v829 = vld [vmem:[#allocation9 + $0x278] sm:$0xff]
    %v830 = vld [vmem:[#allocation9 + $0x280] sm:$0xff]
    %v831 = vld [vmem:[#allocation9 + $0x288] sm:$0xff]
    %v832 = vld [vmem:[#allocation9 + $0x290] sm:$0xff]
    %v833 = vld [vmem:[#allocation9 + $0x298] sm:$0xff]
    %v834 = vld [vmem:[#allocation9 + $0x2a0] sm:$0xff]
    %v835 = vld [vmem:[#allocation9 + $0x2a8] sm:$0xff]
    %v836 = vld [vmem:[#allocation9 + $0x2b0] sm:$0xff]
    %v837 = vld [vmem:[#allocation9 + $0x2b8] sm:$0xff]
    %v838 = vld [vmem:[#allocation9 + $0x2c0] sm:$0xff]
    %v839 = vld [vmem:[#allocation9 + $0x2c8] sm:$0xff]
    %v840 = vld [vmem:[#allocation9 + $0x2d0] sm:$0xff]
    %v841 = vld [vmem:[#allocation9 + $0x2d8] sm:$0xff]
    %v842 = vld [vmem:[#allocation9 + $0x2e0] sm:$0xff]
    %v843 = vld [vmem:[#allocation9 + $0x2e8] sm:$0xff]
    %v844 = vld [vmem:[#allocation9 + $0x2f0] sm:$0xff]
    %v845 = vld [vmem:[#allocation9 + $0x2f8] sm:$0xff]
    %v846 = vld [vmem:[#allocation9 + $0x300] sm:$0xff]
    %v847 = vld [vmem:[#allocation9 + $0x308] sm:$0xff]
    %v848 = vld [vmem:[#allocation9 + $0x310] sm:$0xff]
    %v849 = vld [vmem:[#allocation9 + $0x318] sm:$0xff]
    %v850 = vld [vmem:[#allocation9 + $0x320] sm:$0xff]
    %v851 = vld [vmem:[#allocation9 + $0x328] sm:$0xff]
    %v852 = vld [vmem:[#allocation9 + $0x330] sm:$0xff]
    %v853 = vld [vmem:[#allocation9 + $0x338] sm:$0xff]
    %v854 = vld [vmem:[#allocation9 + $0x340] sm:$0xff]
    %v855 = vld [vmem:[#allocation9 + $0x348] sm:$0xff]
    %v856 = vld [vmem:[#allocation9 + $0x350] sm:$0xff]
    %v857 = vld [vmem:[#allocation9 + $0x358] sm:$0xff]
    %v858 = vld [vmem:[#allocation9 + $0x360] sm:$0xff]
    %v859 = vld [vmem:[#allocation9 + $0x368] sm:$0xff]
    %v860 = vld [vmem:[#allocation9 + $0x370] sm:$0xff]
    %v861 = vld [vmem:[#allocation9 + $0x378] sm:$0xff]
    %v862 = vld [vmem:[#allocation9 + $0x380] sm:$0xff]
    %v863 = vld [vmem:[#allocation9 + $0x388] sm:$0xff]
    %v864 = vld [vmem:[#allocation9 + $0x390] sm:$0xff]
    %v865 = vld [vmem:[#allocation9 + $0x398] sm:$0xff]
    %v866 = vld [vmem:[#allocation9 + $0x3a0] sm:$0xff]
    %v867 = vld [vmem:[#allocation9 + $0x3a8] sm:$0xff]
    %v868 = vld [vmem:[#allocation9 + $0x3b0] sm:$0xff]
    %v869 = vld [vmem:[#allocation9 + $0x3b8] sm:$0xff]
    %v870 = vld [vmem:[#allocation9 + $0x3c0] sm:$0xff]
    %v871 = vld [vmem:[#allocation9 + $0x3c8] sm:$0xff]
    %v872 = vld [vmem:[#allocation9 + $0x3d0] sm:$0xff]
    %v873 = vld [vmem:[#allocation9 + $0x3d8] sm:$0xff]
    %v874 = vld [vmem:[#allocation9 + $0x3e0] sm:$0xff]
    %v875 = vld [vmem:[#allocation9 + $0x3e8] sm:$0xff]
    %v876 = vld [vmem:[#allocation9 + $0x3f0] sm:$0xff]
    %v877 = vld [vmem:[#allocation9 + $0x3f8] sm:$0xff]
    %v878 = vld [vmem:[#allocation9 + $0x400] sm:$0xff]
    %v879 = vld [vmem:[#allocation9 + $0x408] sm:$0xff]
    %v880 = vld [vmem:[#allocation9 + $0x410] sm:$0xff]
    %v881 = vld [vmem:[#allocation9 + $0x418] sm:$0xff]
    %v882 = vld [vmem:[#allocation9 + $0x420] sm:$0xff]
    %v883 = vld [vmem:[#allocation9 + $0x428] sm:$0xff]
    %v884 = vld [vmem:[#allocation9 + $0x430] sm:$0xff]
    %v885 = vld [vmem:[#allocation9 + $0x438] sm:$0xff]
    %v886 = vld [vmem:[#allocation9 + $0x440] sm:$0xff]
    %v887 = vld [vmem:[#allocation9 + $0x448] sm:$0xff]
    %v888 = vld [vmem:[#allocation9 + $0x450] sm:$0xff]
    %v889 = vld [vmem:[#allocation9 + $0x458] sm:$0xff]
    %v890 = vld [vmem:[#allocation9 + $0x460] sm:$0xff]
    %v891 = vld [vmem:[#allocation9 + $0x468] sm:$0xff]
    %v892 = vld [vmem:[#allocation9 + $0x470] sm:$0xff]
    %v893 = vld [vmem:[#allocation9 + $0x478] sm:$0xff]
    %v894 = vld [vmem:[#allocation9 + $0x480] sm:$0xff]
    %v895 = vld [vmem:[#allocation9 + $0x488] sm:$0xff]
    %v896 = vld [vmem:[#allocation9 + $0x490] sm:$0xff]
    %v897 = vld [vmem:[#allocation9 + $0x498] sm:$0xff]
    %v898 = vld [vmem:[#allocation9 + $0x4a0] sm:$0xff]
    %v899 = vld [vmem:[#allocation9 + $0x4a8] sm:$0xff]
    %v900 = vld [vmem:[#allocation9 + $0x4b0] sm:$0xff]
    %v901 = vld [vmem:[#allocation9 + $0x4b8] sm:$0xff]
    %v902 = vld [vmem:[#allocation9 + $0x4c0] sm:$0xff]
    %v903 = vld [vmem:[#allocation9 + $0x4c8] sm:$0xff]
    %v904 = vld [vmem:[#allocation9 + $0x4d0] sm:$0xff]
    %v905 = vld [vmem:[#allocation9 + $0x4d8] sm:$0xff]
    %v906 = vld [vmem:[#allocation9 + $0x4e0] sm:$0xff]
    %v907 = vld [vmem:[#allocation9 + $0x4e8] sm:$0xff]
    %v908 = vld [vmem:[#allocation9 + $0x4f0] sm:$0xff]
    %v909 = vld [vmem:[#allocation9 + $0x4f8] sm:$0xff]
    %v910 = vld [vmem:[#allocation9 + $0x500] sm:$0xff]
    %v911 = vld [vmem:[#allocation9 + $0x508] sm:$0xff]
    %v912 = vld [vmem:[#allocation9 + $0x510] sm:$0xff]
    %v913 = vld [vmem:[#allocation9 + $0x518] sm:$0xff]
    %v914 = vld [vmem:[#allocation9 + $0x520] sm:$0xff]
    %v915 = vld [vmem:[#allocation9 + $0x528] sm:$0xff]
    %v916 = vld [vmem:[#allocation9 + $0x530] sm:$0xff]
    %v917 = vld [vmem:[#allocation9 + $0x538] sm:$0xff]
    %v918 = vld [vmem:[#allocation9 + $0x540] sm:$0xff]
    %v919 = vld [vmem:[#allocation9 + $0x548] sm:$0xff]
    %v920 = vld [vmem:[#allocation9 + $0x550] sm:$0xff]
    %v921 = vld [vmem:[#allocation9 + $0x558] sm:$0xff]
    %v922 = vld [vmem:[#allocation9 + $0x560] sm:$0xff]
    %v923 = vld [vmem:[#allocation9 + $0x568] sm:$0xff]
    %v924 = vld [vmem:[#allocation9 + $0x570] sm:$0xff]
    %v925 = vld [vmem:[#allocation9 + $0x578] sm:$0xff]
    %v926 = vld [vmem:[#allocation9 + $0x580] sm:$0xff]
    %v927 = vld [vmem:[#allocation9 + $0x588] sm:$0xff]
    %v928 = vld [vmem:[#allocation9 + $0x590] sm:$0xff]
    %v929 = vld [vmem:[#allocation9 + $0x598] sm:$0xff]
    %v930 = vld [vmem:[#allocation9 + $0x5a0] sm:$0xff]
    %v931 = vld [vmem:[#allocation9 + $0x5a8] sm:$0xff]
    %v932 = vld [vmem:[#allocation9 + $0x5b0] sm:$0xff]
    %v933 = vld [vmem:[#allocation9 + $0x5b8] sm:$0xff]
    %v934 = vld [vmem:[#allocation9 + $0x5c0] sm:$0xff]
    %v935 = vld [vmem:[#allocation9 + $0x5c8] sm:$0xff]
    %v936 = vld [vmem:[#allocation9 + $0x5d0] sm:$0xff]
    %v937 = vld [vmem:[#allocation9 + $0x5d8] sm:$0xff]
    %v938 = vld [vmem:[#allocation9 + $0x5e0] sm:$0xff]
    %v939 = vld [vmem:[#allocation9 + $0x5e8] sm:$0xff]
    %v940 = vld [vmem:[#allocation9 + $0x5f0] sm:$0xff]
    %v941 = vld [vmem:[#allocation9 + $0x5f8] sm:$0xff]
    %v942 = vld [vmem:[#allocation9 + $0x600] sm:$0xff]
    %v943 = vld [vmem:[#allocation9 + $0x608] sm:$0xff]
    %v944 = vld [vmem:[#allocation9 + $0x610] sm:$0xff]
    %v945 = vld [vmem:[#allocation9 + $0x618] sm:$0xff]
    %v946 = vld [vmem:[#allocation9 + $0x620] sm:$0xff]
    %v947 = vld [vmem:[#allocation9 + $0x628] sm:$0xff]
    %v948 = vld [vmem:[#allocation9 + $0x630] sm:$0xff]
    %v949 = vld [vmem:[#allocation9 + $0x638] sm:$0xff]
    %v950 = vld [vmem:[#allocation9 + $0x640] sm:$0xff]
    %v951 = vld [vmem:[#allocation9 + $0x648] sm:$0xff]
    %v952 = vld [vmem:[#allocation9 + $0x650] sm:$0xff]
    %v953 = vld [vmem:[#allocation9 + $0x658] sm:$0xff]
    %v954 = vld [vmem:[#allocation9 + $0x660] sm:$0xff]
    %v955 = vld [vmem:[#allocation9 + $0x668] sm:$0xff]
    %v956 = vld [vmem:[#allocation9 + $0x670] sm:$0xff]
    %v957 = vld [vmem:[#allocation9 + $0x678] sm:$0xff]
    %v958 = vld [vmem:[#allocation9 + $0x680] sm:$0xff]
    %v959 = vld [vmem:[#allocation9 + $0x688] sm:$0xff]
    %v960 = vld [vmem:[#allocation9 + $0x690] sm:$0xff]
    %v961 = vld [vmem:[#allocation9 + $0x698] sm:$0xff]
    %v962 = vld [vmem:[#allocation9 + $0x6a0] sm:$0xff]
    %v963 = vld [vmem:[#allocation9 + $0x6a8] sm:$0xff]
    %v964 = vld [vmem:[#allocation9 + $0x6b0] sm:$0xff]
    %v965 = vld [vmem:[#allocation9 + $0x6b8] sm:$0xff]
    %v966 = vld [vmem:[#allocation9 + $0x6c0] sm:$0xff]
    %v967 = vld [vmem:[#allocation9 + $0x6c8] sm:$0xff]
    %v968 = vld [vmem:[#allocation9 + $0x6d0] sm:$0xff]
    %v969 = vld [vmem:[#allocation9 + $0x6d8] sm:$0xff]
    %v970 = vld [vmem:[#allocation9 + $0x6e0] sm:$0xff]
    %v971 = vld [vmem:[#allocation9 + $0x6e8] sm:$0xff]
    %v972 = vld [vmem:[#allocation9 + $0x6f0] sm:$0xff]
    %v973 = vld [vmem:[#allocation9 + $0x6f8] sm:$0xff]
    %v974 = vld [vmem:[#allocation9 + $0x700] sm:$0xff]
    %v975 = vld [vmem:[#allocation9 + $0x708] sm:$0xff]
    %v976 = vld [vmem:[#allocation9 + $0x710] sm:$0xff]
    %v977 = vld [vmem:[#allocation9 + $0x718] sm:$0xff]
    %v978 = vld [vmem:[#allocation9 + $0x720] sm:$0xff]
    %v979 = vld [vmem:[#allocation9 + $0x728] sm:$0xff]
    %v980 = vld [vmem:[#allocation9 + $0x730] sm:$0xff]
    %v981 = vld [vmem:[#allocation9 + $0x738] sm:$0xff]
    %v982 = vld [vmem:[#allocation9 + $0x740] sm:$0xff]
    %v983 = vld [vmem:[#allocation9 + $0x748] sm:$0xff]
    %v984 = vld [vmem:[#allocation9 + $0x750] sm:$0xff]
    %v985 = vld [vmem:[#allocation9 + $0x758] sm:$0xff]
    %v986 = vld [vmem:[#allocation9 + $0x760] sm:$0xff]
    %v987 = vld [vmem:[#allocation9 + $0x768] sm:$0xff]
    %v988 = vld [vmem:[#allocation9 + $0x770] sm:$0xff]
    %v989 = vld [vmem:[#allocation9 + $0x778] sm:$0xff]
    %v990 = vld [vmem:[#allocation9 + $0x780] sm:$0xff]
    %v991 = vld [vmem:[#allocation9 + $0x788] sm:$0xff]
    %v992 = vld [vmem:[#allocation9 + $0x790] sm:$0xff]
    %v993 = vld [vmem:[#allocation9 + $0x798] sm:$0xff]
    %v994 = vld [vmem:[#allocation9 + $0x7a0] sm:$0xff]
    %v995 = vld [vmem:[#allocation9 + $0x7a8] sm:$0xff]
    %v996 = vld [vmem:[#allocation9 + $0x7b0] sm:$0xff]
    %v997 = vld [vmem:[#allocation9 + $0x7b8] sm:$0xff]
    %v998 = vld [vmem:[#allocation9 + $0x7c0] sm:$0xff]
    %v999 = vld [vmem:[#allocation9 + $0x7c8] sm:$0xff]
    %v1000 = vld [vmem:[#allocation9 + $0x7d0] sm:$0xff]
    %v1001 = vld [vmem:[#allocation9 + $0x7d8] sm:$0xff]
    %v1002 = vld [vmem:[#allocation9 + $0x7e0] sm:$0xff]
    %v1003 = vld [vmem:[#allocation9 + $0x7e8] sm:$0xff]
    %v1004 = vld [vmem:[#allocation9 + $0x7f0] sm:$0xff]
    %v1005 = vld [vmem:[#allocation9 + $0x7f8] sm:$0xff]
    %s1006 = smul.u32 0, 8
    %s1007 = smul.addr %s1006, 8
    %s1008 = scalar_lea.vmem [#allocation2], %s1007
    %v1009 = vld [vmem:[%s1008] sm:$0xff]
    %v1010 = vld [vmem:[%s1008 + $0x8] sm:$0xff]
    %v1011 = vld [vmem:[%s1008 + $0x10] sm:$0xff]
    %v1012 = vld [vmem:[%s1008 + $0x18] sm:$0xff]
    %v1013 = vld [vmem:[%s1008 + $0x20] sm:$0xff]
    %v1014 = vld [vmem:[%s1008 + $0x28] sm:$0xff]
    %v1015 = vld [vmem:[%s1008 + $0x30] sm:$0xff]
    %v1016 = vld [vmem:[%s1008 + $0x38] sm:$0xff]
    %1017 = vmatprep.subr.mxu0 %v751
    %1018 = vmatpush1.msra.mxu0 %v750
    %1019 = vmatprep.subr.mxu0 %v759
    %1020 = vmatpush1.msra.mxu0 %v758
    %1021 = vmatprep.subr.mxu0 %v767
    %1022 = vmatpush1.msra.mxu0 %v766
    %1023 = vmatprep.subr.mxu0 %v775
    %1024 = vmatpush1.msra.mxu0 %v774
    %1025 = vmatprep.subr.mxu0 %v783
    %1026 = vmatpush1.msra.mxu0 %v782
    %1027 = vmatprep.subr.mxu0 %v791
    %1028 = vmatpush1.msra.mxu0 %v790
    %1029 = vmatprep.subr.mxu0 %v799
    %1030 = vmatpush1.msra.mxu0 %v798
    %1031 = vmatprep.subr.mxu0 %v807
    %1032 = vmatpush1.msra.mxu0 %v806
    %1033 = vmatprep.subr.mxu0 %v815
    %1034 = vmatpush1.msra.mxu0 %v814
    %1035 = vmatprep.subr.mxu0 %v823
    %1036 = vmatpush1.msra.mxu0 %v822
    %1037 = vmatprep.subr.mxu0 %v831
    %1038 = vmatpush1.msra.mxu0 %v830
    %1039 = vmatprep.subr.mxu0 %v839
    %1040 = vmatpush1.msra.mxu0 %v838
    %1041 = vmatprep.subr.mxu0 %v847
    %1042 = vmatpush1.msra.mxu0 %v846
    %1043 = vmatprep.subr.mxu0 %v855
    %1044 = vmatpush1.msra.mxu0 %v854
    %1045 = vmatprep.subr.mxu0 %v863
    %1046 = vmatpush1.msra.mxu0 %v862
    %1047 = vmatprep.subr.mxu0 %v871
    %1048 = vmatpush1.msra.mxu0 %v870
    %1049 = vmatprep.subr.mxu0 %v879
    %1050 = vmatpush1.msra.mxu0 %v878
    %1051 = vmatprep.subr.mxu0 %v887
    %1052 = vmatpush1.msra.mxu0 %v886
    %1053 = vmatprep.subr.mxu0 %v895
    %1054 = vmatpush1.msra.mxu0 %v894
    %1055 = vmatprep.subr.mxu0 %v903
    %1056 = vmatpush1.msra.mxu0 %v902
    %1057 = vmatprep.subr.mxu0 %v911
    %1058 = vmatpush1.msra.mxu0 %v910
    %1059 = vmatprep.subr.mxu0 %v919
    %1060 = vmatpush1.msra.mxu0 %v918
    %1061 = vmatprep.subr.mxu0 %v927
    %1062 = vmatpush1.msra.mxu0 %v926
    %1063 = vmatprep.subr.mxu0 %v935
    %1064 = vmatpush1.msra.mxu0 %v934
    %1065 = vmatprep.subr.mxu0 %v943
    %1066 = vmatpush1.msra.mxu0 %v942
    %1067 = vmatprep.subr.mxu0 %v951
    %1068 = vmatpush1.msra.mxu0 %v950
    %1069 = vmatprep.subr.mxu0 %v959
    %1070 = vmatpush1.msra.mxu0 %v958
    %1071 = vmatprep.subr.mxu0 %v967
    %1072 = vmatpush1.msra.mxu0 %v966
    %1073 = vmatprep.subr.mxu0 %v975
    %1074 = vmatpush1.msra.mxu0 %v974
    %1075 = vmatprep.subr.mxu0 %v983
    %1076 = vmatpush1.msra.mxu0 %v982
    %1077 = vmatprep.subr.mxu0 %v991
    %1078 = vmatpush1.msra.mxu0 %v990
    %1079 = vmatprep.subr.mxu0 %v999
    %1080 = vmatpush1.msra.mxu0 %v998
    %1081 = vmatprep.mubr.f32.mxu0 0.0
    %1082 = vmatmul.mubr.f32.gmra.mrb[0].mxu0 0.0
    %v1083 = vpop.f32.mrb[0].mxu0
    %v1084 = vadd.f32 0.0, %v1083
    %v1085 = vpop.f32.mrb[0].mxu0
    %v1086 = vadd.f32 0.0, %v1085
    %1087 = vdwg.mxu0
    %1088 = vmatprep.subr.mxu0 %v753
    %1089 = vmatpush1.msra.mxu0 %v752
    %1090 = vmatprep.subr.mxu0 %v761
    %1091 = vmatpush1.msra.mxu0 %v760
    %1092 = vmatprep.subr.mxu0 %v769
    %1093 = vmatpush1.msra.mxu0 %v768
    %1094 = vmatprep.subr.mxu0 %v777
    %1095 = vmatpush1.msra.mxu0 %v776
    %1096 = vmatprep.subr.mxu0 %v785
    %1097 = vmatpush1.msra.mxu0 %v784
    %1098 = vmatprep.subr.mxu0 %v793
    %1099 = vmatpush1.msra.mxu0 %v792
    %1100 = vmatprep.subr.mxu0 %v801
    %1101 = vmatpush1.msra.mxu0 %v800
    %1102 = vmatprep.subr.mxu0 %v809
    %1103 = vmatpush1.msra.mxu0 %v808
    %1104 = vmatprep.subr.mxu0 %v817
    %1105 = vmatpush1.msra.mxu0 %v816
    %1106 = vmatprep.subr.mxu0 %v825
    %1107 = vmatpush1.msra.mxu0 %v824
    %1108 = vmatprep.subr.mxu0 %v833
    %1109 = vmatpush1.msra.mxu0 %v832
    %1110 = vmatprep.subr.mxu0 %v841
    %1111 = vmatpush1.msra.mxu0 %v840
    %1112 = vmatprep.subr.mxu0 %v849
    %1113 = vmatpush1.msra.mxu0 %v848
    %1114 = vmatprep.subr.mxu0 %v857
    %1115 = vmatpush1.msra.mxu0 %v856
    %1116 = vmatprep.subr.mxu0 %v865
    %1117 = vmatpush1.msra.mxu0 %v864
    %1118 = vmatprep.subr.mxu0 %v873
    %1119 = vmatpush1.msra.mxu0 %v872
    %1120 = vmatprep.subr.mxu0 %v881
    %1121 = vmatpush1.msra.mxu0 %v880
    %1122 = vmatprep.subr.mxu0 %v889
    %1123 = vmatpush1.msra.mxu0 %v888
    %1124 = vmatprep.subr.mxu0 %v897
    %1125 = vmatpush1.msra.mxu0 %v896
    %1126 = vmatprep.subr.mxu0 %v905
    %1127 = vmatpush1.msra.mxu0 %v904
    %1128 = vmatprep.subr.mxu0 %v913
    %1129 = vmatpush1.msra.mxu0 %v912
    %1130 = vmatprep.subr.mxu0 %v921
    %1131 = vmatpush1.msra.mxu0 %v920
    %1132 = vmatprep.subr.mxu0 %v929
    %1133 = vmatpush1.msra.mxu0 %v928
    %1134 = vmatprep.subr.mxu0 %v937
    %1135 = vmatpush1.msra.mxu0 %v936
    %1136 = vmatprep.subr.mxu0 %v945
    %1137 = vmatpush1.msra.mxu0 %v944
    %1138 = vmatprep.subr.mxu0 %v953
    %1139 = vmatpush1.msra.mxu0 %v952
    %1140 = vmatprep.subr.mxu0 %v961
    %1141 = vmatpush1.msra.mxu0 %v960
    %1142 = vmatprep.subr.mxu0 %v969
    %1143 = vmatpush1.msra.mxu0 %v968
    %1144 = vmatprep.subr.mxu0 %v977
    %1145 = vmatpush1.msra.mxu0 %v976
    %1146 = vmatprep.subr.mxu0 %v985
    %1147 = vmatpush1.msra.mxu0 %v984
    %1148 = vmatprep.subr.mxu0 %v993
    %1149 = vmatpush1.msra.mxu0 %v992
    %1150 = vmatprep.subr.mxu0 %v1001
    %1151 = vmatpush1.msra.mxu0 %v1000
    %1152 = vmatprep.mubr.f32.mxu0 0.0
    %1153 = vmatmul.mubr.f32.gmra.mrb[0].mxu0 0.0
    %v1154 = vpop.f32.mrb[0].mxu0
    %v1155 = vadd.f32 0.0, %v1154
    %v1156 = vpop.f32.mrb[0].mxu0
    %v1157 = vadd.f32 0.0, %v1156
    %1158 = vdwg.mxu0
    %1159 = vmatprep.subr.mxu0 %v755
    %1160 = vmatpush1.msra.mxu0 %v754
    %1161 = vmatprep.subr.mxu0 %v763
    %1162 = vmatpush1.msra.mxu0 %v762
    %1163 = vmatprep.subr.mxu0 %v771
    %1164 = vmatpush1.msra.mxu0 %v770
    %1165 = vmatprep.subr.mxu0 %v779
    %1166 = vmatpush1.msra.mxu0 %v778
    %1167 = vmatprep.subr.mxu0 %v787
    %1168 = vmatpush1.msra.mxu0 %v786
    %1169 = vmatprep.subr.mxu0 %v795
    %1170 = vmatpush1.msra.mxu0 %v794
    %1171 = vmatprep.subr.mxu0 %v803
    %1172 = vmatpush1.msra.mxu0 %v802
    %1173 = vmatprep.subr.mxu0 %v811
    %1174 = vmatpush1.msra.mxu0 %v810
    %1175 = vmatprep.subr.mxu0 %v819
    %1176 = vmatpush1.msra.mxu0 %v818
    %1177 = vmatprep.subr.mxu0 %v827
    %1178 = vmatpush1.msra.mxu0 %v826
    %1179 = vmatprep.subr.mxu0 %v835
    %1180 = vmatpush1.msra.mxu0 %v834
    %1181 = vmatprep.subr.mxu0 %v843
    %1182 = vmatpush1.msra.mxu0 %v842
    %1183 = vmatprep.subr.mxu0 %v851
    %1184 = vmatpush1.msra.mxu0 %v850
    %1185 = vmatprep.subr.mxu0 %v859
    %1186 = vmatpush1.msra.mxu0 %v858
    %1187 = vmatprep.subr.mxu0 %v867
    %1188 = vmatpush1.msra.mxu0 %v866
    %1189 = vmatprep.subr.mxu0 %v875
    %1190 = vmatpush1.msra.mxu0 %v874
    %1191 = vmatprep.subr.mxu0 %v883
    %1192 = vmatpush1.msra.mxu0 %v882
    %1193 = vmatprep.subr.mxu0 %v891
    %1194 = vmatpush1.msra.mxu0 %v890
    %1195 = vmatprep.subr.mxu0 %v899
    %1196 = vmatpush1.msra.mxu0 %v898
    %1197 = vmatprep.subr.mxu0 %v907
    %1198 = vmatpush1.msra.mxu0 %v906
    %1199 = vmatprep.subr.mxu0 %v915
    %1200 = vmatpush1.msra.mxu0 %v914
    %1201 = vmatprep.subr.mxu0 %v923
    %1202 = vmatpush1.msra.mxu0 %v922
    %1203 = vmatprep.subr.mxu0 %v931
    %1204 = vmatpush1.msra.mxu0 %v930
    %1205 = vmatprep.subr.mxu0 %v939
    %1206 = vmatpush1.msra.mxu0 %v938
    %1207 = vmatprep.subr.mxu0 %v947
    %1208 = vmatpush1.msra.mxu0 %v946
    %1209 = vmatprep.subr.mxu0 %v955
    %1210 = vmatpush1.msra.mxu0 %v954
    %1211 = vmatprep.subr.mxu0 %v963
    %1212 = vmatpush1.msra.mxu0 %v962
    %1213 = vmatprep.subr.mxu0 %v971
    %1214 = vmatpush1.msra.mxu0 %v970
    %1215 = vmatprep.subr.mxu0 %v979
    %1216 = vmatpush1.msra.mxu0 %v978
    %1217 = vmatprep.subr.mxu0 %v987
    %1218 = vmatpush1.msra.mxu0 %v986
    %1219 = vmatprep.subr.mxu0 %v995
    %1220 = vmatpush1.msra.mxu0 %v994
    %1221 = vmatprep.subr.mxu0 %v1003
    %1222 = vmatpush1.msra.mxu0 %v1002
    %1223 = vmatprep.mubr.f32.mxu0 0.0
    %1224 = vmatmul.mubr.f32.gmra.mrb[0].mxu0 0.0
    %v1225 = vpop.f32.mrb[0].mxu0
    %v1226 = vadd.f32 0.0, %v1225
    %v1227 = vpop.f32.mrb[0].mxu0
    %v1228 = vadd.f32 0.0, %v1227
    %1229 = vdwg.mxu0
    %1230 = vmatprep.subr.mxu0 %v757
    %1231 = vmatpush1.msra.mxu0 %v756
    %1232 = vmatprep.subr.mxu0 %v765
    %1233 = vmatpush1.msra.mxu0 %v764
    %1234 = vmatprep.subr.mxu0 %v773
    %1235 = vmatpush1.msra.mxu0 %v772
    %1236 = vmatprep.subr.mxu0 %v781
    %1237 = vmatpush1.msra.mxu0 %v780
    %1238 = vmatprep.subr.mxu0 %v789
    %1239 = vmatpush1.msra.mxu0 %v788
    %1240 = vmatprep.subr.mxu0 %v797
    %1241 = vmatpush1.msra.mxu0 %v796
    %1242 = vmatprep.subr.mxu0 %v805
    %1243 = vmatpush1.msra.mxu0 %v804
    %1244 = vmatprep.subr.mxu0 %v813
    %1245 = vmatpush1.msra.mxu0 %v812
    %1246 = vmatprep.subr.mxu0 %v821
    %1247 = vmatpush1.msra.mxu0 %v820
    %1248 = vmatprep.subr.mxu0 %v829
    %1249 = vmatpush1.msra.mxu0 %v828
    %1250 = vmatprep.subr.mxu0 %v837
    %1251 = vmatpush1.msra.mxu0 %v836
    %1252 = vmatprep.subr.mxu0 %v845
    %1253 = vmatpush1.msra.mxu0 %v844
    %1254 = vmatprep.subr.mxu0 %v853
    %1255 = vmatpush1.msra.mxu0 %v852
    %1256 = vmatprep.subr.mxu0 %v861
    %1257 = vmatpush1.msra.mxu0 %v860
    %1258 = vmatprep.subr.mxu0 %v869
    %1259 = vmatpush1.msra.mxu0 %v868
    %1260 = vmatprep.subr.mxu0 %v877
    %1261 = vmatpush1.msra.mxu0 %v876
    %1262 = vmatprep.subr.mxu0 %v885
    %1263 = vmatpush1.msra.mxu0 %v884
    %1264 = vmatprep.subr.mxu0 %v893
    %1265 = vmatpush1.msra.mxu0 %v892
    %1266 = vmatprep.subr.mxu0 %v901
    %1267 = vmatpush1.msra.mxu0 %v900
    %1268 = vmatprep.subr.mxu0 %v909
    %1269 = vmatpush1.msra.mxu0 %v908
    %1270 = vmatprep.subr.mxu0 %v917
    %1271 = vmatpush1.msra.mxu0 %v916
    %1272 = vmatprep.subr.mxu0 %v925
    %1273 = vmatpush1.msra.mxu0 %v924
    %1274 = vmatprep.subr.mxu0 %v933
    %1275 = vmatpush1.msra.mxu0 %v932
    %1276 = vmatprep.subr.mxu0 %v941
    %1277 = vmatpush1.msra.mxu0 %v940
    %1278 = vmatprep.subr.mxu0 %v949
    %1279 = vmatpush1.msra.mxu0 %v948
    %1280 = vmatprep.subr.mxu0 %v957
    %1281 = vmatpush1.msra.mxu0 %v956
    %1282 = vmatprep.subr.mxu0 %v965
    %1283 = vmatpush1.msra.mxu0 %v964
    %1284 = vmatprep.subr.mxu0 %v973
    %1285 = vmatpush1.msra.mxu0 %v972
    %1286 = vmatprep.subr.mxu0 %v981
    %1287 = vmatpush1.msra.mxu0 %v980
    %1288 = vmatprep.subr.mxu0 %v989
    %1289 = vmatpush1.msra.mxu0 %v988
    %1290 = vmatprep.subr.mxu0 %v997
    %1291 = vmatpush1.msra.mxu0 %v996
    %1292 = vmatprep.subr.mxu0 %v1005
    %1293 = vmatpush1.msra.mxu0 %v1004
    %1294 = vmatprep.mubr.f32.mxu0 0.0
    %1295 = vmatmul.mubr.f32.gmra.mrb[0].mxu0 0.0
    %v1296 = vpop.f32.mrb[0].mxu0
    %v1297 = vadd.f32 0.0, %v1296
    %v1298 = vpop.f32.mrb[0].mxu0
    %v1299 = vadd.f32 0.0, %v1298
    %1300 = vdwg.mxu0
    %v1301 = vadd.f32 %v1009, %v1084
    %v1302 = vadd.f32 %v1010, %v1086
    %v1303 = vadd.f32 %v1011, %v1155
    %v1304 = vadd.f32 %v1012, %v1157
    %v1305 = vadd.f32 %v1013, %v1226
    %v1306 = vadd.f32 %v1014, %v1228
    %v1307 = vadd.f32 %v1015, %v1297
    %v1308 = vadd.f32 %v1016, %v1299
    %v1309 = vxor.u32 %v1301, 2147483648
    %v1310 = vxor.u32 %v1302, 2147483648
    %v1311 = vxor.u32 %v1303, 2147483648
    %v1312 = vxor.u32 %v1304, 2147483648
    %v1313 = vxor.u32 %v1305, 2147483648
    %v1314 = vxor.u32 %v1306, 2147483648
    %v1315 = vmul.f32 %v1309, 1.442695
    %v1316 = vpow.pop %v1315
    %v1317 = vmul.f32 %v1310, 1.442695
    %v1318 = vpow.pop %v1317
    %v1319 = vmul.f32 %v1311, 1.442695
    %v1320 = vpow.pop %v1319
    %v1321 = vmul.f32 %v1312, 1.442695
    %v1322 = vpow.pop %v1321
    %v1323 = vmul.f32 %v1313, 1.442695
    %v1324 = vpow.pop %v1323
    %v1325 = vmul.f32 %v1314, 1.442695
    %v1326 = vpow.pop %v1325
    %v1327 = vadd.f32 %v1316, 1.0
    %v1328 = vadd.f32 %v1318, 1.0
    %v1329 = vadd.f32 %v1320, 1.0
    %v1330 = vadd.f32 %v1322, 1.0
    %v1331 = vadd.f32 %v1324, 1.0
    %v1332 = vadd.f32 %v1326, 1.0
    %v1333 = vrcp.pop %v1327
    %v1334 = vmul.f32 1.0, %v1333
    %v1335 = vrcp.pop %v1328
    %v1336 = vmul.f32 1.0, %v1335
    %v1337 = vrcp.pop %v1329
    %v1338 = vmul.f32 1.0, %v1337
    %v1339 = vrcp.pop %v1330
    %v1340 = vmul.f32 1.0, %v1339
    %v1341 = vrcp.pop %v1331
    %v1342 = vmul.f32 1.0, %v1341
    %v1343 = vrcp.pop %v1332
    %v1344 = vmul.f32 1.0, %v1343
    %v1345 = vtanh.pop %v1307
    %v1346 = vtanh.pop %v1308
    %v1347 = vmul.f32 %v1338, 0.0
    %v1348 = vmul.f32 %v1340, 0.0
    %v1349 = vmul.f32 %v1334, %v1345
    %v1350 = vmul.f32 %v1336, %v1346
    %v1351 = vadd.f32 %v1347, %v1349
    %v1352 = vadd.f32 %v1348, %v1350
    %v1353 = vtanh.pop %v1351
    %v1354 = vtanh.pop %v1352
    %v1355 = vmul.f32 %v1342, %v1353
    %v1356 = vmul.f32 %v1344, %v1354
    %s1357 = smul.u32 0, 2
    %s1358 = smul.addr %s1357, 8
    %s1359 = scalar_lea.vmem [#allocation6], %s1358
    %v1360 = vld [vmem:[%s1359] sm:$0xff]
    %v1361 = vld [vmem:[%s1359 + $0x8] sm:$0xff]
    %vm1362 = vcmp.gt.f32.partialorder %v1360, 0.0
    %vm1363 = vcmp.gt.f32.partialorder %v1361, 0.0
    %v1364 = vsel %vm1362, %v1355, 0.0
    %v1365 = vsel %vm1363, %v1356, 0.0
    %v1366 = vsel %vm1362, %v1351, 0.0
    %v1367 = vsel %vm1363, %v1352, 0.0
    %s1368 = smul.u32 1, 8
    %s1369 = smul.addr %s1368, 8
    %s1370 = scalar_lea.vmem [#allocation2], %s1369
    %v1371 = vld [vmem:[%s1370] sm:$0xff]
    %v1372 = vld [vmem:[%s1370 + $0x8] sm:$0xff]
    %v1373 = vld [vmem:[%s1370 + $0x10] sm:$0xff]
    %v1374 = vld [vmem:[%s1370 + $0x18] sm:$0xff]
    %v1375 = vld [vmem:[%s1370 + $0x20] sm:$0xff]
    %v1376 = vld [vmem:[%s1370 + $0x28] sm:$0xff]
    %v1377 = vld [vmem:[%s1370 + $0x30] sm:$0xff]
    %v1378 = vld [vmem:[%s1370 + $0x38] sm:$0xff]
    %1379 = vmatprep.subr.mxu0 %v751
    %1380 = vmatpush1.msra.mxu0 %v750
    %1381 = vmatprep.subr.mxu0 %v759
    %1382 = vmatpush1.msra.mxu0 %v758
    %1383 = vmatprep.subr.mxu0 %v767
    %1384 = vmatpush1.msra.mxu0 %v766
    %1385 = vmatprep.subr.mxu0 %v775
    %1386 = vmatpush1.msra.mxu0 %v774
    %1387 = vmatprep.subr.mxu0 %v783
    %1388 = vmatpush1.msra.mxu0 %v782
    %1389 = vmatprep.subr.mxu0 %v791
    %1390 = vmatpush1.msra.mxu0 %v790
    %1391 = vmatprep.subr.mxu0 %v799
    %1392 = vmatpush1.msra.mxu0 %v798
    %1393 = vmatprep.subr.mxu0 %v807
    %1394 = vmatpush1.msra.mxu0 %v806
    %1395 = vmatprep.subr.mxu0 %v815
    %1396 = vmatpush1.msra.mxu0 %v814
    %1397 = vmatprep.subr.mxu0 %v823
    %1398 = vmatpush1.msra.mxu0 %v822
    %1399 = vmatprep.subr.mxu0 %v831
    %1400 = vmatpush1.msra.mxu0 %v830
    %1401 = vmatprep.subr.mxu0 %v839
    %1402 = vmatpush1.msra.mxu0 %v838
    %1403 = vmatprep.subr.mxu0 %v847
    %1404 = vmatpush1.msra.mxu0 %v846
    %1405 = vmatprep.subr.mxu0 %v855
    %1406 = vmatpush1.msra.mxu0 %v854
    %1407 = vmatprep.subr.mxu0 %v863
    %1408 = vmatpush1.msra.mxu0 %v862
    %1409 = vmatprep.subr.mxu0 %v871
    %1410 = vmatpush1.msra.mxu0 %v870
    %1411 = vmatprep.subr.mxu0 %v879
    %1412 = vmatpush1.msra.mxu0 %v878
    %1413 = vmatprep.subr.mxu0 %v887
    %1414 = vmatpush1.msra.mxu0 %v886
    %1415 = vmatprep.subr.mxu0 %v895
    %1416 = vmatpush1.msra.mxu0 %v894
    %1417 = vmatprep.subr.mxu0 %v903
    %1418 = vmatpush1.msra.mxu0 %v902
    %1419 = vmatprep.subr.mxu0 %v911
    %1420 = vmatpush1.msra.mxu0 %v910
    %1421 = vmatprep.subr.mxu0 %v919
    %1422 = vmatpush1.msra.mxu0 %v918
    %1423 = vmatprep.subr.mxu0 %v927
    %1424 = vmatpush1.msra.mxu0 %v926
    %1425 = vmatprep.subr.mxu0 %v935
    %1426 = vmatpush1.msra.mxu0 %v934
    %1427 = vmatprep.subr.mxu0 %v943
    %1428 = vmatpush1.msra.mxu0 %v942
    %1429 = vmatprep.subr.mxu0 %v951
    %1430 = vmatpush1.msra.mxu0 %v950
    %1431 = vmatprep.subr.mxu0 %v959
    %1432 = vmatpush1.msra.mxu0 %v958
    %1433 = vmatprep.subr.mxu0 %v967
    %1434 = vmatpush1.msra.mxu0 %v966
    %1435 = vmatprep.subr.mxu0 %v975
    %1436 = vmatpush1.msra.mxu0 %v974
    %1437 = vmatprep.subr.mxu0 %v983
    %1438 = vmatpush1.msra.mxu0 %v982
    %1439 = vmatprep.subr.mxu0 %v991
    %1440 = vmatpush1.msra.mxu0 %v990
    %1441 = vmatprep.subr.mxu0 %v999
    %1442 = vmatpush1.msra.mxu0 %v998
    %1443 = vmatprep.mubr.f32.mxu0 %v1365
    %1444 = vmatmul.mubr.f32.gmra.mrb[0].mxu0 %v1364
    %v1445 = vpop.f32.mrb[0].mxu0
    %v1446 = vadd.f32 0.0, %v1445
    %v1447 = vpop.f32.mrb[0].mxu0
    %v1448 = vadd.f32 0.0, %v1447
    %1449 = vdwg.mxu0
    %1450 = vmatprep.subr.mxu0 %v753
    %1451 = vmatpush1.msra.mxu0 %v752
    %1452 = vmatprep.subr.mxu0 %v761
    %1453 = vmatpush1.msra.mxu0 %v760
    %1454 = vmatprep.subr.mxu0 %v769
    %1455 = vmatpush1.msra.mxu0 %v768
    %1456 = vmatprep.subr.mxu0 %v777
    %1457 = vmatpush1.msra.mxu0 %v776
    %1458 = vmatprep.subr.mxu0 %v785
    %1459 = vmatpush1.msra.mxu0 %v784
    %1460 = vmatprep.subr.mxu0 %v793
    %1461 = vmatpush1.msra.mxu0 %v792
    %1462 = vmatprep.subr.mxu0 %v801
    %1463 = vmatpush1.msra.mxu0 %v800
    %1464 = vmatprep.subr.mxu0 %v809
    %1465 = vmatpush1.msra.mxu0 %v808
    %1466 = vmatprep.subr.mxu0 %v817
    %1467 = vmatpush1.msra.mxu0 %v816
    %1468 = vmatprep.subr.mxu0 %v825
    %1469 = vmatpush1.msra.mxu0 %v824
    %1470 = vmatprep.subr.mxu0 %v833
    %1471 = vmatpush1.msra.mxu0 %v832
    %1472 = vmatprep.subr.mxu0 %v841
    %1473 = vmatpush1.msra.mxu0 %v840
    %1474 = vmatprep.subr.mxu0 %v849
    %1475 = vmatpush1.msra.mxu0 %v848
    %1476 = vmatprep.subr.mxu0 %v857
    %1477 = vmatpush1.msra.mxu0 %v856
    %1478 = vmatprep.subr.mxu0 %v865
    %1479 = vmatpush1.msra.mxu0 %v864
    %1480 = vmatprep.subr.mxu0 %v873
    %1481 = vmatpush1.msra.mxu0 %v872
    %1482 = vmatprep.subr.mxu0 %v881
    %1483 = vmatpush1.msra.mxu0 %v880
    %1484 = vmatprep.subr.mxu0 %v889
    %1485 = vmatpush1.msra.mxu0 %v888
    %1486 = vmatprep.subr.mxu0 %v897
    %1487 = vmatpush1.msra.mxu0 %v896
    %1488 = vmatprep.subr.mxu0 %v905
    %1489 = vmatpush1.msra.mxu0 %v904
    %1490 = vmatprep.subr.mxu0 %v913
    %1491 = vmatpush1.msra.mxu0 %v912
    %1492 = vmatprep.subr.mxu0 %v921
    %1493 = vmatpush1.msra.mxu0 %v920
    %1494 = vmatprep.subr.mxu0 %v929
    %1495 = vmatpush1.msra.mxu0 %v928
    %1496 = vmatprep.subr.mxu0 %v937
    %1497 = vmatpush1.msra.mxu0 %v936
    %1498 = vmatprep.subr.mxu0 %v945
    %1499 = vmatpush1.msra.mxu0 %v944
    %1500 = vmatprep.subr.mxu0 %v953
    %1501 = vmatpush1.msra.mxu0 %v952
    %1502 = vmatprep.subr.mxu0 %v961
    %1503 = vmatpush1.msra.mxu0 %v960
    %1504 = vmatprep.subr.mxu0 %v969
    %1505 = vmatpush1.msra.mxu0 %v968
    %1506 = vmatprep.subr.mxu0 %v977
    %1507 = vmatpush1.msra.mxu0 %v976
    %1508 = vmatprep.subr.mxu0 %v985
    %1509 = vmatpush1.msra.mxu0 %v984
    %1510 = vmatprep.subr.mxu0 %v993
    %1511 = vmatpush1.msra.mxu0 %v992
    %1512 = vmatprep.subr.mxu0 %v1001
    %1513 = vmatpush1.msra.mxu0 %v1000
    %1514 = vmatprep.mubr.f32.mxu0 %v1365
    %1515 = vmatmul.mubr.f32.gmra.mrb[0].mxu0 %v1364
    %v1516 = vpop.f32.mrb[0].mxu0
    %v1517 = vadd.f32 0.0, %v1516
    %v1518 = vpop.f32.mrb[0].mxu0
    %v1519 = vadd.f32 0.0, %v1518
    %1520 = vdwg.mxu0
    %1521 = vmatprep.subr.mxu0 %v755
    %1522 = vmatpush1.msra.mxu0 %v754
    %1523 = vmatprep.subr.mxu0 %v763
    %1524 = vmatpush1.msra.mxu0 %v762
    %1525 = vmatprep.subr.mxu0 %v771
    %1526 = vmatpush1.msra.mxu0 %v770
    %1527 = vmatprep.subr.mxu0 %v779
    %1528 = vmatpush1.msra.mxu0 %v778
    %1529 = vmatprep.subr.mxu0 %v787
    %1530 = vmatpush1.msra.mxu0 %v786
    %1531 = vmatprep.subr.mxu0 %v795
    %1532 = vmatpush1.msra.mxu0 %v794
    %1533 = vmatprep.subr.mxu0 %v803
    %1534 = vmatpush1.msra.mxu0 %v802
    %1535 = vmatprep.subr.mxu0 %v811
    %1536 = vmatpush1.msra.mxu0 %v810
    %1537 = vmatprep.subr.mxu0 %v819
    %1538 = vmatpush1.msra.mxu0 %v818
    %1539 = vmatprep.subr.mxu0 %v827
    %1540 = vmatpush1.msra.mxu0 %v826
    %1541 = vmatprep.subr.mxu0 %v835
    %1542 = vmatpush1.msra.mxu0 %v834
    %1543 = vmatprep.subr.mxu0 %v843
    %1544 = vmatpush1.msra.mxu0 %v842
    %1545 = vmatprep.subr.mxu0 %v851
    %1546 = vmatpush1.msra.mxu0 %v850
    %1547 = vmatprep.subr.mxu0 %v859
    %1548 = vmatpush1.msra.mxu0 %v858
    %1549 = vmatprep.subr.mxu0 %v867
    %1550 = vmatpush1.msra.mxu0 %v866
    %1551 = vmatprep.subr.mxu0 %v875
    %1552 = vmatpush1.msra.mxu0 %v874
    %1553 = vmatprep.subr.mxu0 %v883
    %1554 = vmatpush1.msra.mxu0 %v882
    %1555 = vmatprep.subr.mxu0 %v891
    %1556 = vmatpush1.msra.mxu0 %v890
    %1557 = vmatprep.subr.mxu0 %v899
    %1558 = vmatpush1.msra.mxu0 %v898
    %1559 = vmatprep.subr.mxu0 %v907
    %1560 = vmatpush1.msra.mxu0 %v906
    %1561 = vmatprep.subr.mxu0 %v915
    %1562 = vmatpush1.msra.mxu0 %v914
    %1563 = vmatprep.subr.mxu0 %v923
    %1564 = vmatpush1.msra.mxu0 %v922
    %1565 = vmatprep.subr.mxu0 %v931
    %1566 = vmatpush1.msra.mxu0 %v930
    %1567 = vmatprep.subr.mxu0 %v939
    %1568 = vmatpush1.msra.mxu0 %v938
    %1569 = vmatprep.subr.mxu0 %v947
    %1570 = vmatpush1.msra.mxu0 %v946
    %1571 = vmatprep.subr.mxu0 %v955
    %1572 = vmatpush1.msra.mxu0 %v954
    %1573 = vmatprep.subr.mxu0 %v963
    %1574 = vmatpush1.msra.mxu0 %v962
    %1575 = vmatprep.subr.mxu0 %v971
    %1576 = vmatpush1.msra.mxu0 %v970
    %1577 = vmatprep.subr.mxu0 %v979
    %1578 = vmatpush1.msra.mxu0 %v978
    %1579 = vmatprep.subr.mxu0 %v987
    %1580 = vmatpush1.msra.mxu0 %v986
    %1581 = vmatprep.subr.mxu0 %v995
    %1582 = vmatpush1.msra.mxu0 %v994
    %1583 = vmatprep.subr.mxu0 %v1003
    %1584 = vmatpush1.msra.mxu0 %v1002
    %1585 = vmatprep.mubr.f32.mxu0 %v1365
    %1586 = vmatmul.mubr.f32.gmra.mrb[0].mxu0 %v1364
    %v1587 = vpop.f32.mrb[0].mxu0
    %v1588 = vadd.f32 0.0, %v1587
    %v1589 = vpop.f32.mrb[0].mxu0
    %v1590 = vadd.f32 0.0, %v1589
    %1591 = vdwg.mxu0
    %1592 = vmatprep.subr.mxu0 %v757
    %1593 = vmatpush1.msra.mxu0 %v756
    %1594 = vmatprep.subr.mxu0 %v765
    %1595 = vmatpush1.msra.mxu0 %v764
    %1596 = vmatprep.subr.mxu0 %v773
    %1597 = vmatpush1.msra.mxu0 %v772
    %1598 = vmatprep.subr.mxu0 %v781
    %1599 = vmatpush1.msra.mxu0 %v780
    %1600 = vmatprep.subr.mxu0 %v789
    %1601 = vmatpush1.msra.mxu0 %v788
    %1602 = vmatprep.subr.mxu0 %v797
    %1603 = vmatpush1.msra.mxu0 %v796
    %1604 = vmatprep.subr.mxu0 %v805
    %1605 = vmatpush1.msra.mxu0 %v804
    %1606 = vmatprep.subr.mxu0 %v813
    %1607 = vmatpush1.msra.mxu0 %v812
    %1608 = vmatprep.subr.mxu0 %v821
    %1609 = vmatpush1.msra.mxu0 %v820
    %1610 = vmatprep.subr.mxu0 %v829
    %1611 = vmatpush1.msra.mxu0 %v828
    %1612 = vmatprep.subr.mxu0 %v837
    %1613 = vmatpush1.msra.mxu0 %v836
    %1614 = vmatprep.subr.mxu0 %v845
    %1615 = vmatpush1.msra.mxu0 %v844
    %1616 = vmatprep.subr.mxu0 %v853
    %1617 = vmatpush1.msra.mxu0 %v852
    %1618 = vmatprep.subr.mxu0 %v861
    %1619 = vmatpush1.msra.mxu0 %v860
    %1620 = vmatprep.subr.mxu0 %v869
    %1621 = vmatpush1.msra.mxu0 %v868
    %1622 = vmatprep.subr.mxu0 %v877
    %1623 = vmatpush1.msra.mxu0 %v876
    %1624 = vmatprep.subr.mxu0 %v885
    %1625 = vmatpush1.msra.mxu0 %v884
    %1626 = vmatprep.subr.mxu0 %v893
    %1627 = vmatpush1.msra.mxu0 %v892
    %1628 = vmatprep.subr.mxu0 %v901
    %1629 = vmatpush1.msra.mxu0 %v900
    %1630 = vmatprep.subr.mxu0 %v909
    %1631 = vmatpush1.msra.mxu0 %v908
    %1632 = vmatprep.subr.mxu0 %v917
    %1633 = vmatpush1.msra.mxu0 %v916
    %1634 = vmatprep.subr.mxu0 %v925
    %1635 = vmatpush1.msra.mxu0 %v924
    %1636 = vmatprep.subr.mxu0 %v933
    %1637 = vmatpush1.msra.mxu0 %v932
    %1638 = vmatprep.subr.mxu0 %v941
    %1639 = vmatpush1.msra.mxu0 %v940
    %1640 = vmatprep.subr.mxu0 %v949
    %1641 = vmatpush1.msra.mxu0 %v948
    %1642 = vmatprep.subr.mxu0 %v957
    %1643 = vmatpush1.msra.mxu0 %v956
    %1644 = vmatprep.subr.mxu0 %v965
    %1645 = vmatpush1.msra.mxu0 %v964
    %1646 = vmatprep.subr.mxu0 %v973
    %1647 = vmatpush1.msra.mxu0 %v972
    %1648 = vmatprep.subr.mxu0 %v981
    %1649 = vmatpush1.msra.mxu0 %v980
    %1650 = vmatprep.subr.mxu0 %v989
    %1651 = vmatpush1.msra.mxu0 %v988
    %1652 = vmatprep.subr.mxu0 %v997
    %1653 = vmatpush1.msra.mxu0 %v996
    %1654 = vmatprep.subr.mxu0 %v1005
    %1655 = vmatpush1.msra.mxu0 %v1004
    %1656 = vmatprep.mubr.f32.mxu0 %v1365
    %1657 = vmatmul.mubr.f32.gmra.mrb[0].mxu0 %v1364
    %v1658 = vpop.f32.mrb[0].mxu0
    %v1659 = vadd.f32 0.0, %v1658
    %v1660 = vpop.f32.mrb[0].mxu0
    %v1661 = vadd.f32 0.0, %v1660
    %1662 = vdwg.mxu0
    %v1663 = vadd.f32 %v1371, %v1446
    %v1664 = vadd.f32 %v1372, %v1448
    %v1665 = vadd.f32 %v1373, %v1517
    %v1666 = vadd.f32 %v1374, %v1519
    %v1667 = vadd.f32 %v1375, %v1588
    %v1668 = vadd.f32 %v1376, %v1590
    %v1669 = vadd.f32 %v1377, %v1659
    %v1670 = vadd.f32 %v1378, %v1661
    %v1671 = vxor.u32 %v1663, 2147483648
    %v1672 = vxor.u32 %v1664, 2147483648
    %v1673 = vxor.u32 %v1665, 2147483648
    %v1674 = vxor.u32 %v1666, 2147483648
    %v1675 = vxor.u32 %v1667, 2147483648
    %v1676 = vxor.u32 %v1668, 2147483648
    %v1677 = vmul.f32 %v1671, 1.442695
    %v1678 = vpow.pop %v1677
    %v1679 = vmul.f32 %v1672, 1.442695
    %v1680 = vpow.pop %v1679
    %v1681 = vmul.f32 %v1673, 1.442695
    %v1682 = vpow.pop %v1681
    %v1683 = vmul.f32 %v1674, 1.442695
    %v1684 = vpow.pop %v1683
    %v1685 = vmul.f32 %v1675, 1.442695
    %v1686 = vpow.pop %v1685
    %v1687 = vmul.f32 %v1676, 1.442695
    %v1688 = vpow.pop %v1687
    %v1689 = vadd.f32 %v1678, 1.0
    %v1690 = vadd.f32 %v1680, 1.0
    %v1691 = vadd.f32 %v1682, 1.0
    %v1692 = vadd.f32 %v1684, 1.0
    %v1693 = vadd.f32 %v1686, 1.0
    %v1694 = vadd.f32 %v1688, 1.0
    %v1695 = vrcp.pop %v1689
    %v1696 = vmul.f32 1.0, %v1695
    %v1697 = vrcp.pop %v1690
    %v1698 = vmul.f32 1.0, %v1697
    %v1699 = vrcp.pop %v1691
    %v1700 = vmul.f32 1.0, %v1699
    %v1701 = vrcp.pop %v1692
    %v1702 = vmul.f32 1.0, %v1701
    %v1703 = vrcp.pop %v1693
    %v1704 = vmul.f32 1.0, %v1703
    %v1705 = vrcp.pop %v1694
    %v1706 = vmul.f32 1.0, %v1705
    %v1707 = vtanh.pop %v1669
    %v1708 = vtanh.pop %v1670
    %v1709 = vmul.f32 %v1700, %v1366
    %v1710 = vmul.f32 %v1702, %v1367
    %v1711 = vmul.f32 %v1696, %v1707
    %v1712 = vmul.f32 %v1698, %v1708
    %v1713 = vadd.f32 %v1709, %v1711
    %v1714 = vadd.f32 %v1710, %v1712
    %v1715 = vtanh.pop %v1713
    %v1716 = vtanh.pop %v1714
    %v1717 = vmul.f32 %v1704, %v1715
    %v1718 = vmul.f32 %v1706, %v1716
    %s1719 = smul.u32 1, 2
    %s1720 = smul.addr %s1719, 8
    %s1721 = scalar_lea.vmem [#allocation6], %s1720
    %v1722 = vld [vmem:[%s1721] sm:$0xff]
    %v1723 = vld [vmem:[%s1721 + $0x8] sm:$0xff]
    %vm1724 = vcmp.gt.f32.partialorder %v1722, 0.0
    %vm1725 = vcmp.gt.f32.partialorder %v1723, 0.0
    %v1726 = vsel %vm1724, %v1717, %v1364
    %v1727 = vsel %vm1725, %v1718, %v1365
    %v1728 = vsel %vm1724, %v1713, %v1366
    %v1729 = vsel %vm1725, %v1714, %v1367
    %s1730 = smul.u32 2, 8
    %s1731 = smul.addr %s1730, 8
    %s1732 = scalar_lea.vmem [#allocation2], %s1731
    %v1733 = vld [vmem:[%s1732] sm:$0xff]
    %v1734 = vld [vmem:[%s1732 + $0x8] sm:$0xff]
    %v1735 = vld [vmem:[%s1732 + $0x10] sm:$0xff]
    %v1736 = vld [vmem:[%s1732 + $0x18] sm:$0xff]
    %v1737 = vld [vmem:[%s1732 + $0x20] sm:$0xff]
    %v1738 = vld [vmem:[%s1732 + $0x28] sm:$0xff]
    %v1739 = vld [vmem:[%s1732 + $0x30] sm:$0xff]
    %v1740 = vld [vmem:[%s1732 + $0x38] sm:$0xff]
    %1741 = vmatprep.subr.mxu0 %v751
    %1742 = vmatpush1.msra.mxu0 %v750
    %1743 = vmatprep.subr.mxu0 %v759
    %1744 = vmatpush1.msra.mxu0 %v758
    %1745 = vmatprep.subr.mxu0 %v767
    %1746 = vmatpush1.msra.mxu0 %v766
    %1747 = vmatprep.subr.mxu0 %v775
    %1748 = vmatpush1.msra.mxu0 %v774
    %1749 = vmatprep.subr.mxu0 %v783
    %1750 = vmatpush1.msra.mxu0 %v782
    %1751 = vmatprep.subr.mxu0 %v791
    %1752 = vmatpush1.msra.mxu0 %v790
    %1753 = vmatprep.subr.mxu0 %v799
    %1754 = vmatpush1.msra.mxu0 %v798
    %1755 = vmatprep.subr.mxu0 %v807
    %1756 = vmatpush1.msra.mxu0 %v806
    %1757 = vmatprep.subr.mxu0 %v815
    %1758 = vmatpush1.msra.mxu0 %v814
    %1759 = vmatprep.subr.mxu0 %v823
    %1760 = vmatpush1.msra.mxu0 %v822
    %1761 = vmatprep.subr.mxu0 %v831
    %1762 = vmatpush1.msra.mxu0 %v830
    %1763 = vmatprep.subr.mxu0 %v839
    %1764 = vmatpush1.msra.mxu0 %v838
    %1765 = vmatprep.subr.mxu0 %v847
    %1766 = vmatpush1.msra.mxu0 %v846
    %1767 = vmatprep.subr.mxu0 %v855
    %1768 = vmatpush1.msra.mxu0 %v854
    %1769 = vmatprep.subr.mxu0 %v863
    %1770 = vmatpush1.msra.mxu0 %v862
    %1771 = vmatprep.subr.mxu0 %v871
    %1772 = vmatpush1.msra.mxu0 %v870
    %1773 = vmatprep.subr.mxu0 %v879
    %1774 = vmatpush1.msra.mxu0 %v878
    %1775 = vmatprep.subr.mxu0 %v887
    %1776 = vmatpush1.msra.mxu0 %v886
    %1777 = vmatprep.subr.mxu0 %v895
    %1778 = vmatpush1.msra.mxu0 %v894
    %1779 = vmatprep.subr.mxu0 %v903
    %1780 = vmatpush1.msra.mxu0 %v902
    %1781 = vmatprep.subr.mxu0 %v911
    %1782 = vmatpush1.msra.mxu0 %v910
    %1783 = vmatprep.subr.mxu0 %v919
    %1784 = vmatpush1.msra.mxu0 %v918
    %1785 = vmatprep.subr.mxu0 %v927
    %1786 = vmatpush1.msra.mxu0 %v926
    %1787 = vmatprep.subr.mxu0 %v935
    %1788 = vmatpush1.msra.mxu0 %v934
    %1789 = vmatprep.subr.mxu0 %v943
    %1790 = vmatpush1.msra.mxu0 %v942
    %1791 = vmatprep.subr.mxu0 %v951
    %1792 = vmatpush1.msra.mxu0 %v950
    %1793 = vmatprep.subr.mxu0 %v959
    %1794 = vmatpush1.msra.mxu0 %v958
    %1795 = vmatprep.subr.mxu0 %v967
    %1796 = vmatpush1.msra.mxu0 %v966
    %1797 = vmatprep.subr.mxu0 %v975
    %1798 = vmatpush1.msra.mxu0 %v974
    %1799 = vmatprep.subr.mxu0 %v983
    %1800 = vmatpush1.msra.mxu0 %v982
    %1801 = vmatprep.subr.mxu0 %v991
    %1802 = vmatpush1.msra.mxu0 %v990
    %1803 = vmatprep.subr.mxu0 %v999
    %1804 = vmatpush1.msra.mxu0 %v998
    %1805 = vmatprep.mubr.f32.mxu0 %v1727
    %1806 = vmatmul.mubr.f32.gmra.mrb[0].mxu0 %v1726
    %v1807 = vpop.f32.mrb[0].mxu0
    %v1808 = vadd.f32 0.0, %v1807
    %v1809 = vpop.f32.mrb[0].mxu0
    %v1810 = vadd.f32 0.0, %v1809
    %1811 = vdwg.mxu0
    %1812 = vmatprep.subr.mxu0 %v753
    %1813 = vmatpush1.msra.mxu0 %v752
    %1814 = vmatprep.subr.mxu0 %v761
    %1815 = vmatpush1.msra.mxu0 %v760
    %1816 = vmatprep.subr.mxu0 %v769
    %1817 = vmatpush1.msra.mxu0 %v768
    %1818 = vmatprep.subr.mxu0 %v777
    %1819 = vmatpush1.msra.mxu0 %v776
    %1820 = vmatprep.subr.mxu0 %v785
    %1821 = vmatpush1.msra.mxu0 %v784
    %1822 = vmatprep.subr.mxu0 %v793
    %1823 = vmatpush1.msra.mxu0 %v792
    %1824 = vmatprep.subr.mxu0 %v801
    %1825 = vmatpush1.msra.mxu0 %v800
    %1826 = vmatprep.subr.mxu0 %v809
    %1827 = vmatpush1.msra.mxu0 %v808
    %1828 = vmatprep.subr.mxu0 %v817
    %1829 = vmatpush1.msra.mxu0 %v816
    %1830 = vmatprep.subr.mxu0 %v825
    %1831 = vmatpush1.msra.mxu0 %v824
    %1832 = vmatprep.subr.mxu0 %v833
    %1833 = vmatpush1.msra.mxu0 %v832
    %1834 = vmatprep.subr.mxu0 %v841
    %1835 = vmatpush1.msra.mxu0 %v840
    %1836 = vmatprep.subr.mxu0 %v849
    %1837 = vmatpush1.msra.mxu0 %v848
    %1838 = vmatprep.subr.mxu0 %v857
    %1839 = vmatpush1.msra.mxu0 %v856
    %1840 = vmatprep.subr.mxu0 %v865
    %1841 = vmatpush1.msra.mxu0 %v864
    %1842 = vmatprep.subr.mxu0 %v873
    %1843 = vmatpush1.msra.mxu0 %v872
    %1844 = vmatprep.subr.mxu0 %v881
    %1845 = vmatpush1.msra.mxu0 %v880
    %1846 = vmatprep.subr.mxu0 %v889
    %1847 = vmatpush1.msra.mxu0 %v888
    %1848 = vmatprep.subr.mxu0 %v897
    %1849 = vmatpush1.msra.mxu0 %v896
    %1850 = vmatprep.subr.mxu0 %v905
    %1851 = vmatpush1.msra.mxu0 %v904
    %1852 = vmatprep.subr.mxu0 %v913
    %1853 = vmatpush1.msra.mxu0 %v912
    %1854 = vmatprep.subr.mxu0 %v921
    %1855 = vmatpush1.msra.mxu0 %v920
    %1856 = vmatprep.subr.mxu0 %v929
    %1857 = vmatpush1.msra.mxu0 %v928
    %1858 = vmatprep.subr.mxu0 %v937
    %1859 = vmatpush1.msra.mxu0 %v936
    %1860 = vmatprep.subr.mxu0 %v945
    %1861 = vmatpush1.msra.mxu0 %v944
    %1862 = vmatprep.subr.mxu0 %v953
    %1863 = vmatpush1.msra.mxu0 %v952
    %1864 = vmatprep.subr.mxu0 %v961
    %1865 = vmatpush1.msra.mxu0 %v960
    %1866 = vmatprep.subr.mxu0 %v969
    %1867 = vmatpush1.msra.mxu0 %v968
    %1868 = vmatprep.subr.mxu0 %v977
    %1869 = vmatpush1.msra.mxu0 %v976
    %1870 = vmatprep.subr.mxu0 %v985
    %1871 = vmatpush1.msra.mxu0 %v984
    %1872 = vmatprep.subr.mxu0 %v993
    %1873 = vmatpush1.msra.mxu0 %v992
    %1874 = vmatprep.subr.mxu0 %v1001
    %1875 = vmatpush1.msra.mxu0 %v1000
    %1876 = vmatprep.mubr.f32.mxu0 %v1727
    %1877 = vmatmul.mubr.f32.gmra.mrb[0].mxu0 %v1726
    %v1878 = vpop.f32.mrb[0].mxu0
    %v1879 = vadd.f32 0.0, %v1878
    %v1880 = vpop.f32.mrb[0].mxu0
    %v1881 = vadd.f32 0.0, %v1880
    %1882 = vdwg.mxu0
    %1883 = vmatprep.subr.mxu0 %v755
    %1884 = vmatpush1.msra.mxu0 %v754
    %1885 = vmatprep.subr.mxu0 %v763
    %1886 = vmatpush1.msra.mxu0 %v762
    %1887 = vmatprep.subr.mxu0 %v771
    %1888 = vmatpush1.msra.mxu0 %v770
    %1889 = vmatprep.subr.mxu0 %v779
    %1890 = vmatpush1.msra.mxu0 %v778
    %1891 = vmatprep.subr.mxu0 %v787
    %1892 = vmatpush1.msra.mxu0 %v786
    %1893 = vmatprep.subr.mxu0 %v795
    %1894 = vmatpush1.msra.mxu0 %v794
    %1895 = vmatprep.subr.mxu0 %v803
    %1896 = vmatpush1.msra.mxu0 %v802
    %1897 = vmatprep.subr.mxu0 %v811
    %1898 = vmatpush1.msra.mxu0 %v810
    %1899 = vmatprep.subr.mxu0 %v819
    %1900 = vmatpush1.msra.mxu0 %v818
    %1901 = vmatprep.subr.mxu0 %v827
    %1902 = vmatpush1.msra.mxu0 %v826
    %1903 = vmatprep.subr.mxu0 %v835
    %1904 = vmatpush1.msra.mxu0 %v834
    %1905 = vmatprep.subr.mxu0 %v843
    %1906 = vmatpush1.msra.mxu0 %v842
    %1907 = vmatprep.subr.mxu0 %v851
    %1908 = vmatpush1.msra.mxu0 %v850
    %1909 = vmatprep.subr.mxu0 %v859
    %1910 = vmatpush1.msra.mxu0 %v858
    %1911 = vmatprep.subr.mxu0 %v867
    %1912 = vmatpush1.msra.mxu0 %v866
    %1913 = vmatprep.subr.mxu0 %v875
    %1914 = vmatpush1.msra.mxu0 %v874
    %1915 = vmatprep.subr.mxu0 %v883
    %1916 = vmatpush1.msra.mxu0 %v882
    %1917 = vmatprep.subr.mxu0 %v891
    %1918 = vmatpush1.msra.mxu0 %v890
    %1919 = vmatprep.subr.mxu0 %v899
    %1920 = vmatpush1.msra.mxu0 %v898
    %1921 = vmatprep.subr.mxu0 %v907
    %1922 = vmatpush1.msra.mxu0 %v906
    %1923 = vmatprep.subr.mxu0 %v915
    %1924 = vmatpush1.msra.mxu0 %v914
    %1925 = vmatprep.subr.mxu0 %v923
    %1926 = vmatpush1.msra.mxu0 %v922
    %1927 = vmatprep.subr.mxu0 %v931
    %1928 = vmatpush1.msra.mxu0 %v930
    %1929 = vmatprep.subr.mxu0 %v939
    %1930 = vmatpush1.msra.mxu0 %v938
    %1931 = vmatprep.subr.mxu0 %v947
    %1932 = vmatpush1.msra.mxu0 %v946
    %1933 = vmatprep.subr.mxu0 %v955
    %1934 = vmatpush1.msra.mxu0 %v954
    %1935 = vmatprep.subr.mxu0 %v963
    %1936 = vmatpush1.msra.mxu0 %v962
    %1937 = vmatprep.subr.mxu0 %v971
    %1938 = vmatpush1.msra.mxu0 %v970
    %1939 = vmatprep.subr.mxu0 %v979
    %1940 = vmatpush1.msra.mxu0 %v978
    %1941 = vmatprep.subr.mxu0 %v987
    %1942 = vmatpush1.msra.mxu0 %v986
    %1943 = vmatprep.subr.mxu0 %v995
    %1944 = vmatpush1.msra.mxu0 %v994
    %1945 = vmatprep.subr.mxu0 %v1003
    %1946 = vmatpush1.msra.mxu0 %v1002
    %1947 = vmatprep.mubr.f32.mxu0 %v1727
    %1948 = vmatmul.mubr.f32.gmra.mrb[0].mxu0 %v1726
    %v1949 = vpop.f32.mrb[0].mxu0
    %v1950 = vadd.f32 0.0, %v1949
    %v1951 = vpop.f32.mrb[0].mxu0
    %v1952 = vadd.f32 0.0, %v1951
    %1953 = vdwg.mxu0
    %1954 = vmatprep.subr.mxu0 %v757
    %1955 = vmatpush1.msra.mxu0 %v756
    %1956 = vmatprep.subr.mxu0 %v765
    %1957 = vmatpush1.msra.mxu0 %v764
    %1958 = vmatprep.subr.mxu0 %v773
    %1959 = vmatpush1.msra.mxu0 %v772
    %1960 = vmatprep.subr.mxu0 %v781
    %1961 = vmatpush1.msra.mxu0 %v780
    %1962 = vmatprep.subr.mxu0 %v789
    %1963 = vmatpush1.msra.mxu0 %v788
    %1964 = vmatprep.subr.mxu0 %v797
    %1965 = vmatpush1.msra.mxu0 %v796
    %1966 = vmatprep.subr.mxu0 %v805
    %1967 = vmatpush1.msra.mxu0 %v804
    %1968 = vmatprep.subr.mxu0 %v813
    %1969 = vmatpush1.msra.mxu0 %v812
    %1970 = vmatprep.subr.mxu0 %v821
    %1971 = vmatpush1.msra.mxu0 %v820
    %1972 = vmatprep.subr.mxu0 %v829
    %1973 = vmatpush1.msra.mxu0 %v828
    %1974 = vmatprep.subr.mxu0 %v837
    %1975 = vmatpush1.msra.mxu0 %v836
    %1976 = vmatprep.subr.mxu0 %v845
    %1977 = vmatpush1.msra.mxu0 %v844
    %1978 = vmatprep.subr.mxu0 %v853
    %1979 = vmatpush1.msra.mxu0 %v852
    %1980 = vmatprep.subr.mxu0 %v861
    %1981 = vmatpush1.msra.mxu0 %v860
    %1982 = vmatprep.subr.mxu0 %v869
    %1983 = vmatpush1.msra.mxu0 %v868
    %1984 = vmatprep.subr.mxu0 %v877
    %1985 = vmatpush1.msra.mxu0 %v876
    %1986 = vmatprep.subr.mxu0 %v885
    %1987 = vmatpush1.msra.mxu0 %v884
    %1988 = vmatprep.subr.mxu0 %v893
    %1989 = vmatpush1.msra.mxu0 %v892
    %1990 = vmatprep.subr.mxu0 %v901
    %1991 = vmatpush1.msra.mxu0 %v900
    %1992 = vmatprep.subr.mxu0 %v909
    %1993 = vmatpush1.msra.mxu0 %v908
    %1994 = vmatprep.subr.mxu0 %v917
    %1995 = vmatpush1.msra.mxu0 %v916
    %1996 = vmatprep.subr.mxu0 %v925
    %1997 = vmatpush1.msra.mxu0 %v924
    %1998 = vmatprep.subr.mxu0 %v933
    %1999 = vmatpush1.msra.mxu0 %v932
    %2000 = vmatprep.subr.mxu0 %v941
    %2001 = vmatpush1.msra.mxu0 %v940
    %2002 = vmatprep.subr.mxu0 %v949
    %2003 = vmatpush1.msra.mxu0 %v948
    %2004 = vmatprep.subr.mxu0 %v957
    %2005 = vmatpush1.msra.mxu0 %v956
    %2006 = vmatprep.subr.mxu0 %v965
    %2007 = vmatpush1.msra.mxu0 %v964
    %2008 = vmatprep.subr.mxu0 %v973
    %2009 = vmatpush1.msra.mxu0 %v972
    %2010 = vmatprep.subr.mxu0 %v981
    %2011 = vmatpush1.msra.mxu0 %v980
    %2012 = vmatprep.subr.mxu0 %v989
    %2013 = vmatpush1.msra.mxu0 %v988
    %2014 = vmatprep.subr.mxu0 %v997
    %2015 = vmatpush1.msra.mxu0 %v996
    %2016 = vmatprep.subr.mxu0 %v1005
    %2017 = vmatpush1.msra.mxu0 %v1004
    %2018 = vmatprep.mubr.f32.mxu0 %v1727
    %2019 = vmatmul.mubr.f32.gmra.mrb[0].mxu0 %v1726
    %v2020 = vpop.f32.mrb[0].mxu0
    %v2021 = vadd.f32 0.0, %v2020
    %v2022 = vpop.f32.mrb[0].mxu0
    %v2023 = vadd.f32 0.0, %v2022
    %2024 = vdwg.mxu0
    %v2025 = vadd.f32 %v1733, %v1808
    %v2026 = vadd.f32 %v1734, %v1810
    %v2027 = vadd.f32 %v1735, %v1879
    %v2028 = vadd.f32 %v1736, %v1881
    %v2029 = vadd.f32 %v1737, %v1950
    %v2030 = vadd.f32 %v1738, %v1952
    %v2031 = vadd.f32 %v1739, %v2021
    %v2032 = vadd.f32 %v1740, %v2023
    %v2033 = vxor.u32 %v2025, 2147483648
    %v2034 = vxor.u32 %v2026, 2147483648
    %v2035 = vxor.u32 %v2027, 2147483648
    %v2036 = vxor.u32 %v2028, 2147483648
    %v2037 = vxor.u32 %v2029, 2147483648
    %v2038 = vxor.u32 %v2030, 2147483648
    %v2039 = vmul.f32 %v2033, 1.442695
    %v2040 = vpow.pop %v2039
    %v2041 = vmul.f32 %v2034, 1.442695
    %v2042 = vpow.pop %v2041
    %v2043 = vmul.f32 %v2035, 1.442695
    %v2044 = vpow.pop %v2043
    %v2045 = vmul.f32 %v2036, 1.442695
    %v2046 = vpow.pop %v2045
    %v2047 = vmul.f32 %v2037, 1.442695
    %v2048 = vpow.pop %v2047
    %v2049 = vmul.f32 %v2038, 1.442695
    %v2050 = vpow.pop %v2049
    %v2051 = vadd.f32 %v2040, 1.0
    %v2052 = vadd.f32 %v2042, 1.0
    %v2053 = vadd.f32 %v2044, 1.0
    %v2054 = vadd.f32 %v2046, 1.0
    %v2055 = vadd.f32 %v2048, 1.0
    %v2056 = vadd.f32 %v2050, 1.0
    %v2057 = vrcp.pop %v2051
    %v2058 = vmul.f32 1.0, %v2057
    %v2059 = vrcp.pop %v2052
    %v2060 = vmul.f32 1.0, %v2059
    %v2061 = vrcp.pop %v2053
    %v2062 = vmul.f32 1.0, %v2061
    %v2063 = vrcp.pop %v2054
    %v2064 = vmul.f32 1.0, %v2063
    %v2065 = vrcp.pop %v2055
    %v2066 = vmul.f32 1.0, %v2065
    %v2067 = vrcp.pop %v2056
    %v2068 = vmul.f32 1.0, %v2067
    %v2069 = vtanh.pop %v2031
    %v2070 = vtanh.pop %v2032
    %v2071 = vmul.f32 %v2062, %v1728
    %v2072 = vmul.f32 %v2064, %v1729
    %v2073 = vmul.f32 %v2058, %v2069
    %v2074 = vmul.f32 %v2060, %v2070
    %v2075 = vadd.f32 %v2071, %v2073
    %v2076 = vadd.f32 %v2072, %v2074
    %v2077 = vtanh.pop %v2075
    %v2078 = vtanh.pop %v2076
    %v2079 = vmul.f32 %v2066, %v2077
    %v2080 = vmul.f32 %v2068, %v2078
    %s2081 = smul.u32 2, 2
    %s2082 = smul.addr %s2081, 8
    %s2083 = scalar_lea.vmem [#allocation6], %s2082
    %v2084 = vld [vmem:[%s2083] sm:$0xff]
    %v2085 = vld [vmem:[%s2083 + $0x8] sm:$0xff]
    %vm2086 = vcmp.gt.f32.partialorder %v2084, 0.0
    %vm2087 = vcmp.gt.f32.partialorder %v2085, 0.0
    %v2088 = vsel %vm2086, %v2079, %v1726
    %v2089 = vsel %vm2087, %v2080, %v1727
    %v2090 = vsel %vm2086, %v2075, %v1728
    %v2091 = vsel %vm2087, %v2076, %v1729
    %s2092 = smul.u32 3, 8
    %s2093 = smul.addr %s2092, 8
    %s2094 = scalar_lea.vmem [#allocation2], %s2093
    %v2095 = vld [vmem:[%s2094] sm:$0xff]
    %v2096 = vld [vmem:[%s2094 + $0x8] sm:$0xff]
    %v2097 = vld [vmem:[%s2094 + $0x10] sm:$0xff]
    %v2098 = vld [vmem:[%s2094 + $0x18] sm:$0xff]
    %v2099 = vld [vmem:[%s2094 + $0x20] sm:$0xff]
    %v2100 = vld [vmem:[%s2094 + $0x28] sm:$0xff]
    %v2101 = vld [vmem:[%s2094 + $0x30] sm:$0xff]
    %v2102 = vld [vmem:[%s2094 + $0x38] sm:$0xff]
    %2103 = vmatprep.subr.mxu0 %v751
    %2104 = vmatpush1.msra.mxu0 %v750
    %2105 = vmatprep.subr.mxu0 %v759
    %2106 = vmatpush1.msra.mxu0 %v758
    %2107 = vmatprep.subr.mxu0 %v767
    %2108 = vmatpush1.msra.mxu0 %v766
    %2109 = vmatprep.subr.mxu0 %v775
    %2110 = vmatpush1.msra.mxu0 %v774
    %2111 = vmatprep.subr.mxu0 %v783
    %2112 = vmatpush1.msra.mxu0 %v782
    %2113 = vmatprep.subr.mxu0 %v791
    %2114 = vmatpush1.msra.mxu0 %v790
    %2115 = vmatprep.subr.mxu0 %v799
    %2116 = vmatpush1.msra.mxu0 %v798
    %2117 = vmatprep.subr.mxu0 %v807
    %2118 = vmatpush1.msra.mxu0 %v806
    %2119 = vmatprep.subr.mxu0 %v815
    %2120 = vmatpush1.msra.mxu0 %v814
    %2121 = vmatprep.subr.mxu0 %v823
    %2122 = vmatpush1.msra.mxu0 %v822
    %2123 = vmatprep.subr.mxu0 %v831
    %2124 = vmatpush1.msra.mxu0 %v830
    %2125 = vmatprep.subr.mxu0 %v839
    %2126 = vmatpush1.msra.mxu0 %v838
    %2127 = vmatprep.subr.mxu0 %v847
    %2128 = vmatpush1.msra.mxu0 %v846
    %2129 = vmatprep.subr.mxu0 %v855
    %2130 = vmatpush1.msra.mxu0 %v854
    %2131 = vmatprep.subr.mxu0 %v863
    %2132 = vmatpush1.msra.mxu0 %v862
    %2133 = vmatprep.subr.mxu0 %v871
    %2134 = vmatpush1.msra.mxu0 %v870
    %2135 = vmatprep.subr.mxu0 %v879
    %2136 = vmatpush1.msra.mxu0 %v878
    %2137 = vmatprep.subr.mxu0 %v887
    %2138 = vmatpush1.msra.mxu0 %v886
    %2139 = vmatprep.subr.mxu0 %v895
    %2140 = vmatpush1.msra.mxu0 %v894
    %2141 = vmatprep.subr.mxu0 %v903
    %2142 = vmatpush1.msra.mxu0 %v902
    %2143 = vmatprep.subr.mxu0 %v911
    %2144 = vmatpush1.msra.mxu0 %v910
    %2145 = vmatprep.subr.mxu0 %v919
    %2146 = vmatpush1.msra.mxu0 %v918
    %2147 = vmatprep.subr.mxu0 %v927
    %2148 = vmatpush1.msra.mxu0 %v926
    %2149 = vmatprep.subr.mxu0 %v935
    %2150 = vmatpush1.msra.mxu0 %v934
    %2151 = vmatprep.subr.mxu0 %v943
    %2152 = vmatpush1.msra.mxu0 %v942
    %2153 = vmatprep.subr.mxu0 %v951
    %2154 = vmatpush1.msra.mxu0 %v950
    %2155 = vmatprep.subr.mxu0 %v959
    %2156 = vmatpush1.msra.mxu0 %v958
    %2157 = vmatprep.subr.mxu0 %v967
    %2158 = vmatpush1.msra.mxu0 %v966
    %2159 = vmatprep.subr.mxu0 %v975
    %2160 = vmatpush1.msra.mxu0 %v974
    %2161 = vmatprep.subr.mxu0 %v983
    %2162 = vmatpush1.msra.mxu0 %v982
    %2163 = vmatprep.subr.mxu0 %v991
    %2164 = vmatpush1.msra.mxu0 %v990
    %2165 = vmatprep.subr.mxu0 %v999
    %2166 = vmatpush1.msra.mxu0 %v998
    %2167 = vmatprep.mubr.f32.mxu0 %v2089
    %2168 = vmatmul.mubr.f32.gmra.mrb[0].mxu0 %v2088
    %v2169 = vpop.f32.mrb[0].mxu0
    %v2170 = vadd.f32 0.0, %v2169
    %v2171 = vpop.f32.mrb[0].mxu0
    %v2172 = vadd.f32 0.0, %v2171
    %2173 = vdwg.mxu0
    %2174 = vmatprep.subr.mxu0 %v753
    %2175 = vmatpush1.msra.mxu0 %v752
    %2176 = vmatprep.subr.mxu0 %v761
    %2177 = vmatpush1.msra.mxu0 %v760
    %2178 = vmatprep.subr.mxu0 %v769
    %2179 = vmatpush1.msra.mxu0 %v768
    %2180 = vmatprep.subr.mxu0 %v777
    %2181 = vmatpush1.msra.mxu0 %v776
    %2182 = vmatprep.subr.mxu0 %v785
    %2183 = vmatpush1.msra.mxu0 %v784
    %2184 = vmatprep.subr.mxu0 %v793
    %2185 = vmatpush1.msra.mxu0 %v792
    %2186 = vmatprep.subr.mxu0 %v801
    %2187 = vmatpush1.msra.mxu0 %v800
    %2188 = vmatprep.subr.mxu0 %v809
    %2189 = vmatpush1.msra.mxu0 %v808
    %2190 = vmatprep.subr.mxu0 %v817
    %2191 = vmatpush1.msra.mxu0 %v816
    %2192 = vmatprep.subr.mxu0 %v825
    %2193 = vmatpush1.msra.mxu0 %v824
    %2194 = vmatprep.subr.mxu0 %v833
    %2195 = vmatpush1.msra.mxu0 %v832
    %2196 = vmatprep.subr.mxu0 %v841
    %2197 = vmatpush1.msra.mxu0 %v840
    %2198 = vmatprep.subr.mxu0 %v849
    %2199 = vmatpush1.msra.mxu0 %v848
    %2200 = vmatprep.subr.mxu0 %v857
    %2201 = vmatpush1.msra.mxu0 %v856
    %2202 = vmatprep.subr.mxu0 %v865
    %2203 = vmatpush1.msra.mxu0 %v864
    %2204 = vmatprep.subr.mxu0 %v873
    %2205 = vmatpush1.msra.mxu0 %v872
    %2206 = vmatprep.subr.mxu0 %v881
    %2207 = vmatpush1.msra.mxu0 %v880
    %2208 = vmatprep.subr.mxu0 %v889
    %2209 = vmatpush1.msra.mxu0 %v888
    %2210 = vmatprep.subr.mxu0 %v897
    %2211 = vmatpush1.msra.mxu0 %v896
    %2212 = vmatprep.subr.mxu0 %v905
    %2213 = vmatpush1.msra.mxu0 %v904
    %2214 = vmatprep.subr.mxu0 %v913
    %2215 = vmatpush1.msra.mxu0 %v912
    %2216 = vmatprep.subr.mxu0 %v921
    %2217 = vmatpush1.msra.mxu0 %v920
    %2218 = vmatprep.subr.mxu0 %v929
    %2219 = vmatpush1.msra.mxu0 %v928
    %2220 = vmatprep.subr.mxu0 %v937
    %2221 = vmatpush1.msra.mxu0 %v936
    %2222 = vmatprep.subr.mxu0 %v945
    %2223 = vmatpush1.msra.mxu0 %v944
    %2224 = vmatprep.subr.mxu0 %v953
    %2225 = vmatpush1.msra.mxu0 %v952
    %2226 = vmatprep.subr.mxu0 %v961
    %2227 = vmatpush1.msra.mxu0 %v960
    %2228 = vmatprep.subr.mxu0 %v969
    %2229 = vmatpush1.msra.mxu0 %v968
    %2230 = vmatprep.subr.mxu0 %v977
    %2231 = vmatpush1.msra.mxu0 %v976
    %2232 = vmatprep.subr.mxu0 %v985
    %2233 = vmatpush1.msra.mxu0 %v984
    %2234 = vmatprep.subr.mxu0 %v993
    %2235 = vmatpush1.msra.mxu0 %v992
    %2236 = vmatprep.subr.mxu0 %v1001
    %2237 = vmatpush1.msra.mxu0 %v1000
    %2238 = vmatprep.mubr.f32.mxu0 %v2089
    %2239 = vmatmul.mubr.f32.gmra.mrb[0].mxu0 %v2088
    %v2240 = vpop.f32.mrb[0].mxu0
    %v2241 = vadd.f32 0.0, %v2240
    %v2242 = vpop.f32.mrb[0].mxu0
    %v2243 = vadd.f32 0.0, %v2242
    %2244 = vdwg.mxu0
    %2245 = vmatprep.subr.mxu0 %v755
    %2246 = vmatpush1.msra.mxu0 %v754
    %2247 = vmatprep.subr.mxu0 %v763
    %2248 = vmatpush1.msra.mxu0 %v762
    %2249 = vmatprep.subr.mxu0 %v771
    %2250 = vmatpush1.msra.mxu0 %v770
    %2251 = vmatprep.subr.mxu0 %v779
    %2252 = vmatpush1.msra.mxu0 %v778
    %2253 = vmatprep.subr.mxu0 %v787
    %2254 = vmatpush1.msra.mxu0 %v786
    %2255 = vmatprep.subr.mxu0 %v795
    %2256 = vmatpush1.msra.mxu0 %v794
    %2257 = vmatprep.subr.mxu0 %v803
    %2258 = vmatpush1.msra.mxu0 %v802
    %2259 = vmatprep.subr.mxu0 %v811
    %2260 = vmatpush1.msra.mxu0 %v810
    %2261 = vmatprep.subr.mxu0 %v819
    %2262 = vmatpush1.msra.mxu0 %v818
    %2263 = vmatprep.subr.mxu0 %v827
    %2264 = vmatpush1.msra.mxu0 %v826
    %2265 = vmatprep.subr.mxu0 %v835
    %2266 = vmatpush1.msra.mxu0 %v834
    %2267 = vmatprep.subr.mxu0 %v843
    %2268 = vmatpush1.msra.mxu0 %v842
    %2269 = vmatprep.subr.mxu0 %v851
    %2270 = vmatpush1.msra.mxu0 %v850
    %2271 = vmatprep.subr.mxu0 %v859
    %2272 = vmatpush1.msra.mxu0 %v858
    %2273 = vmatprep.subr.mxu0 %v867
    %2274 = vmatpush1.msra.mxu0 %v866
    %2275 = vmatprep.subr.mxu0 %v875
    %2276 = vmatpush1.msra.mxu0 %v874
    %2277 = vmatprep.subr.mxu0 %v883
    %2278 = vmatpush1.msra.mxu0 %v882
    %2279 = vmatprep.subr.mxu0 %v891
    %2280 = vmatpush1.msra.mxu0 %v890
    %2281 = vmatprep.subr.mxu0 %v899
    %2282 = vmatpush1.msra.mxu0 %v898
    %2283 = vmatprep.subr.mxu0 %v907
    %2284 = vmatpush1.msra.mxu0 %v906
    %2285 = vmatprep.subr.mxu0 %v915
    %2286 = vmatpush1.msra.mxu0 %v914
    %2287 = vmatprep.subr.mxu0 %v923
    %2288 = vmatpush1.msra.mxu0 %v922
    %2289 = vmatprep.subr.mxu0 %v931
    %2290 = vmatpush1.msra.mxu0 %v930
    %2291 = vmatprep.subr.mxu0 %v939
    %2292 = vmatpush1.msra.mxu0 %v938
    %2293 = vmatprep.subr.mxu0 %v947
    %2294 = vmatpush1.msra.mxu0 %v946
    %2295 = vmatprep.subr.mxu0 %v955
    %2296 = vmatpush1.msra.mxu0 %v954
    %2297 = vmatprep.subr.mxu0 %v963
    %2298 = vmatpush1.msra.mxu0 %v962
    %2299 = vmatprep.subr.mxu0 %v971
    %2300 = vmatpush1.msra.mxu0 %v970
    %2301 = vmatprep.subr.mxu0 %v979
    %2302 = vmatpush1.msra.mxu0 %v978
    %2303 = vmatprep.subr.mxu0 %v987
    %2304 = vmatpush1.msra.mxu0 %v986
    %2305 = vmatprep.subr.mxu0 %v995
    %2306 = vmatpush1.msra.mxu0 %v994
    %2307 = vmatprep.subr.mxu0 %v1003
    %2308 = vmatpush1.msra.mxu0 %v1002
    %2309 = vmatprep.mubr.f32.mxu0 %v2089
    %2310 = vmatmul.mubr.f32.gmra.mrb[0].mxu0 %v2088
    %v2311 = vpop.f32.mrb[0].mxu0
    %v2312 = vadd.f32 0.0, %v2311
    %v2313 = vpop.f32.mrb[0].mxu0
    %v2314 = vadd.f32 0.0, %v2313
    %2315 = vdwg.mxu0
    %2316 = vmatprep.subr.mxu0 %v757
    %2317 = vmatpush1.msra.mxu0 %v756
    %2318 = vmatprep.subr.mxu0 %v765
    %2319 = vmatpush1.msra.mxu0 %v764
    %2320 = vmatprep.subr.mxu0 %v773
    %2321 = vmatpush1.msra.mxu0 %v772
    %2322 = vmatprep.subr.mxu0 %v781
    %2323 = vmatpush1.msra.mxu0 %v780
    %2324 = vmatprep.subr.mxu0 %v789
    %2325 = vmatpush1.msra.mxu0 %v788
    %2326 = vmatprep.subr.mxu0 %v797
    %2327 = vmatpush1.msra.mxu0 %v796
    %2328 = vmatprep.subr.mxu0 %v805
    %2329 = vmatpush1.msra.mxu0 %v804
    %2330 = vmatprep.subr.mxu0 %v813
    %2331 = vmatpush1.msra.mxu0 %v812
    %2332 = vmatprep.subr.mxu0 %v821
    %2333 = vmatpush1.msra.mxu0 %v820
    %2334 = vmatprep.subr.mxu0 %v829
    %2335 = vmatpush1.msra.mxu0 %v828
    %2336 = vmatprep.subr.mxu0 %v837
    %2337 = vmatpush1.msra.mxu0 %v836
    %2338 = vmatprep.subr.mxu0 %v845
    %2339 = vmatpush1.msra.mxu0 %v844
    %2340 = vmatprep.subr.mxu0 %v853
    %2341 = vmatpush1.msra.mxu0 %v852
    %2342 = vmatprep.subr.mxu0 %v861
    %2343 = vmatpush1.msra.mxu0 %v860
    %2344 = vmatprep.subr.mxu0 %v869
    %2345 = vmatpush1.msra.mxu0 %v868
    %2346 = vmatprep.subr.mxu0 %v877
    %2347 = vmatpush1.msra.mxu0 %v876
    %2348 = vmatprep.subr.mxu0 %v885
    %2349 = vmatpush1.msra.mxu0 %v884
    %2350 = vmatprep.subr.mxu0 %v893
    %2351 = vmatpush1.msra.mxu0 %v892
    %2352 = vmatprep.subr.mxu0 %v901
    %2353 = vmatpush1.msra.mxu0 %v900
    %2354 = vmatprep.subr.mxu0 %v909
    %2355 = vmatpush1.msra.mxu0 %v908
    %2356 = vmatprep.subr.mxu0 %v917
    %2357 = vmatpush1.msra.mxu0 %v916
    %2358 = vmatprep.subr.mxu0 %v925
    %2359 = vmatpush1.msra.mxu0 %v924
    %2360 = vmatprep.subr.mxu0 %v933
    %2361 = vmatpush1.msra.mxu0 %v932
    %2362 = vmatprep.subr.mxu0 %v941
    %2363 = vmatpush1.msra.mxu0 %v940
    %2364 = vmatprep.subr.mxu0 %v949
    %2365 = vmatpush1.msra.mxu0 %v948
    %2366 = vmatprep.subr.mxu0 %v957
    %2367 = vmatpush1.msra.mxu0 %v956
    %2368 = vmatprep.subr.mxu0 %v965
    %2369 = vmatpush1.msra.mxu0 %v964
    %2370 = vmatprep.subr.mxu0 %v973
    %2371 = vmatpush1.msra.mxu0 %v972
    %2372 = vmatprep.subr.mxu0 %v981
    %2373 = vmatpush1.msra.mxu0 %v980
    %2374 = vmatprep.subr.mxu0 %v989
    %2375 = vmatpush1.msra.mxu0 %v988
    %2376 = vmatprep.subr.mxu0 %v997
    %2377 = vmatpush1.msra.mxu0 %v996
    %2378 = vmatprep.subr.mxu0 %v1005
    %2379 = vmatpush1.msra.mxu0 %v1004
    %2380 = vmatprep.mubr.f32.mxu0 %v2089
    %2381 = vmatmul.mubr.f32.gmra.mrb[0].mxu0 %v2088
    %v2382 = vpop.f32.mrb[0].mxu0
    %v2383 = vadd.f32 0.0, %v2382
    %v2384 = vpop.f32.mrb[0].mxu0
    %v2385 = vadd.f32 0.0, %v2384
    %2386 = vdwg.mxu0
    %v2387 = vadd.f32 %v2095, %v2170
    %v2388 = vadd.f32 %v2096, %v2172
    %v2389 = vadd.f32 %v2097, %v2241
    %v2390 = vadd.f32 %v2098, %v2243
    %v2391 = vadd.f32 %v2099, %v2312
    %v2392 = vadd.f32 %v2100, %v2314
    %v2393 = vadd.f32 %v2101, %v2383
    %v2394 = vadd.f32 %v2102, %v2385
    %v2395 = vxor.u32 %v2387, 2147483648
    %v2396 = vxor.u32 %v2388, 2147483648
    %v2397 = vxor.u32 %v2389, 2147483648
    %v2398 = vxor.u32 %v2390, 2147483648
    %v2399 = vxor.u32 %v2391, 2147483648
    %v2400 = vxor.u32 %v2392, 2147483648
    %v2401 = vmul.f32 %v2395, 1.442695
    %v2402 = vpow.pop %v2401
    %v2403 = vmul.f32 %v2396, 1.442695
    %v2404 = vpow.pop %v2403
    %v2405 = vmul.f32 %v2397, 1.442695
    %v2406 = vpow.pop %v2405
    %v2407 = vmul.f32 %v2398, 1.442695
    %v2408 = vpow.pop %v2407
    %v2409 = vmul.f32 %v2399, 1.442695
    %v2410 = vpow.pop %v2409
    %v2411 = vmul.f32 %v2400, 1.442695
    %v2412 = vpow.pop %v2411
    %v2413 = vadd.f32 %v2402, 1.0
    %v2414 = vadd.f32 %v2404, 1.0
    %v2415 = vadd.f32 %v2406, 1.0
    %v2416 = vadd.f32 %v2408, 1.0
    %v2417 = vadd.f32 %v2410, 1.0
    %v2418 = vadd.f32 %v2412, 1.0
    %v2419 = vrcp.pop %v2413
    %v2420 = vmul.f32 1.0, %v2419
    %v2421 = vrcp.pop %v2414
    %v2422 = vmul.f32 1.0, %v2421
    %v2423 = vrcp.pop %v2415
    %v2424 = vmul.f32 1.0, %v2423
    %v2425 = vrcp.pop %v2416
    %v2426 = vmul.f32 1.0, %v2425
    %v2427 = vrcp.pop %v2417
    %v2428 = vmul.f32 1.0, %v2427
    %v2429 = vrcp.pop %v2418
    %v2430 = vmul.f32 1.0, %v2429
    %v2431 = vtanh.pop %v2393
    %v2432 = vtanh.pop %v2394
    %v2433 = vmul.f32 %v2424, %v2090
    %v2434 = vmul.f32 %v2426, %v2091
    %v2435 = vmul.f32 %v2420, %v2431
    %v2436 = vmul.f32 %v2422, %v2432
    %v2437 = vadd.f32 %v2433, %v2435
    %v2438 = vadd.f32 %v2434, %v2436
    %v2439 = vtanh.pop %v2437
    %v2440 = vtanh.pop %v2438
    %v2441 = vmul.f32 %v2428, %v2439
    %v2442 = vmul.f32 %v2430, %v2440
    %s2443 = smul.u32 3, 2
    %s2444 = smul.addr %s2443, 8
    %s2445 = scalar_lea.vmem [#allocation6], %s2444
    %v2446 = vld [vmem:[%s2445] sm:$0xff]
    %v2447 = vld [vmem:[%s2445 + $0x8] sm:$0xff]
    %vm2448 = vcmp.gt.f32.partialorder %v2446, 0.0
    %vm2449 = vcmp.gt.f32.partialorder %v2447, 0.0
    %v2450 = vsel %vm2448, %v2441, %v2088
    %v2451 = vsel %vm2449, %v2442, %v2089
    %v2452 = vsel %vm2448, %v2437, %v2090
    %v2453 = vsel %vm2449, %v2438, %v2091
    %s2454 = smul.u32 4, 8
    %s2455 = smul.addr %s2454, 8
    %s2456 = scalar_lea.vmem [#allocation2], %s2455
    %v2457 = vld [vmem:[%s2456] sm:$0xff]
    %v2458 = vld [vmem:[%s2456 + $0x8] sm:$0xff]
    %v2459 = vld [vmem:[%s2456 + $0x10] sm:$0xff]
    %v2460 = vld [vmem:[%s2456 + $0x18] sm:$0xff]
    %v2461 = vld [vmem:[%s2456 + $0x20] sm:$0xff]
    %v2462 = vld [vmem:[%s2456 + $0x28] sm:$0xff]
    %v2463 = vld [vmem:[%s2456 + $0x30] sm:$0xff]
    %v2464 = vld [vmem:[%s2456 + $0x38] sm:$0xff]
    %2465 = vmatprep.subr.mxu0 %v751
    %2466 = vmatpush1.msra.mxu0 %v750
    %2467 = vmatprep.subr.mxu0 %v759
    %2468 = vmatpush1.msra.mxu0 %v758
    %2469 = vmatprep.subr.mxu0 %v767
    %2470 = vmatpush1.msra.mxu0 %v766
    %2471 = vmatprep.subr.mxu0 %v775
    %2472 = vmatpush1.msra.mxu0 %v774
    %2473 = vmatprep.subr.mxu0 %v783
    %2474 = vmatpush1.msra.mxu0 %v782
    %2475 = vmatprep.subr.mxu0 %v791
    %2476 = vmatpush1.msra.mxu0 %v790
    %2477 = vmatprep.subr.mxu0 %v799
    %2478 = vmatpush1.msra.mxu0 %v798
    %2479 = vmatprep.subr.mxu0 %v807
    %2480 = vmatpush1.msra.mxu0 %v806
    %2481 = vmatprep.subr.mxu0 %v815
    %2482 = vmatpush1.msra.mxu0 %v814
    %2483 = vmatprep.subr.mxu0 %v823
    %2484 = vmatpush1.msra.mxu0 %v822
    %2485 = vmatprep.subr.mxu0 %v831
    %2486 = vmatpush1.msra.mxu0 %v830
    %2487 = vmatprep.subr.mxu0 %v839
    %2488 = vmatpush1.msra.mxu0 %v838
    %2489 = vmatprep.subr.mxu0 %v847
    %2490 = vmatpush1.msra.mxu0 %v846
    %2491 = vmatprep.subr.mxu0 %v855
    %2492 = vmatpush1.msra.mxu0 %v854
    %2493 = vmatprep.subr.mxu0 %v863
    %2494 = vmatpush1.msra.mxu0 %v862
    %2495 = vmatprep.subr.mxu0 %v871
    %2496 = vmatpush1.msra.mxu0 %v870
    %2497 = vmatprep.subr.mxu0 %v879
    %2498 = vmatpush1.msra.mxu0 %v878
    %2499 = vmatprep.subr.mxu0 %v887
    %2500 = vmatpush1.msra.mxu0 %v886
    %2501 = vmatprep.subr.mxu0 %v895
    %2502 = vmatpush1.msra.mxu0 %v894
    %2503 = vmatprep.subr.mxu0 %v903
    %2504 = vmatpush1.msra.mxu0 %v902
    %2505 = vmatprep.subr.mxu0 %v911
    %2506 = vmatpush1.msra.mxu0 %v910
    %2507 = vmatprep.subr.mxu0 %v919
    %2508 = vmatpush1.msra.mxu0 %v918
    %2509 = vmatprep.subr.mxu0 %v927
    %2510 = vmatpush1.msra.mxu0 %v926
    %2511 = vmatprep.subr.mxu0 %v935
    %2512 = vmatpush1.msra.mxu0 %v934
    %2513 = vmatprep.subr.mxu0 %v943
    %2514 = vmatpush1.msra.mxu0 %v942
    %2515 = vmatprep.subr.mxu0 %v951
    %2516 = vmatpush1.msra.mxu0 %v950
    %2517 = vmatprep.subr.mxu0 %v959
    %2518 = vmatpush1.msra.mxu0 %v958
    %2519 = vmatprep.subr.mxu0 %v967
    %2520 = vmatpush1.msra.mxu0 %v966
    %2521 = vmatprep.subr.mxu0 %v975
    %2522 = vmatpush1.msra.mxu0 %v974
    %2523 = vmatprep.subr.mxu0 %v983
    %2524 = vmatpush1.msra.mxu0 %v982
    %2525 = vmatprep.subr.mxu0 %v991
    %2526 = vmatpush1.msra.mxu0 %v990
    %2527 = vmatprep.subr.mxu0 %v999
    %2528 = vmatpush1.msra.mxu0 %v998
    %2529 = vmatprep.mubr.f32.mxu0 %v2451
    %2530 = vmatmul.mubr.f32.gmra.mrb[0].mxu0 %v2450
    %v2531 = vpop.f32.mrb[0].mxu0
    %v2532 = vadd.f32 0.0, %v2531
    %v2533 = vpop.f32.mrb[0].mxu0
    %v2534 = vadd.f32 0.0, %v2533
    %2535 = vdwg.mxu0
    %2536 = vmatprep.subr.mxu0 %v753
    %2537 = vmatpush1.msra.mxu0 %v752
    %2538 = vmatprep.subr.mxu0 %v761
    %2539 = vmatpush1.msra.mxu0 %v760
    %2540 = vmatprep.subr.mxu0 %v769
    %2541 = vmatpush1.msra.mxu0 %v768
    %2542 = vmatprep.subr.mxu0 %v777
    %2543 = vmatpush1.msra.mxu0 %v776
    %2544 = vmatprep.subr.mxu0 %v785
    %2545 = vmatpush1.msra.mxu0 %v784
    %2546 = vmatprep.subr.mxu0 %v793
    %2547 = vmatpush1.msra.mxu0 %v792
    %2548 = vmatprep.subr.mxu0 %v801
    %2549 = vmatpush1.msra.mxu0 %v800
    %2550 = vmatprep.subr.mxu0 %v809
    %2551 = vmatpush1.msra.mxu0 %v808
    %2552 = vmatprep.subr.mxu0 %v817
    %2553 = vmatpush1.msra.mxu0 %v816
    %2554 = vmatprep.subr.mxu0 %v825
    %2555 = vmatpush1.msra.mxu0 %v824
    %2556 = vmatprep.subr.mxu0 %v833
    %2557 = vmatpush1.msra.mxu0 %v832
    %2558 = vmatprep.subr.mxu0 %v841
    %2559 = vmatpush1.msra.mxu0 %v840
    %2560 = vmatprep.subr.mxu0 %v849
    %2561 = vmatpush1.msra.mxu0 %v848
    %2562 = vmatprep.subr.mxu0 %v857
    %2563 = vmatpush1.msra.mxu0 %v856
    %2564 = vmatprep.subr.mxu0 %v865
    %2565 = vmatpush1.msra.mxu0 %v864
    %2566 = vmatprep.subr.mxu0 %v873
    %2567 = vmatpush1.msra.mxu0 %v872
    %2568 = vmatprep.subr.mxu0 %v881
    %2569 = vmatpush1.msra.mxu0 %v880
    %2570 = vmatprep.subr.mxu0 %v889
    %2571 = vmatpush1.msra.mxu0 %v888
    %2572 = vmatprep.subr.mxu0 %v897
    %2573 = vmatpush1.msra.mxu0 %v896
    %2574 = vmatprep.subr.mxu0 %v905
    %2575 = vmatpush1.msra.mxu0 %v904
    %2576 = vmatprep.subr.mxu0 %v913
    %2577 = vmatpush1.msra.mxu0 %v912
    %2578 = vmatprep.subr.mxu0 %v921
    %2579 = vmatpush1.msra.mxu0 %v920
    %2580 = vmatprep.subr.mxu0 %v929
    %2581 = vmatpush1.msra.mxu0 %v928
    %2582 = vmatprep.subr.mxu0 %v937
    %2583 = vmatpush1.msra.mxu0 %v936
    %2584 = vmatprep.subr.mxu0 %v945
    %2585 = vmatpush1.msra.mxu0 %v944
    %2586 = vmatprep.subr.mxu0 %v953
    %2587 = vmatpush1.msra.mxu0 %v952
    %2588 = vmatprep.subr.mxu0 %v961
    %2589 = vmatpush1.msra.mxu0 %v960
    %2590 = vmatprep.subr.mxu0 %v969
    %2591 = vmatpush1.msra.mxu0 %v968
    %2592 = vmatprep.subr.mxu0 %v977
    %2593 = vmatpush1.msra.mxu0 %v976
    %2594 = vmatprep.subr.mxu0 %v985
    %2595 = vmatpush1.msra.mxu0 %v984
    %2596 = vmatprep.subr.mxu0 %v993
    %2597 = vmatpush1.msra.mxu0 %v992
    %2598 = vmatprep.subr.mxu0 %v1001
    %2599 = vmatpush1.msra.mxu0 %v1000
    %2600 = vmatprep.mubr.f32.mxu0 %v2451
    %2601 = vmatmul.mubr.f32.gmra.mrb[0].mxu0 %v2450
    %v2602 = vpop.f32.mrb[0].mxu0
    %v2603 = vadd.f32 0.0, %v2602
    %v2604 = vpop.f32.mrb[0].mxu0
    %v2605 = vadd.f32 0.0, %v2604
    %2606 = vdwg.mxu0
    %2607 = vmatprep.subr.mxu0 %v755
    %2608 = vmatpush1.msra.mxu0 %v754
    %2609 = vmatprep.subr.mxu0 %v763
    %2610 = vmatpush1.msra.mxu0 %v762
    %2611 = vmatprep.subr.mxu0 %v771
    %2612 = vmatpush1.msra.mxu0 %v770
    %2613 = vmatprep.subr.mxu0 %v779
    %2614 = vmatpush1.msra.mxu0 %v778
    %2615 = vmatprep.subr.mxu0 %v787
    %2616 = vmatpush1.msra.mxu0 %v786
    %2617 = vmatprep.subr.mxu0 %v795
    %2618 = vmatpush1.msra.mxu0 %v794
    %2619 = vmatprep.subr.mxu0 %v803
    %2620 = vmatpush1.msra.mxu0 %v802
    %2621 = vmatprep.subr.mxu0 %v811
    %2622 = vmatpush1.msra.mxu0 %v810
    %2623 = vmatprep.subr.mxu0 %v819
    %2624 = vmatpush1.msra.mxu0 %v818
    %2625 = vmatprep.subr.mxu0 %v827
    %2626 = vmatpush1.msra.mxu0 %v826
    %2627 = vmatprep.subr.mxu0 %v835
    %2628 = vmatpush1.msra.mxu0 %v834
    %2629 = vmatprep.subr.mxu0 %v843
    %2630 = vmatpush1.msra.mxu0 %v842
    %2631 = vmatprep.subr.mxu0 %v851
    %2632 = vmatpush1.msra.mxu0 %v850
    %2633 = vmatprep.subr.mxu0 %v859
    %2634 = vmatpush1.msra.mxu0 %v858
    %2635 = vmatprep.subr.mxu0 %v867
    %2636 = vmatpush1.msra.mxu0 %v866
    %2637 = vmatprep.subr.mxu0 %v875
    %2638 = vmatpush1.msra.mxu0 %v874
    %2639 = vmatprep.subr.mxu0 %v883
    %2640 = vmatpush1.msra.mxu0 %v882
    %2641 = vmatprep.subr.mxu0 %v891
    %2642 = vmatpush1.msra.mxu0 %v890
    %2643 = vmatprep.subr.mxu0 %v899
    %2644 = vmatpush1.msra.mxu0 %v898
    %2645 = vmatprep.subr.mxu0 %v907
    %2646 = vmatpush1.msra.mxu0 %v906
    %2647 = vmatprep.subr.mxu0 %v915
    %2648 = vmatpush1.msra.mxu0 %v914
    %2649 = vmatprep.subr.mxu0 %v923
    %2650 = vmatpush1.msra.mxu0 %v922
    %2651 = vmatprep.subr.mxu0 %v931
    %2652 = vmatpush1.msra.mxu0 %v930
    %2653 = vmatprep.subr.mxu0 %v939
    %2654 = vmatpush1.msra.mxu0 %v938
    %2655 = vmatprep.subr.mxu0 %v947
    %2656 = vmatpush1.msra.mxu0 %v946
    %2657 = vmatprep.subr.mxu0 %v955
    %2658 = vmatpush1.msra.mxu0 %v954
    %2659 = vmatprep.subr.mxu0 %v963
    %2660 = vmatpush1.msra.mxu0 %v962
    %2661 = vmatprep.subr.mxu0 %v971
    %2662 = vmatpush1.msra.mxu0 %v970
    %2663 = vmatprep.subr.mxu0 %v979
    %2664 = vmatpush1.msra.mxu0 %v978
    %2665 = vmatprep.subr.mxu0 %v987
    %2666 = vmatpush1.msra.mxu0 %v986
    %2667 = vmatprep.subr.mxu0 %v995
    %2668 = vmatpush1.msra.mxu0 %v994
    %2669 = vmatprep.subr.mxu0 %v1003
    %2670 = vmatpush1.msra.mxu0 %v1002
    %2671 = vmatprep.mubr.f32.mxu0 %v2451
    %2672 = vmatmul.mubr.f32.gmra.mrb[0].mxu0 %v2450
    %v2673 = vpop.f32.mrb[0].mxu0
    %v2674 = vadd.f32 0.0, %v2673
    %v2675 = vpop.f32.mrb[0].mxu0
    %v2676 = vadd.f32 0.0, %v2675
    %2677 = vdwg.mxu0
    %2678 = vmatprep.subr.mxu0 %v757
    %2679 = vmatpush1.msra.mxu0 %v756
    %2680 = vmatprep.subr.mxu0 %v765
    %2681 = vmatpush1.msra.mxu0 %v764
    %2682 = vmatprep.subr.mxu0 %v773
    %2683 = vmatpush1.msra.mxu0 %v772
    %2684 = vmatprep.subr.mxu0 %v781
    %2685 = vmatpush1.msra.mxu0 %v780
    %2686 = vmatprep.subr.mxu0 %v789
    %2687 = vmatpush1.msra.mxu0 %v788
    %2688 = vmatprep.subr.mxu0 %v797
    %2689 = vmatpush1.msra.mxu0 %v796
    %2690 = vmatprep.subr.mxu0 %v805
    %2691 = vmatpush1.msra.mxu0 %v804
    %2692 = vmatprep.subr.mxu0 %v813
    %2693 = vmatpush1.msra.mxu0 %v812
    %2694 = vmatprep.subr.mxu0 %v821
    %2695 = vmatpush1.msra.mxu0 %v820
    %2696 = vmatprep.subr.mxu0 %v829
    %2697 = vmatpush1.msra.mxu0 %v828
    %2698 = vmatprep.subr.mxu0 %v837
    %2699 = vmatpush1.msra.mxu0 %v836
    %2700 = vmatprep.subr.mxu0 %v845
    %2701 = vmatpush1.msra.mxu0 %v844
    %2702 = vmatprep.subr.mxu0 %v853
    %2703 = vmatpush1.msra.mxu0 %v852
    %2704 = vmatprep.subr.mxu0 %v861
    %2705 = vmatpush1.msra.mxu0 %v860
    %2706 = vmatprep.subr.mxu0 %v869
    %2707 = vmatpush1.msra.mxu0 %v868
    %2708 = vmatprep.subr.mxu0 %v877
    %2709 = vmatpush1.msra.mxu0 %v876
    %2710 = vmatprep.subr.mxu0 %v885
    %2711 = vmatpush1.msra.mxu0 %v884
    %2712 = vmatprep.subr.mxu0 %v893
    %2713 = vmatpush1.msra.mxu0 %v892
    %2714 = vmatprep.subr.mxu0 %v901
    %2715 = vmatpush1.msra.mxu0 %v900
    %2716 = vmatprep.subr.mxu0 %v909
    %2717 = vmatpush1.msra.mxu0 %v908
    %2718 = vmatprep.subr.mxu0 %v917
    %2719 = vmatpush1.msra.mxu0 %v916
    %2720 = vmatprep.subr.mxu0 %v925
    %2721 = vmatpush1.msra.mxu0 %v924
    %2722 = vmatprep.subr.mxu0 %v933
    %2723 = vmatpush1.msra.mxu0 %v932
    %2724 = vmatprep.subr.mxu0 %v941
    %2725 = vmatpush1.msra.mxu0 %v940
    %2726 = vmatprep.subr.mxu0 %v949
    %2727 = vmatpush1.msra.mxu0 %v948
    %2728 = vmatprep.subr.mxu0 %v957
    %2729 = vmatpush1.msra.mxu0 %v956
    %2730 = vmatprep.subr.mxu0 %v965
    %2731 = vmatpush1.msra.mxu0 %v964
    %2732 = vmatprep.subr.mxu0 %v973
    %2733 = vmatpush1.msra.mxu0 %v972
    %2734 = vmatprep.subr.mxu0 %v981
    %2735 = vmatpush1.msra.mxu0 %v980
    %2736 = vmatprep.subr.mxu0 %v989
    %2737 = vmatpush1.msra.mxu0 %v988
    %2738 = vmatprep.subr.mxu0 %v997
    %2739 = vmatpush1.msra.mxu0 %v996
    %2740 = vmatprep.subr.mxu0 %v1005
    %2741 = vmatpush1.msra.mxu0 %v1004
    %2742 = vmatprep.mubr.f32.mxu0 %v2451
    %2743 = vmatmul.mubr.f32.gmra.mrb[0].mxu0 %v2450
    %v2744 = vpop.f32.mrb[0].mxu0
    %v2745 = vadd.f32 0.0, %v2744
    %v2746 = vpop.f32.mrb[0].mxu0
    %v2747 = vadd.f32 0.0, %v2746
    %2748 = vdwg.mxu0
    %v2749 = vadd.f32 %v2457, %v2532
    %v2750 = vadd.f32 %v2458, %v2534
    %v2751 = vadd.f32 %v2459, %v2603
    %v2752 = vadd.f32 %v2460, %v2605
    %v2753 = vadd.f32 %v2461, %v2674
    %v2754 = vadd.f32 %v2462, %v2676
    %v2755 = vadd.f32 %v2463, %v2745
    %v2756 = vadd.f32 %v2464, %v2747
    %v2757 = vxor.u32 %v2749, 2147483648
    %v2758 = vxor.u32 %v2750, 2147483648
    %v2759 = vxor.u32 %v2751, 2147483648
    %v2760 = vxor.u32 %v2752, 2147483648
    %v2761 = vxor.u32 %v2753, 2147483648
    %v2762 = vxor.u32 %v2754, 2147483648
    %v2763 = vmul.f32 %v2757, 1.442695
    %v2764 = vpow.pop %v2763
    %v2765 = vmul.f32 %v2758, 1.442695
    %v2766 = vpow.pop %v2765
    %v2767 = vmul.f32 %v2759, 1.442695
    %v2768 = vpow.pop %v2767
    %v2769 = vmul.f32 %v2760, 1.442695
    %v2770 = vpow.pop %v2769
    %v2771 = vmul.f32 %v2761, 1.442695
    %v2772 = vpow.pop %v2771
    %v2773 = vmul.f32 %v2762, 1.442695
    %v2774 = vpow.pop %v2773
    %v2775 = vadd.f32 %v2764, 1.0
    %v2776 = vadd.f32 %v2766, 1.0
    %v2777 = vadd.f32 %v2768, 1.0
    %v2778 = vadd.f32 %v2770, 1.0
    %v2779 = vadd.f32 %v2772, 1.0
    %v2780 = vadd.f32 %v2774, 1.0
    %v2781 = vrcp.pop %v2775
    %v2782 = vmul.f32 1.0, %v2781
    %v2783 = vrcp.pop %v2776
    %v2784 = vmul.f32 1.0, %v2783
    %v2785 = vrcp.pop %v2777
    %v2786 = vmul.f32 1.0, %v2785
    %v2787 = vrcp.pop %v2778
    %v2788 = vmul.f32 1.0, %v2787
    %v2789 = vrcp.pop %v2779
    %v2790 = vmul.f32 1.0, %v2789
    %v2791 = vrcp.pop %v2780
    %v2792 = vmul.f32 1.0, %v2791
    %v2793 = vtanh.pop %v2755
    %v2794 = vtanh.pop %v2756
    %v2795 = vmul.f32 %v2786, %v2452
    %v2796 = vmul.f32 %v2788, %v2453
    %v2797 = vmul.f32 %v2782, %v2793
    %v2798 = vmul.f32 %v2784, %v2794
    %v2799 = vadd.f32 %v2795, %v2797
    %v2800 = vadd.f32 %v2796, %v2798
    %v2801 = vtanh.pop %v2799
    %v2802 = vtanh.pop %v2800
    %v2803 = vmul.f32 %v2790, %v2801
    %v2804 = vmul.f32 %v2792, %v2802
    %s2805 = smul.u32 4, 2
    %s2806 = smul.addr %s2805, 8
    %s2807 = scalar_lea.vmem [#allocation6], %s2806
    %v2808 = vld [vmem:[%s2807] sm:$0xff]
    %v2809 = vld [vmem:[%s2807 + $0x8] sm:$0xff]
    %vm2810 = vcmp.gt.f32.partialorder %v2808, 0.0
    %vm2811 = vcmp.gt.f32.partialorder %v2809, 0.0
    %v2812 = vsel %vm2810, %v2803, %v2450
    %v2813 = vsel %vm2811, %v2804, %v2451
    %v2814 = vsel %vm2810, %v2799, %v2452
    %v2815 = vsel %vm2811, %v2800, %v2453
    %s2816 = smul.u32 5, 8
    %s2817 = smul.addr %s2816, 8
    %s2818 = scalar_lea.vmem [#allocation2], %s2817
    %v2819 = vld [vmem:[%s2818] sm:$0xff]
    %v2820 = vld [vmem:[%s2818 + $0x8] sm:$0xff]
    %v2821 = vld [vmem:[%s2818 + $0x10] sm:$0xff]
    %v2822 = vld [vmem:[%s2818 + $0x18] sm:$0xff]
    %v2823 = vld [vmem:[%s2818 + $0x20] sm:$0xff]
    %v2824 = vld [vmem:[%s2818 + $0x28] sm:$0xff]
    %v2825 = vld [vmem:[%s2818 + $0x30] sm:$0xff]
    %v2826 = vld [vmem:[%s2818 + $0x38] sm:$0xff]
    %2827 = vmatprep.subr.mxu0 %v751
    %2828 = vmatpush1.msra.mxu0 %v750
    %2829 = vmatprep.subr.mxu0 %v759
    %2830 = vmatpush1.msra.mxu0 %v758
    %2831 = vmatprep.subr.mxu0 %v767
    %2832 = vmatpush1.msra.mxu0 %v766
    %2833 = vmatprep.subr.mxu0 %v775
    %2834 = vmatpush1.msra.mxu0 %v774
    %2835 = vmatprep.subr.mxu0 %v783
    %2836 = vmatpush1.msra.mxu0 %v782
    %2837 = vmatprep.subr.mxu0 %v791
    %2838 = vmatpush1.msra.mxu0 %v790
    %2839 = vmatprep.subr.mxu0 %v799
    %2840 = vmatpush1.msra.mxu0 %v798
    %2841 = vmatprep.subr.mxu0 %v807
    %2842 = vmatpush1.msra.mxu0 %v806
    %2843 = vmatprep.subr.mxu0 %v815
    %2844 = vmatpush1.msra.mxu0 %v814
    %2845 = vmatprep.subr.mxu0 %v823
    %2846 = vmatpush1.msra.mxu0 %v822
    %2847 = vmatprep.subr.mxu0 %v831
    %2848 = vmatpush1.msra.mxu0 %v830
    %2849 = vmatprep.subr.mxu0 %v839
    %2850 = vmatpush1.msra.mxu0 %v838
    %2851 = vmatprep.subr.mxu0 %v847
    %2852 = vmatpush1.msra.mxu0 %v846
    %2853 = vmatprep.subr.mxu0 %v855
    %2854 = vmatpush1.msra.mxu0 %v854
    %2855 = vmatprep.subr.mxu0 %v863
    %2856 = vmatpush1.msra.mxu0 %v862
    %2857 = vmatprep.subr.mxu0 %v871
    %2858 = vmatpush1.msra.mxu0 %v870
    %2859 = vmatprep.subr.mxu0 %v879
    %2860 = vmatpush1.msra.mxu0 %v878
    %2861 = vmatprep.subr.mxu0 %v887
    %2862 = vmatpush1.msra.mxu0 %v886
    %2863 = vmatprep.subr.mxu0 %v895
    %2864 = vmatpush1.msra.mxu0 %v894
    %2865 = vmatprep.subr.mxu0 %v903
    %2866 = vmatpush1.msra.mxu0 %v902
    %2867 = vmatprep.subr.mxu0 %v911
    %2868 = vmatpush1.msra.mxu0 %v910
    %2869 = vmatprep.subr.mxu0 %v919
    %2870 = vmatpush1.msra.mxu0 %v918
    %2871 = vmatprep.subr.mxu0 %v927
    %2872 = vmatpush1.msra.mxu0 %v926
    %2873 = vmatprep.subr.mxu0 %v935
    %2874 = vmatpush1.msra.mxu0 %v934
    %2875 = vmatprep.subr.mxu0 %v943
    %2876 = vmatpush1.msra.mxu0 %v942
    %2877 = vmatprep.subr.mxu0 %v951
    %2878 = vmatpush1.msra.mxu0 %v950
    %2879 = vmatprep.subr.mxu0 %v959
    %2880 = vmatpush1.msra.mxu0 %v958
    %2881 = vmatprep.subr.mxu0 %v967
    %2882 = vmatpush1.msra.mxu0 %v966
    %2883 = vmatprep.subr.mxu0 %v975
    %2884 = vmatpush1.msra.mxu0 %v974
    %2885 = vmatprep.subr.mxu0 %v983
    %2886 = vmatpush1.msra.mxu0 %v982
    %2887 = vmatprep.subr.mxu0 %v991
    %2888 = vmatpush1.msra.mxu0 %v990
    %2889 = vmatprep.subr.mxu0 %v999
    %2890 = vmatpush1.msra.mxu0 %v998
    %2891 = vmatprep.mubr.f32.mxu0 %v2813
    %2892 = vmatmul.mubr.f32.gmra.mrb[0].mxu0 %v2812
    %v2893 = vpop.f32.mrb[0].mxu0
    %v2894 = vadd.f32 0.0, %v2893
    %v2895 = vpop.f32.mrb[0].mxu0
    %v2896 = vadd.f32 0.0, %v2895
    %2897 = vdwg.mxu0
    %2898 = vmatprep.subr.mxu0 %v753
    %2899 = vmatpush1.msra.mxu0 %v752
    %2900 = vmatprep.subr.mxu0 %v761
    %2901 = vmatpush1.msra.mxu0 %v760
    %2902 = vmatprep.subr.mxu0 %v769
    %2903 = vmatpush1.msra.mxu0 %v768
    %2904 = vmatprep.subr.mxu0 %v777
    %2905 = vmatpush1.msra.mxu0 %v776
    %2906 = vmatprep.subr.mxu0 %v785
    %2907 = vmatpush1.msra.mxu0 %v784
    %2908 = vmatprep.subr.mxu0 %v793
    %2909 = vmatpush1.msra.mxu0 %v792
    %2910 = vmatprep.subr.mxu0 %v801
    %2911 = vmatpush1.msra.mxu0 %v800
    %2912 = vmatprep.subr.mxu0 %v809
    %2913 = vmatpush1.msra.mxu0 %v808
    %2914 = vmatprep.subr.mxu0 %v817
    %2915 = vmatpush1.msra.mxu0 %v816
    %2916 = vmatprep.subr.mxu0 %v825
    %2917 = vmatpush1.msra.mxu0 %v824
    %2918 = vmatprep.subr.mxu0 %v833
    %2919 = vmatpush1.msra.mxu0 %v832
    %2920 = vmatprep.subr.mxu0 %v841
    %2921 = vmatpush1.msra.mxu0 %v840
    %2922 = vmatprep.subr.mxu0 %v849
    %2923 = vmatpush1.msra.mxu0 %v848
    %2924 = vmatprep.subr.mxu0 %v857
    %2925 = vmatpush1.msra.mxu0 %v856
    %2926 = vmatprep.subr.mxu0 %v865
    %2927 = vmatpush1.msra.mxu0 %v864
    %2928 = vmatprep.subr.mxu0 %v873
    %2929 = vmatpush1.msra.mxu0 %v872
    %2930 = vmatprep.subr.mxu0 %v881
    %2931 = vmatpush1.msra.mxu0 %v880
    %2932 = vmatprep.subr.mxu0 %v889
    %2933 = vmatpush1.msra.mxu0 %v888
    %2934 = vmatprep.subr.mxu0 %v897
    %2935 = vmatpush1.msra.mxu0 %v896
    %2936 = vmatprep.subr.mxu0 %v905
    %2937 = vmatpush1.msra.mxu0 %v904
    %2938 = vmatprep.subr.mxu0 %v913
    %2939 = vmatpush1.msra.mxu0 %v912
    %2940 = vmatprep.subr.mxu0 %v921
    %2941 = vmatpush1.msra.mxu0 %v920
    %2942 = vmatprep.subr.mxu0 %v929
    %2943 = vmatpush1.msra.mxu0 %v928
    %2944 = vmatprep.subr.mxu0 %v937
    %2945 = vmatpush1.msra.mxu0 %v936
    %2946 = vmatprep.subr.mxu0 %v945
    %2947 = vmatpush1.msra.mxu0 %v944
    %2948 = vmatprep.subr.mxu0 %v953
    %2949 = vmatpush1.msra.mxu0 %v952
    %2950 = vmatprep.subr.mxu0 %v961
    %2951 = vmatpush1.msra.mxu0 %v960
    %2952 = vmatprep.subr.mxu0 %v969
    %2953 = vmatpush1.msra.mxu0 %v968
    %2954 = vmatprep.subr.mxu0 %v977
    %2955 = vmatpush1.msra.mxu0 %v976
    %2956 = vmatprep.subr.mxu0 %v985
    %2957 = vmatpush1.msra.mxu0 %v984
    %2958 = vmatprep.subr.mxu0 %v993
    %2959 = vmatpush1.msra.mxu0 %v992
    %2960 = vmatprep.subr.mxu0 %v1001
    %2961 = vmatpush1.msra.mxu0 %v1000
    %2962 = vmatprep.mubr.f32.mxu0 %v2813
    %2963 = vmatmul.mubr.f32.gmra.mrb[0].mxu0 %v2812
    %v2964 = vpop.f32.mrb[0].mxu0
    %v2965 = vadd.f32 0.0, %v2964
    %v2966 = vpop.f32.mrb[0].mxu0
    %v2967 = vadd.f32 0.0, %v2966
    %2968 = vdwg.mxu0
    %2969 = vmatprep.subr.mxu0 %v755
    %2970 = vmatpush1.msra.mxu0 %v754
    %2971 = vmatprep.subr.mxu0 %v763
    %2972 = vmatpush1.msra.mxu0 %v762
    %2973 = vmatprep.subr.mxu0 %v771
    %2974 = vmatpush1.msra.mxu0 %v770
    %2975 = vmatprep.subr.mxu0 %v779
    %2976 = vmatpush1.msra.mxu0 %v778
    %2977 = vmatprep.subr.mxu0 %v787
    %2978 = vmatpush1.msra.mxu0 %v786
    %2979 = vmatprep.subr.mxu0 %v795
    %2980 = vmatpush1.msra.mxu0 %v794
    %2981 = vmatprep.subr.mxu0 %v803
    %2982 = vmatpush1.msra.mxu0 %v802
    %2983 = vmatprep.subr.mxu0 %v811
    %2984 = vmatpush1.msra.mxu0 %v810
    %2985 = vmatprep.subr.mxu0 %v819
    %2986 = vmatpush1.msra.mxu0 %v818
    %2987 = vmatprep.subr.mxu0 %v827
    %2988 = vmatpush1.msra.mxu0 %v826
    %2989 = vmatprep.subr.mxu0 %v835
    %2990 = vmatpush1.msra.mxu0 %v834
    %2991 = vmatprep.subr.mxu0 %v843
    %2992 = vmatpush1.msra.mxu0 %v842
    %2993 = vmatprep.subr.mxu0 %v851
    %2994 = vmatpush1.msra.mxu0 %v850
    %2995 = vmatprep.subr.mxu0 %v859
    %2996 = vmatpush1.msra.mxu0 %v858
    %2997 = vmatprep.subr.mxu0 %v867
    %2998 = vmatpush1.msra.mxu0 %v866
    %2999 = vmatprep.subr.mxu0 %v875
    %3000 = vmatpush1.msra.mxu0 %v874
    %3001 = vmatprep.subr.mxu0 %v883
    %3002 = vmatpush1.msra.mxu0 %v882
    %3003 = vmatprep.subr.mxu0 %v891
    %3004 = vmatpush1.msra.mxu0 %v890
    %3005 = vmatprep.subr.mxu0 %v899
    %3006 = vmatpush1.msra.mxu0 %v898
    %3007 = vmatprep.subr.mxu0 %v907
    %3008 = vmatpush1.msra.mxu0 %v906
    %3009 = vmatprep.subr.mxu0 %v915
    %3010 = vmatpush1.msra.mxu0 %v914
    %3011 = vmatprep.subr.mxu0 %v923
    %3012 = vmatpush1.msra.mxu0 %v922
    %3013 = vmatprep.subr.mxu0 %v931
    %3014 = vmatpush1.msra.mxu0 %v930
    %3015 = vmatprep.subr.mxu0 %v939
    %3016 = vmatpush1.msra.mxu0 %v938
    %3017 = vmatprep.subr.mxu0 %v947
    %3018 = vmatpush1.msra.mxu0 %v946
    %3019 = vmatprep.subr.mxu0 %v955
    %3020 = vmatpush1.msra.mxu0 %v954
    %3021 = vmatprep.subr.mxu0 %v963
    %3022 = vmatpush1.msra.mxu0 %v962
    %3023 = vmatprep.subr.mxu0 %v971
    %3024 = vmatpush1.msra.mxu0 %v970
    %3025 = vmatprep.subr.mxu0 %v979
    %3026 = vmatpush1.msra.mxu0 %v978
    %3027 = vmatprep.subr.mxu0 %v987
    %3028 = vmatpush1.msra.mxu0 %v986
    %3029 = vmatprep.subr.mxu0 %v995
    %3030 = vmatpush1.msra.mxu0 %v994
    %3031 = vmatprep.subr.mxu0 %v1003
    %3032 = vmatpush1.msra.mxu0 %v1002
    %3033 = vmatprep.mubr.f32.mxu0 %v2813
    %3034 = vmatmul.mubr.f32.gmra.mrb[0].mxu0 %v2812
    %v3035 = vpop.f32.mrb[0].mxu0
    %v3036 = vadd.f32 0.0, %v3035
    %v3037 = vpop.f32.mrb[0].mxu0
    %v3038 = vadd.f32 0.0, %v3037
    %3039 = vdwg.mxu0
    %3040 = vmatprep.subr.mxu0 %v757
    %3041 = vmatpush1.msra.mxu0 %v756
    %3042 = vmatprep.subr.mxu0 %v765
    %3043 = vmatpush1.msra.mxu0 %v764
    %3044 = vmatprep.subr.mxu0 %v773
    %3045 = vmatpush1.msra.mxu0 %v772
    %3046 = vmatprep.subr.mxu0 %v781
    %3047 = vmatpush1.msra.mxu0 %v780
    %3048 = vmatprep.subr.mxu0 %v789
    %3049 = vmatpush1.msra.mxu0 %v788
    %3050 = vmatprep.subr.mxu0 %v797
    %3051 = vmatpush1.msra.mxu0 %v796
    %3052 = vmatprep.subr.mxu0 %v805
    %3053 = vmatpush1.msra.mxu0 %v804
    %3054 = vmatprep.subr.mxu0 %v813
    %3055 = vmatpush1.msra.mxu0 %v812
    %3056 = vmatprep.subr.mxu0 %v821
    %3057 = vmatpush1.msra.mxu0 %v820
    %3058 = vmatprep.subr.mxu0 %v829
    %3059 = vmatpush1.msra.mxu0 %v828
    %3060 = vmatprep.subr.mxu0 %v837
    %3061 = vmatpush1.msra.mxu0 %v836
    %3062 = vmatprep.subr.mxu0 %v845
    %3063 = vmatpush1.msra.mxu0 %v844
    %3064 = vmatprep.subr.mxu0 %v853
    %3065 = vmatpush1.msra.mxu0 %v852
    %3066 = vmatprep.subr.mxu0 %v861
    %3067 = vmatpush1.msra.mxu0 %v860
    %3068 = vmatprep.subr.mxu0 %v869
    %3069 = vmatpush1.msra.mxu0 %v868
    %3070 = vmatprep.subr.mxu0 %v877
    %3071 = vmatpush1.msra.mxu0 %v876
    %3072 = vmatprep.subr.mxu0 %v885
    %3073 = vmatpush1.msra.mxu0 %v884
    %3074 = vmatprep.subr.mxu0 %v893
    %3075 = vmatpush1.msra.mxu0 %v892
    %3076 = vmatprep.subr.mxu0 %v901
    %3077 = vmatpush1.msra.mxu0 %v900
    %3078 = vmatprep.subr.mxu0 %v909
    %3079 = vmatpush1.msra.mxu0 %v908
    %3080 = vmatprep.subr.mxu0 %v917
    %3081 = vmatpush1.msra.mxu0 %v916
    %3082 = vmatprep.subr.mxu0 %v925
    %3083 = vmatpush1.msra.mxu0 %v924
    %3084 = vmatprep.subr.mxu0 %v933
    %3085 = vmatpush1.msra.mxu0 %v932
    %3086 = vmatprep.subr.mxu0 %v941
    %3087 = vmatpush1.msra.mxu0 %v940
    %3088 = vmatprep.subr.mxu0 %v949
    %3089 = vmatpush1.msra.mxu0 %v948
    %3090 = vmatprep.subr.mxu0 %v957
    %3091 = vmatpush1.msra.mxu0 %v956
    %3092 = vmatprep.subr.mxu0 %v965
    %3093 = vmatpush1.msra.mxu0 %v964
    %3094 = vmatprep.subr.mxu0 %v973
    %3095 = vmatpush1.msra.mxu0 %v972
    %3096 = vmatprep.subr.mxu0 %v981
    %3097 = vmatpush1.msra.mxu0 %v980
    %3098 = vmatprep.subr.mxu0 %v989
    %3099 = vmatpush1.msra.mxu0 %v988
    %3100 = vmatprep.subr.mxu0 %v997
    %3101 = vmatpush1.msra.mxu0 %v996
    %3102 = vmatprep.subr.mxu0 %v1005
    %3103 = vmatpush1.msra.mxu0 %v1004
    %3104 = vmatprep.mubr.f32.mxu0 %v2813
    %3105 = vmatmul.mubr.f32.gmra.mrb[0].mxu0 %v2812
    %v3106 = vpop.f32.mrb[0].mxu0
    %v3107 = vadd.f32 0.0, %v3106
    %v3108 = vpop.f32.mrb[0].mxu0
    %v3109 = vadd.f32 0.0, %v3108
    %3110 = vdwg.mxu0
    %v3111 = vadd.f32 %v2819, %v2894
    %v3112 = vadd.f32 %v2820, %v2896
    %v3113 = vadd.f32 %v2821, %v2965
    %v3114 = vadd.f32 %v2822, %v2967
    %v3115 = vadd.f32 %v2823, %v3036
    %v3116 = vadd.f32 %v2824, %v3038
    %v3117 = vadd.f32 %v2825, %v3107
    %v3118 = vadd.f32 %v2826, %v3109
    %v3119 = vxor.u32 %v3111, 2147483648
    %v3120 = vxor.u32 %v3112, 2147483648
    %v3121 = vxor.u32 %v3113, 2147483648
    %v3122 = vxor.u32 %v3114, 2147483648
    %v3123 = vxor.u32 %v3115, 2147483648
    %v3124 = vxor.u32 %v3116, 2147483648
    %v3125 = vmul.f32 %v3119, 1.442695
    %v3126 = vpow.pop %v3125
    %v3127 = vmul.f32 %v3120, 1.442695
    %v3128 = vpow.pop %v3127
    %v3129 = vmul.f32 %v3121, 1.442695
    %v3130 = vpow.pop %v3129
    %v3131 = vmul.f32 %v3122, 1.442695
    %v3132 = vpow.pop %v3131
    %v3133 = vmul.f32 %v3123, 1.442695
    %v3134 = vpow.pop %v3133
    %v3135 = vmul.f32 %v3124, 1.442695
    %v3136 = vpow.pop %v3135
    %v3137 = vadd.f32 %v3126, 1.0
    %v3138 = vadd.f32 %v3128, 1.0
    %v3139 = vadd.f32 %v3130, 1.0
    %v3140 = vadd.f32 %v3132, 1.0
    %v3141 = vadd.f32 %v3134, 1.0
    %v3142 = vadd.f32 %v3136, 1.0
    %v3143 = vrcp.pop %v3137
    %v3144 = vmul.f32 1.0, %v3143
    %v3145 = vrcp.pop %v3138
    %v3146 = vmul.f32 1.0, %v3145
    %v3147 = vrcp.pop %v3139
    %v3148 = vmul.f32 1.0, %v3147
    %v3149 = vrcp.pop %v3140
    %v3150 = vmul.f32 1.0, %v3149
    %v3151 = vrcp.pop %v3141
    %v3152 = vmul.f32 1.0, %v3151
    %v3153 = vrcp.pop %v3142
    %v3154 = vmul.f32 1.0, %v3153
    %v3155 = vtanh.pop %v3117
    %v3156 = vtanh.pop %v3118
    %v3157 = vmul.f32 %v3148, %v2814
    %v3158 = vmul.f32 %v3150, %v2815
    %v3159 = vmul.f32 %v3144, %v3155
    %v3160 = vmul.f32 %v3146, %v3156
    %v3161 = vadd.f32 %v3157, %v3159
    %v3162 = vadd.f32 %v3158, %v3160
    %v3163 = vtanh.pop %v3161
    %v3164 = vtanh.pop %v3162
    %v3165 = vmul.f32 %v3152, %v3163
    %v3166 = vmul.f32 %v3154, %v3164
    %s3167 = smul.u32 5, 2
    %s3168 = smul.addr %s3167, 8
    %s3169 = scalar_lea.vmem [#allocation6], %s3168
    %v3170 = vld [vmem:[%s3169] sm:$0xff]
    %v3171 = vld [vmem:[%s3169 + $0x8] sm:$0xff]
    %vm3172 = vcmp.gt.f32.partialorder %v3170, 0.0
    %vm3173 = vcmp.gt.f32.partialorder %v3171, 0.0
    %v3174 = vsel %vm3172, %v3165, %v2812
    %v3175 = vsel %vm3173, %v3166, %v2813
    %v3176 = vsel %vm3172, %v3161, %v2814
    %v3177 = vsel %vm3173, %v3162, %v2815
    %s3178 = smul.u32 6, 8
    %s3179 = smul.addr %s3178, 8
    %s3180 = scalar_lea.vmem [#allocation2], %s3179
    %v3181 = vld [vmem:[%s3180] sm:$0xff]
    %v3182 = vld [vmem:[%s3180 + $0x8] sm:$0xff]
    %v3183 = vld [vmem:[%s3180 + $0x10] sm:$0xff]
    %v3184 = vld [vmem:[%s3180 + $0x18] sm:$0xff]
    %v3185 = vld [vmem:[%s3180 + $0x20] sm:$0xff]
    %v3186 = vld [vmem:[%s3180 + $0x28] sm:$0xff]
    %v3187 = vld [vmem:[%s3180 + $0x30] sm:$0xff]
    %v3188 = vld [vmem:[%s3180 + $0x38] sm:$0xff]
    %3189 = vmatprep.subr.mxu0 %v751
    %3190 = vmatpush1.msra.mxu0 %v750
    %3191 = vmatprep.subr.mxu0 %v759
    %3192 = vmatpush1.msra.mxu0 %v758
    %3193 = vmatprep.subr.mxu0 %v767
    %3194 = vmatpush1.msra.mxu0 %v766
    %3195 = vmatprep.subr.mxu0 %v775
    %3196 = vmatpush1.msra.mxu0 %v774
    %3197 = vmatprep.subr.mxu0 %v783
    %3198 = vmatpush1.msra.mxu0 %v782
    %3199 = vmatprep.subr.mxu0 %v791
    %3200 = vmatpush1.msra.mxu0 %v790
    %3201 = vmatprep.subr.mxu0 %v799
    %3202 = vmatpush1.msra.mxu0 %v798
    %3203 = vmatprep.subr.mxu0 %v807
    %3204 = vmatpush1.msra.mxu0 %v806
    %3205 = vmatprep.subr.mxu0 %v815
    %3206 = vmatpush1.msra.mxu0 %v814
    %3207 = vmatprep.subr.mxu0 %v823
    %3208 = vmatpush1.msra.mxu0 %v822
    %3209 = vmatprep.subr.mxu0 %v831
    %3210 = vmatpush1.msra.mxu0 %v830
    %3211 = vmatprep.subr.mxu0 %v839
    %3212 = vmatpush1.msra.mxu0 %v838
    %3213 = vmatprep.subr.mxu0 %v847
    %3214 = vmatpush1.msra.mxu0 %v846
    %3215 = vmatprep.subr.mxu0 %v855
    %3216 = vmatpush1.msra.mxu0 %v854
    %3217 = vmatprep.subr.mxu0 %v863
    %3218 = vmatpush1.msra.mxu0 %v862
    %3219 = vmatprep.subr.mxu0 %v871
    %3220 = vmatpush1.msra.mxu0 %v870
    %3221 = vmatprep.subr.mxu0 %v879
    %3222 = vmatpush1.msra.mxu0 %v878
    %3223 = vmatprep.subr.mxu0 %v887
    %3224 = vmatpush1.msra.mxu0 %v886
    %3225 = vmatprep.subr.mxu0 %v895
    %3226 = vmatpush1.msra.mxu0 %v894
    %3227 = vmatprep.subr.mxu0 %v903
    %3228 = vmatpush1.msra.mxu0 %v902
    %3229 = vmatprep.subr.mxu0 %v911
    %3230 = vmatpush1.msra.mxu0 %v910
    %3231 = vmatprep.subr.mxu0 %v919
    %3232 = vmatpush1.msra.mxu0 %v918
    %3233 = vmatprep.subr.mxu0 %v927
    %3234 = vmatpush1.msra.mxu0 %v926
    %3235 = vmatprep.subr.mxu0 %v935
    %3236 = vmatpush1.msra.mxu0 %v934
    %3237 = vmatprep.subr.mxu0 %v943
    %3238 = vmatpush1.msra.mxu0 %v942
    %3239 = vmatprep.subr.mxu0 %v951
    %3240 = vmatpush1.msra.mxu0 %v950
    %3241 = vmatprep.subr.mxu0 %v959
    %3242 = vmatpush1.msra.mxu0 %v958
    %3243 = vmatprep.subr.mxu0 %v967
    %3244 = vmatpush1.msra.mxu0 %v966
    %3245 = vmatprep.subr.mxu0 %v975
    %3246 = vmatpush1.msra.mxu0 %v974
    %3247 = vmatprep.subr.mxu0 %v983
    %3248 = vmatpush1.msra.mxu0 %v982
    %3249 = vmatprep.subr.mxu0 %v991
    %3250 = vmatpush1.msra.mxu0 %v990
    %3251 = vmatprep.subr.mxu0 %v999
    %3252 = vmatpush1.msra.mxu0 %v998
    %3253 = vmatprep.mubr.f32.mxu0 %v3175
    %3254 = vmatmul.mubr.f32.gmra.mrb[0].mxu0 %v3174
    %v3255 = vpop.f32.mrb[0].mxu0
    %v3256 = vadd.f32 0.0, %v3255
    %v3257 = vpop.f32.mrb[0].mxu0
    %v3258 = vadd.f32 0.0, %v3257
    %3259 = vdwg.mxu0
    %3260 = vmatprep.subr.mxu0 %v753
    %3261 = vmatpush1.msra.mxu0 %v752
    %3262 = vmatprep.subr.mxu0 %v761
    %3263 = vmatpush1.msra.mxu0 %v760
    %3264 = vmatprep.subr.mxu0 %v769
    %3265 = vmatpush1.msra.mxu0 %v768
    %3266 = vmatprep.subr.mxu0 %v777
    %3267 = vmatpush1.msra.mxu0 %v776
    %3268 = vmatprep.subr.mxu0 %v785
    %3269 = vmatpush1.msra.mxu0 %v784
    %3270 = vmatprep.subr.mxu0 %v793
    %3271 = vmatpush1.msra.mxu0 %v792
    %3272 = vmatprep.subr.mxu0 %v801
    %3273 = vmatpush1.msra.mxu0 %v800
    %3274 = vmatprep.subr.mxu0 %v809
    %3275 = vmatpush1.msra.mxu0 %v808
    %3276 = vmatprep.subr.mxu0 %v817
    %3277 = vmatpush1.msra.mxu0 %v816
    %3278 = vmatprep.subr.mxu0 %v825
    %3279 = vmatpush1.msra.mxu0 %v824
    %3280 = vmatprep.subr.mxu0 %v833
    %3281 = vmatpush1.msra.mxu0 %v832
    %3282 = vmatprep.subr.mxu0 %v841
    %3283 = vmatpush1.msra.mxu0 %v840
    %3284 = vmatprep.subr.mxu0 %v849
    %3285 = vmatpush1.msra.mxu0 %v848
    %3286 = vmatprep.subr.mxu0 %v857
    %3287 = vmatpush1.msra.mxu0 %v856
    %3288 = vmatprep.subr.mxu0 %v865
    %3289 = vmatpush1.msra.mxu0 %v864
    %3290 = vmatprep.subr.mxu0 %v873
    %3291 = vmatpush1.msra.mxu0 %v872
    %3292 = vmatprep.subr.mxu0 %v881
    %3293 = vmatpush1.msra.mxu0 %v880
    %3294 = vmatprep.subr.mxu0 %v889
    %3295 = vmatpush1.msra.mxu0 %v888
    %3296 = vmatprep.subr.mxu0 %v897
    %3297 = vmatpush1.msra.mxu0 %v896
    %3298 = vmatprep.subr.mxu0 %v905
    %3299 = vmatpush1.msra.mxu0 %v904
    %3300 = vmatprep.subr.mxu0 %v913
    %3301 = vmatpush1.msra.mxu0 %v912
    %3302 = vmatprep.subr.mxu0 %v921
    %3303 = vmatpush1.msra.mxu0 %v920
    %3304 = vmatprep.subr.mxu0 %v929
    %3305 = vmatpush1.msra.mxu0 %v928
    %3306 = vmatprep.subr.mxu0 %v937
    %3307 = vmatpush1.msra.mxu0 %v936
    %3308 = vmatprep.subr.mxu0 %v945
    %3309 = vmatpush1.msra.mxu0 %v944
    %3310 = vmatprep.subr.mxu0 %v953
    %3311 = vmatpush1.msra.mxu0 %v952
    %3312 = vmatprep.subr.mxu0 %v961
    %3313 = vmatpush1.msra.mxu0 %v960
    %3314 = vmatprep.subr.mxu0 %v969
    %3315 = vmatpush1.msra.mxu0 %v968
    %3316 = vmatprep.subr.mxu0 %v977
    %3317 = vmatpush1.msra.mxu0 %v976
    %3318 = vmatprep.subr.mxu0 %v985
    %3319 = vmatpush1.msra.mxu0 %v984
    %3320 = vmatprep.subr.mxu0 %v993
    %3321 = vmatpush1.msra.mxu0 %v992
    %3322 = vmatprep.subr.mxu0 %v1001
    %3323 = vmatpush1.msra.mxu0 %v1000
    %3324 = vmatprep.mubr.f32.mxu0 %v3175
    %3325 = vmatmul.mubr.f32.gmra.mrb[0].mxu0 %v3174
    %v3326 = vpop.f32.mrb[0].mxu0
    %v3327 = vadd.f32 0.0, %v3326
    %v3328 = vpop.f32.mrb[0].mxu0
    %v3329 = vadd.f32 0.0, %v3328
    %3330 = vdwg.mxu0
    %3331 = vmatprep.subr.mxu0 %v755
    %3332 = vmatpush1.msra.mxu0 %v754
    %3333 = vmatprep.subr.mxu0 %v763
    %3334 = vmatpush1.msra.mxu0 %v762
    %3335 = vmatprep.subr.mxu0 %v771
    %3336 = vmatpush1.msra.mxu0 %v770
    %3337 = vmatprep.subr.mxu0 %v779
    %3338 = vmatpush1.msra.mxu0 %v778
    %3339 = vmatprep.subr.mxu0 %v787
    %3340 = vmatpush1.msra.mxu0 %v786
    %3341 = vmatprep.subr.mxu0 %v795
    %3342 = vmatpush1.msra.mxu0 %v794
    %3343 = vmatprep.subr.mxu0 %v803
    %3344 = vmatpush1.msra.mxu0 %v802
    %3345 = vmatprep.subr.mxu0 %v811
    %3346 = vmatpush1.msra.mxu0 %v810
    %3347 = vmatprep.subr.mxu0 %v819
    %3348 = vmatpush1.msra.mxu0 %v818
    %3349 = vmatprep.subr.mxu0 %v827
    %3350 = vmatpush1.msra.mxu0 %v826
    %3351 = vmatprep.subr.mxu0 %v835
    %3352 = vmatpush1.msra.mxu0 %v834
    %3353 = vmatprep.subr.mxu0 %v843
    %3354 = vmatpush1.msra.mxu0 %v842
    %3355 = vmatprep.subr.mxu0 %v851
    %3356 = vmatpush1.msra.mxu0 %v850
    %3357 = vmatprep.subr.mxu0 %v859
    %3358 = vmatpush1.msra.mxu0 %v858
    %3359 = vmatprep.subr.mxu0 %v867
    %3360 = vmatpush1.msra.mxu0 %v866
    %3361 = vmatprep.subr.mxu0 %v875
    %3362 = vmatpush1.msra.mxu0 %v874
    %3363 = vmatprep.subr.mxu0 %v883
    %3364 = vmatpush1.msra.mxu0 %v882
    %3365 = vmatprep.subr.mxu0 %v891
    %3366 = vmatpush1.msra.mxu0 %v890
    %3367 = vmatprep.subr.mxu0 %v899
    %3368 = vmatpush1.msra.mxu0 %v898
    %3369 = vmatprep.subr.mxu0 %v907
    %3370 = vmatpush1.msra.mxu0 %v906
    %3371 = vmatprep.subr.mxu0 %v915
    %3372 = vmatpush1.msra.mxu0 %v914
    %3373 = vmatprep.subr.mxu0 %v923
    %3374 = vmatpush1.msra.mxu0 %v922
    %3375 = vmatprep.subr.mxu0 %v931
    %3376 = vmatpush1.msra.mxu0 %v930
    %3377 = vmatprep.subr.mxu0 %v939
    %3378 = vmatpush1.msra.mxu0 %v938
    %3379 = vmatprep.subr.mxu0 %v947
    %3380 = vmatpush1.msra.mxu0 %v946
    %3381 = vmatprep.subr.mxu0 %v955
    %3382 = vmatpush1.msra.mxu0 %v954
    %3383 = vmatprep.subr.mxu0 %v963
    %3384 = vmatpush1.msra.mxu0 %v962
    %3385 = vmatprep.subr.mxu0 %v971
    %3386 = vmatpush1.msra.mxu0 %v970
    %3387 = vmatprep.subr.mxu0 %v979
    %3388 = vmatpush1.msra.mxu0 %v978
    %3389 = vmatprep.subr.mxu0 %v987
    %3390 = vmatpush1.msra.mxu0 %v986
    %3391 = vmatprep.subr.mxu0 %v995
    %3392 = vmatpush1.msra.mxu0 %v994
    %3393 = vmatprep.subr.mxu0 %v1003
    %3394 = vmatpush1.msra.mxu0 %v1002
    %3395 = vmatprep.mubr.f32.mxu0 %v3175
    %3396 = vmatmul.mubr.f32.gmra.mrb[0].mxu0 %v3174
    %v3397 = vpop.f32.mrb[0].mxu0
    %v3398 = vadd.f32 0.0, %v3397
    %v3399 = vpop.f32.mrb[0].mxu0
    %v3400 = vadd.f32 0.0, %v3399
    %3401 = vdwg.mxu0
    %3402 = vmatprep.subr.mxu0 %v757
    %3403 = vmatpush1.msra.mxu0 %v756
    %3404 = vmatprep.subr.mxu0 %v765
    %3405 = vmatpush1.msra.mxu0 %v764
    %3406 = vmatprep.subr.mxu0 %v773
    %3407 = vmatpush1.msra.mxu0 %v772
    %3408 = vmatprep.subr.mxu0 %v781
    %3409 = vmatpush1.msra.mxu0 %v780
    %3410 = vmatprep.subr.mxu0 %v789
    %3411 = vmatpush1.msra.mxu0 %v788
    %3412 = vmatprep.subr.mxu0 %v797
    %3413 = vmatpush1.msra.mxu0 %v796
    %3414 = vmatprep.subr.mxu0 %v805
    %3415 = vmatpush1.msra.mxu0 %v804
    %3416 = vmatprep.subr.mxu0 %v813
    %3417 = vmatpush1.msra.mxu0 %v812
    %3418 = vmatprep.subr.mxu0 %v821
    %3419 = vmatpush1.msra.mxu0 %v820
    %3420 = vmatprep.subr.mxu0 %v829
    %3421 = vmatpush1.msra.mxu0 %v828
    %3422 = vmatprep.subr.mxu0 %v837
    %3423 = vmatpush1.msra.mxu0 %v836
    %3424 = vmatprep.subr.mxu0 %v845
    %3425 = vmatpush1.msra.mxu0 %v844
    %3426 = vmatprep.subr.mxu0 %v853
    %3427 = vmatpush1.msra.mxu0 %v852
    %3428 = vmatprep.subr.mxu0 %v861
    %3429 = vmatpush1.msra.mxu0 %v860
    %3430 = vmatprep.subr.mxu0 %v869
    %3431 = vmatpush1.msra.mxu0 %v868
    %3432 = vmatprep.subr.mxu0 %v877
    %3433 = vmatpush1.msra.mxu0 %v876
    %3434 = vmatprep.subr.mxu0 %v885
    %3435 = vmatpush1.msra.mxu0 %v884
    %3436 = vmatprep.subr.mxu0 %v893
    %3437 = vmatpush1.msra.mxu0 %v892
    %3438 = vmatprep.subr.mxu0 %v901
    %3439 = vmatpush1.msra.mxu0 %v900
    %3440 = vmatprep.subr.mxu0 %v909
    %3441 = vmatpush1.msra.mxu0 %v908
    %3442 = vmatprep.subr.mxu0 %v917
    %3443 = vmatpush1.msra.mxu0 %v916
    %3444 = vmatprep.subr.mxu0 %v925
    %3445 = vmatpush1.msra.mxu0 %v924
    %3446 = vmatprep.subr.mxu0 %v933
    %3447 = vmatpush1.msra.mxu0 %v932
    %3448 = vmatprep.subr.mxu0 %v941
    %3449 = vmatpush1.msra.mxu0 %v940
    %3450 = vmatprep.subr.mxu0 %v949
    %3451 = vmatpush1.msra.mxu0 %v948
    %3452 = vmatprep.subr.mxu0 %v957
    %3453 = vmatpush1.msra.mxu0 %v956
    %3454 = vmatprep.subr.mxu0 %v965
    %3455 = vmatpush1.msra.mxu0 %v964
    %3456 = vmatprep.subr.mxu0 %v973
    %3457 = vmatpush1.msra.mxu0 %v972
    %3458 = vmatprep.subr.mxu0 %v981
    %3459 = vmatpush1.msra.mxu0 %v980
    %3460 = vmatprep.subr.mxu0 %v989
    %3461 = vmatpush1.msra.mxu0 %v988
    %3462 = vmatprep.subr.mxu0 %v997
    %3463 = vmatpush1.msra.mxu0 %v996
    %3464 = vmatprep.subr.mxu0 %v1005
    %3465 = vmatpush1.msra.mxu0 %v1004
    %3466 = vmatprep.mubr.f32.mxu0 %v3175
    %3467 = vmatmul.mubr.f32.gmra.mrb[0].mxu0 %v3174
    %v3468 = vpop.f32.mrb[0].mxu0
    %v3469 = vadd.f32 0.0, %v3468
    %v3470 = vpop.f32.mrb[0].mxu0
    %v3471 = vadd.f32 0.0, %v3470
    %3472 = vdwg.mxu0
    %v3473 = vadd.f32 %v3181, %v3256
    %v3474 = vadd.f32 %v3182, %v3258
    %v3475 = vadd.f32 %v3183, %v3327
    %v3476 = vadd.f32 %v3184, %v3329
    %v3477 = vadd.f32 %v3185, %v3398
    %v3478 = vadd.f32 %v3186, %v3400
    %v3479 = vadd.f32 %v3187, %v3469
    %v3480 = vadd.f32 %v3188, %v3471
    %v3481 = vxor.u32 %v3473, 2147483648
    %v3482 = vxor.u32 %v3474, 2147483648
    %v3483 = vxor.u32 %v3475, 2147483648
    %v3484 = vxor.u32 %v3476, 2147483648
    %v3485 = vxor.u32 %v3477, 2147483648
    %v3486 = vxor.u32 %v3478, 2147483648
    %v3487 = vmul.f32 %v3481, 1.442695
    %v3488 = vpow.pop %v3487
    %v3489 = vmul.f32 %v3482, 1.442695
    %v3490 = vpow.pop %v3489
    %v3491 = vmul.f32 %v3483, 1.442695
    %v3492 = vpow.pop %v3491
    %v3493 = vmul.f32 %v3484, 1.442695
    %v3494 = vpow.pop %v3493
    %v3495 = vmul.f32 %v3485, 1.442695
    %v3496 = vpow.pop %v3495
    %v3497 = vmul.f32 %v3486, 1.442695
    %v3498 = vpow.pop %v3497
    %v3499 = vadd.f32 %v3488, 1.0
    %v3500 = vadd.f32 %v3490, 1.0
    %v3501 = vadd.f32 %v3492, 1.0
    %v3502 = vadd.f32 %v3494, 1.0
    %v3503 = vadd.f32 %v3496, 1.0
    %v3504 = vadd.f32 %v3498, 1.0
    %v3505 = vrcp.pop %v3499
    %v3506 = vmul.f32 1.0, %v3505
    %v3507 = vrcp.pop %v3500
    %v3508 = vmul.f32 1.0, %v3507
    %v3509 = vrcp.pop %v3501
    %v3510 = vmul.f32 1.0, %v3509
    %v3511 = vrcp.pop %v3502
    %v3512 = vmul.f32 1.0, %v3511
    %v3513 = vrcp.pop %v3503
    %v3514 = vmul.f32 1.0, %v3513
    %v3515 = vrcp.pop %v3504
    %v3516 = vmul.f32 1.0, %v3515
    %v3517 = vtanh.pop %v3479
    %v3518 = vtanh.pop %v3480
    %v3519 = vmul.f32 %v3510, %v3176
    %v3520 = vmul.f32 %v3512, %v3177
    %v3521 = vmul.f32 %v3506, %v3517
    %v3522 = vmul.f32 %v3508, %v3518
    %v3523 = vadd.f32 %v3519, %v3521
    %v3524 = vadd.f32 %v3520, %v3522
    %v3525 = vtanh.pop %v3523
    %v3526 = vtanh.pop %v3524
    %v3527 = vmul.f32 %v3514, %v3525
    %v3528 = vmul.f32 %v3516, %v3526
    %s3529 = smul.u32 6, 2
    %s3530 = smul.addr %s3529, 8
    %s3531 = scalar_lea.vmem [#allocation6], %s3530
    %v3532 = vld [vmem:[%s3531] sm:$0xff]
    %v3533 = vld [vmem:[%s3531 + $0x8] sm:$0xff]
    %vm3534 = vcmp.gt.f32.partialorder %v3532, 0.0
    %vm3535 = vcmp.gt.f32.partialorder %v3533, 0.0
    %v3536 = vsel %vm3534, %v3527, %v3174
    %v3537 = vsel %vm3535, %v3528, %v3175
    %v3538 = vsel %vm3534, %v3523, %v3176
    %v3539 = vsel %vm3535, %v3524, %v3177
    %s3540 = smul.u32 7, 8
    %s3541 = smul.addr %s3540, 8
    %s3542 = scalar_lea.vmem [#allocation2], %s3541
    %v3543 = vld [vmem:[%s3542] sm:$0xff]
    %v3544 = vld [vmem:[%s3542 + $0x8] sm:$0xff]
    %v3545 = vld [vmem:[%s3542 + $0x10] sm:$0xff]
    %v3546 = vld [vmem:[%s3542 + $0x18] sm:$0xff]
    %v3547 = vld [vmem:[%s3542 + $0x20] sm:$0xff]
    %v3548 = vld [vmem:[%s3542 + $0x28] sm:$0xff]
    %v3549 = vld [vmem:[%s3542 + $0x30] sm:$0xff]
    %v3550 = vld [vmem:[%s3542 + $0x38] sm:$0xff]
    %3551 = vmatprep.subr.mxu0 %v751
    %3552 = vmatpush1.msra.mxu0 %v750
    %3553 = vmatprep.subr.mxu0 %v759
    %3554 = vmatpush1.msra.mxu0 %v758
    %3555 = vmatprep.subr.mxu0 %v767
    %3556 = vmatpush1.msra.mxu0 %v766
    %3557 = vmatprep.subr.mxu0 %v775
    %3558 = vmatpush1.msra.mxu0 %v774
    %3559 = vmatprep.subr.mxu0 %v783
    %3560 = vmatpush1.msra.mxu0 %v782
    %3561 = vmatprep.subr.mxu0 %v791
    %3562 = vmatpush1.msra.mxu0 %v790
    %3563 = vmatprep.subr.mxu0 %v799
    %3564 = vmatpush1.msra.mxu0 %v798
    %3565 = vmatprep.subr.mxu0 %v807
    %3566 = vmatpush1.msra.mxu0 %v806
    %3567 = vmatprep.subr.mxu0 %v815
    %3568 = vmatpush1.msra.mxu0 %v814
    %3569 = vmatprep.subr.mxu0 %v823
    %3570 = vmatpush1.msra.mxu0 %v822
    %3571 = vmatprep.subr.mxu0 %v831
    %3572 = vmatpush1.msra.mxu0 %v830
    %3573 = vmatprep.subr.mxu0 %v839
    %3574 = vmatpush1.msra.mxu0 %v838
    %3575 = vmatprep.subr.mxu0 %v847
    %3576 = vmatpush1.msra.mxu0 %v846
    %3577 = vmatprep.subr.mxu0 %v855
    %3578 = vmatpush1.msra.mxu0 %v854
    %3579 = vmatprep.subr.mxu0 %v863
    %3580 = vmatpush1.msra.mxu0 %v862
    %3581 = vmatprep.subr.mxu0 %v871
    %3582 = vmatpush1.msra.mxu0 %v870
    %3583 = vmatprep.subr.mxu0 %v879
    %3584 = vmatpush1.msra.mxu0 %v878
    %3585 = vmatprep.subr.mxu0 %v887
    %3586 = vmatpush1.msra.mxu0 %v886
    %3587 = vmatprep.subr.mxu0 %v895
    %3588 = vmatpush1.msra.mxu0 %v894
    %3589 = vmatprep.subr.mxu0 %v903
    %3590 = vmatpush1.msra.mxu0 %v902
    %3591 = vmatprep.subr.mxu0 %v911
    %3592 = vmatpush1.msra.mxu0 %v910
    %3593 = vmatprep.subr.mxu0 %v919
    %3594 = vmatpush1.msra.mxu0 %v918
    %3595 = vmatprep.subr.mxu0 %v927
    %3596 = vmatpush1.msra.mxu0 %v926
    %3597 = vmatprep.subr.mxu0 %v935
    %3598 = vmatpush1.msra.mxu0 %v934
    %3599 = vmatprep.subr.mxu0 %v943
    %3600 = vmatpush1.msra.mxu0 %v942
    %3601 = vmatprep.subr.mxu0 %v951
    %3602 = vmatpush1.msra.mxu0 %v950
    %3603 = vmatprep.subr.mxu0 %v959
    %3604 = vmatpush1.msra.mxu0 %v958
    %3605 = vmatprep.subr.mxu0 %v967
    %3606 = vmatpush1.msra.mxu0 %v966
    %3607 = vmatprep.subr.mxu0 %v975
    %3608 = vmatpush1.msra.mxu0 %v974
    %3609 = vmatprep.subr.mxu0 %v983
    %3610 = vmatpush1.msra.mxu0 %v982
    %3611 = vmatprep.subr.mxu0 %v991
    %3612 = vmatpush1.msra.mxu0 %v990
    %3613 = vmatprep.subr.mxu0 %v999
    %3614 = vmatpush1.msra.mxu0 %v998
    %3615 = vmatprep.mubr.f32.mxu0 %v3537
    %3616 = vmatmul.mubr.f32.gmra.mrb[0].mxu0 %v3536
    %v3617 = vpop.f32.mrb[0].mxu0
    %v3618 = vadd.f32 0.0, %v3617
    %v3619 = vpop.f32.mrb[0].mxu0
    %v3620 = vadd.f32 0.0, %v3619
    %3621 = vdwg.mxu0
    %3622 = vmatprep.subr.mxu0 %v753
    %3623 = vmatpush1.msra.mxu0 %v752
    %3624 = vmatprep.subr.mxu0 %v761
    %3625 = vmatpush1.msra.mxu0 %v760
    %3626 = vmatprep.subr.mxu0 %v769
    %3627 = vmatpush1.msra.mxu0 %v768
    %3628 = vmatprep.subr.mxu0 %v777
    %3629 = vmatpush1.msra.mxu0 %v776
    %3630 = vmatprep.subr.mxu0 %v785
    %3631 = vmatpush1.msra.mxu0 %v784
    %3632 = vmatprep.subr.mxu0 %v793
    %3633 = vmatpush1.msra.mxu0 %v792
    %3634 = vmatprep.subr.mxu0 %v801
    %3635 = vmatpush1.msra.mxu0 %v800
    %3636 = vmatprep.subr.mxu0 %v809
    %3637 = vmatpush1.msra.mxu0 %v808
    %3638 = vmatprep.subr.mxu0 %v817
    %3639 = vmatpush1.msra.mxu0 %v816
    %3640 = vmatprep.subr.mxu0 %v825
    %3641 = vmatpush1.msra.mxu0 %v824
    %3642 = vmatprep.subr.mxu0 %v833
    %3643 = vmatpush1.msra.mxu0 %v832
    %3644 = vmatprep.subr.mxu0 %v841
    %3645 = vmatpush1.msra.mxu0 %v840
    %3646 = vmatprep.subr.mxu0 %v849
    %3647 = vmatpush1.msra.mxu0 %v848
    %3648 = vmatprep.subr.mxu0 %v857
    %3649 = vmatpush1.msra.mxu0 %v856
    %3650 = vmatprep.subr.mxu0 %v865
    %3651 = vmatpush1.msra.mxu0 %v864
    %3652 = vmatprep.subr.mxu0 %v873
    %3653 = vmatpush1.msra.mxu0 %v872
    %3654 = vmatprep.subr.mxu0 %v881
    %3655 = vmatpush1.msra.mxu0 %v880
    %3656 = vmatprep.subr.mxu0 %v889
    %3657 = vmatpush1.msra.mxu0 %v888
    %3658 = vmatprep.subr.mxu0 %v897
    %3659 = vmatpush1.msra.mxu0 %v896
    %3660 = vmatprep.subr.mxu0 %v905
    %3661 = vmatpush1.msra.mxu0 %v904
    %3662 = vmatprep.subr.mxu0 %v913
    %3663 = vmatpush1.msra.mxu0 %v912
    %3664 = vmatprep.subr.mxu0 %v921
    %3665 = vmatpush1.msra.mxu0 %v920
    %3666 = vmatprep.subr.mxu0 %v929
    %3667 = vmatpush1.msra.mxu0 %v928
    %3668 = vmatprep.subr.mxu0 %v937
    %3669 = vmatpush1.msra.mxu0 %v936
    %3670 = vmatprep.subr.mxu0 %v945
    %3671 = vmatpush1.msra.mxu0 %v944
    %3672 = vmatprep.subr.mxu0 %v953
    %3673 = vmatpush1.msra.mxu0 %v952
    %3674 = vmatprep.subr.mxu0 %v961
    %3675 = vmatpush1.msra.mxu0 %v960
    %3676 = vmatprep.subr.mxu0 %v969
    %3677 = vmatpush1.msra.mxu0 %v968
    %3678 = vmatprep.subr.mxu0 %v977
    %3679 = vmatpush1.msra.mxu0 %v976
    %3680 = vmatprep.subr.mxu0 %v985
    %3681 = vmatpush1.msra.mxu0 %v984
    %3682 = vmatprep.subr.mxu0 %v993
    %3683 = vmatpush1.msra.mxu0 %v992
    %3684 = vmatprep.subr.mxu0 %v1001
    %3685 = vmatpush1.msra.mxu0 %v1000
    %3686 = vmatprep.mubr.f32.mxu0 %v3537
    %3687 = vmatmul.mubr.f32.gmra.mrb[0].mxu0 %v3536
    %v3688 = vpop.f32.mrb[0].mxu0
    %v3689 = vadd.f32 0.0, %v3688
    %v3690 = vpop.f32.mrb[0].mxu0
    %v3691 = vadd.f32 0.0, %v3690
    %3692 = vdwg.mxu0
    %3693 = vmatprep.subr.mxu0 %v755
    %3694 = vmatpush1.msra.mxu0 %v754
    %3695 = vmatprep.subr.mxu0 %v763
    %3696 = vmatpush1.msra.mxu0 %v762
    %3697 = vmatprep.subr.mxu0 %v771
    %3698 = vmatpush1.msra.mxu0 %v770
    %3699 = vmatprep.subr.mxu0 %v779
    %3700 = vmatpush1.msra.mxu0 %v778
    %3701 = vmatprep.subr.mxu0 %v787
    %3702 = vmatpush1.msra.mxu0 %v786
    %3703 = vmatprep.subr.mxu0 %v795
    %3704 = vmatpush1.msra.mxu0 %v794
    %3705 = vmatprep.subr.mxu0 %v803
    %3706 = vmatpush1.msra.mxu0 %v802
    %3707 = vmatprep.subr.mxu0 %v811
    %3708 = vmatpush1.msra.mxu0 %v810
    %3709 = vmatprep.subr.mxu0 %v819
    %3710 = vmatpush1.msra.mxu0 %v818
    %3711 = vmatprep.subr.mxu0 %v827
    %3712 = vmatpush1.msra.mxu0 %v826
    %3713 = vmatprep.subr.mxu0 %v835
    %3714 = vmatpush1.msra.mxu0 %v834
    %3715 = vmatprep.subr.mxu0 %v843
    %3716 = vmatpush1.msra.mxu0 %v842
    %3717 = vmatprep.subr.mxu0 %v851
    %3718 = vmatpush1.msra.mxu0 %v850
    %3719 = vmatprep.subr.mxu0 %v859
    %3720 = vmatpush1.msra.mxu0 %v858
    %3721 = vmatprep.subr.mxu0 %v867
    %3722 = vmatpush1.msra.mxu0 %v866
    %3723 = vmatprep.subr.mxu0 %v875
    %3724 = vmatpush1.msra.mxu0 %v874
    %3725 = vmatprep.subr.mxu0 %v883
    %3726 = vmatpush1.msra.mxu0 %v882
    %3727 = vmatprep.subr.mxu0 %v891
    %3728 = vmatpush1.msra.mxu0 %v890
    %3729 = vmatprep.subr.mxu0 %v899
    %3730 = vmatpush1.msra.mxu0 %v898
    %3731 = vmatprep.subr.mxu0 %v907
    %3732 = vmatpush1.msra.mxu0 %v906
    %3733 = vmatprep.subr.mxu0 %v915
    %3734 = vmatpush1.msra.mxu0 %v914
    %3735 = vmatprep.subr.mxu0 %v923
    %3736 = vmatpush1.msra.mxu0 %v922
    %3737 = vmatprep.subr.mxu0 %v931
    %3738 = vmatpush1.msra.mxu0 %v930
    %3739 = vmatprep.subr.mxu0 %v939
    %3740 = vmatpush1.msra.mxu0 %v938
    %3741 = vmatprep.subr.mxu0 %v947
    %3742 = vmatpush1.msra.mxu0 %v946
    %3743 = vmatprep.subr.mxu0 %v955
    %3744 = vmatpush1.msra.mxu0 %v954
    %3745 = vmatprep.subr.mxu0 %v963
    %3746 = vmatpush1.msra.mxu0 %v962
    %3747 = vmatprep.subr.mxu0 %v971
    %3748 = vmatpush1.msra.mxu0 %v970
    %3749 = vmatprep.subr.mxu0 %v979
    %3750 = vmatpush1.msra.mxu0 %v978
    %3751 = vmatprep.subr.mxu0 %v987
    %3752 = vmatpush1.msra.mxu0 %v986
    %3753 = vmatprep.subr.mxu0 %v995
    %3754 = vmatpush1.msra.mxu0 %v994
    %3755 = vmatprep.subr.mxu0 %v1003
    %3756 = vmatpush1.msra.mxu0 %v1002
    %3757 = vmatprep.mubr.f32.mxu0 %v3537
    %3758 = vmatmul.mubr.f32.gmra.mrb[0].mxu0 %v3536
    %v3759 = vpop.f32.mrb[0].mxu0
    %v3760 = vadd.f32 0.0, %v3759
    %v3761 = vpop.f32.mrb[0].mxu0
    %v3762 = vadd.f32 0.0, %v3761
    %3763 = vdwg.mxu0
    %3764 = vmatprep.subr.mxu0 %v757
    %3765 = vmatpush1.msra.mxu0 %v756
    %3766 = vmatprep.subr.mxu0 %v765
    %3767 = vmatpush1.msra.mxu0 %v764
    %3768 = vmatprep.subr.mxu0 %v773
    %3769 = vmatpush1.msra.mxu0 %v772
    %3770 = vmatprep.subr.mxu0 %v781
    %3771 = vmatpush1.msra.mxu0 %v780
    %3772 = vmatprep.subr.mxu0 %v789
    %3773 = vmatpush1.msra.mxu0 %v788
    %3774 = vmatprep.subr.mxu0 %v797
    %3775 = vmatpush1.msra.mxu0 %v796
    %3776 = vmatprep.subr.mxu0 %v805
    %3777 = vmatpush1.msra.mxu0 %v804
    %3778 = vmatprep.subr.mxu0 %v813
    %3779 = vmatpush1.msra.mxu0 %v812
    %3780 = vmatprep.subr.mxu0 %v821
    %3781 = vmatpush1.msra.mxu0 %v820
    %3782 = vmatprep.subr.mxu0 %v829
    %3783 = vmatpush1.msra.mxu0 %v828
    %3784 = vmatprep.subr.mxu0 %v837
    %3785 = vmatpush1.msra.mxu0 %v836
    %3786 = vmatprep.subr.mxu0 %v845
    %3787 = vmatpush1.msra.mxu0 %v844
    %3788 = vmatprep.subr.mxu0 %v853
    %3789 = vmatpush1.msra.mxu0 %v852
    %3790 = vmatprep.subr.mxu0 %v861
    %3791 = vmatpush1.msra.mxu0 %v860
    %3792 = vmatprep.subr.mxu0 %v869
    %3793 = vmatpush1.msra.mxu0 %v868
    %3794 = vmatprep.subr.mxu0 %v877
    %3795 = vmatpush1.msra.mxu0 %v876
    %3796 = vmatprep.subr.mxu0 %v885
    %3797 = vmatpush1.msra.mxu0 %v884
    %3798 = vmatprep.subr.mxu0 %v893
    %3799 = vmatpush1.msra.mxu0 %v892
    %3800 = vmatprep.subr.mxu0 %v901
    %3801 = vmatpush1.msra.mxu0 %v900
    %3802 = vmatprep.subr.mxu0 %v909
    %3803 = vmatpush1.msra.mxu0 %v908
    %3804 = vmatprep.subr.mxu0 %v917
    %3805 = vmatpush1.msra.mxu0 %v916
    %3806 = vmatprep.subr.mxu0 %v925
    %3807 = vmatpush1.msra.mxu0 %v924
    %3808 = vmatprep.subr.mxu0 %v933
    %3809 = vmatpush1.msra.mxu0 %v932
    %3810 = vmatprep.subr.mxu0 %v941
    %3811 = vmatpush1.msra.mxu0 %v940
    %3812 = vmatprep.subr.mxu0 %v949
    %3813 = vmatpush1.msra.mxu0 %v948
    %3814 = vmatprep.subr.mxu0 %v957
    %3815 = vmatpush1.msra.mxu0 %v956
    %3816 = vmatprep.subr.mxu0 %v965
    %3817 = vmatpush1.msra.mxu0 %v964
    %3818 = vmatprep.subr.mxu0 %v973
    %3819 = vmatpush1.msra.mxu0 %v972
    %3820 = vmatprep.subr.mxu0 %v981
    %3821 = vmatpush1.msra.mxu0 %v980
    %3822 = vmatprep.subr.mxu0 %v989
    %3823 = vmatpush1.msra.mxu0 %v988
    %3824 = vmatprep.subr.mxu0 %v997
    %3825 = vmatpush1.msra.mxu0 %v996
    %3826 = vmatprep.subr.mxu0 %v1005
    %3827 = vmatpush1.msra.mxu0 %v1004
    %3828 = vmatprep.mubr.f32.mxu0 %v3537
    %3829 = vmatmul.mubr.f32.gmra.mrb[0].mxu0 %v3536
    %v3830 = vpop.f32.mrb[0].mxu0
    %v3831 = vadd.f32 0.0, %v3830
    %v3832 = vpop.f32.mrb[0].mxu0
    %v3833 = vadd.f32 0.0, %v3832
    %3834 = vdwg.mxu0
    %v3835 = vadd.f32 %v3543, %v3618
    %v3836 = vadd.f32 %v3544, %v3620
    %v3837 = vadd.f32 %v3545, %v3689
    %v3838 = vadd.f32 %v3546, %v3691
    %v3839 = vadd.f32 %v3547, %v3760
    %v3840 = vadd.f32 %v3548, %v3762
    %v3841 = vadd.f32 %v3549, %v3831
    %v3842 = vadd.f32 %v3550, %v3833
    %v3843 = vxor.u32 %v3835, 2147483648
    %v3844 = vxor.u32 %v3836, 2147483648
    %v3845 = vxor.u32 %v3837, 2147483648
    %v3846 = vxor.u32 %v3838, 2147483648
    %v3847 = vxor.u32 %v3839, 2147483648
    %v3848 = vxor.u32 %v3840, 2147483648
    %v3849 = vmul.f32 %v3843, 1.442695
    %v3850 = vpow.pop %v3849
    %v3851 = vmul.f32 %v3844, 1.442695
    %v3852 = vpow.pop %v3851
    %v3853 = vmul.f32 %v3845, 1.442695
    %v3854 = vpow.pop %v3853
    %v3855 = vmul.f32 %v3846, 1.442695
    %v3856 = vpow.pop %v3855
    %v3857 = vmul.f32 %v3847, 1.442695
    %v3858 = vpow.pop %v3857
    %v3859 = vmul.f32 %v3848, 1.442695
    %v3860 = vpow.pop %v3859
    %v3861 = vadd.f32 %v3850, 1.0
    %v3862 = vadd.f32 %v3852, 1.0
    %v3863 = vadd.f32 %v3854, 1.0
    %v3864 = vadd.f32 %v3856, 1.0
    %v3865 = vadd.f32 %v3858, 1.0
    %v3866 = vadd.f32 %v3860, 1.0
    %v3867 = vrcp.pop %v3861
    %v3868 = vmul.f32 1.0, %v3867
    %v3869 = vrcp.pop %v3862
    %v3870 = vmul.f32 1.0, %v3869
    %v3871 = vrcp.pop %v3863
    %v3872 = vmul.f32 1.0, %v3871
    %v3873 = vrcp.pop %v3864
    %v3874 = vmul.f32 1.0, %v3873
    %v3875 = vrcp.pop %v3865
    %v3876 = vmul.f32 1.0, %v3875
    %v3877 = vrcp.pop %v3866
    %v3878 = vmul.f32 1.0, %v3877
    %v3879 = vtanh.pop %v3841
    %v3880 = vtanh.pop %v3842
    %v3881 = vmul.f32 %v3872, %v3538
    %v3882 = vmul.f32 %v3874, %v3539
    %v3883 = vmul.f32 %v3868, %v3879
    %v3884 = vmul.f32 %v3870, %v3880
    %v3885 = vadd.f32 %v3881, %v3883
    %v3886 = vadd.f32 %v3882, %v3884
    %v3887 = vtanh.pop %v3885
    %v3888 = vtanh.pop %v3886
    %v3889 = vmul.f32 %v3876, %v3887
    %v3890 = vmul.f32 %v3878, %v3888
    %s3891 = smul.u32 7, 2
    %s3892 = smul.addr %s3891, 8
    %s3893 = scalar_lea.vmem [#allocation6], %s3892
    %v3894 = vld [vmem:[%s3893] sm:$0xff]
    %v3895 = vld [vmem:[%s3893 + $0x8] sm:$0xff]
    %vm3896 = vcmp.gt.f32.partialorder %v3894, 0.0
    %vm3897 = vcmp.gt.f32.partialorder %v3895, 0.0
    %v3898 = vsel %vm3896, %v3889, %v3536
    %v3899 = vsel %vm3897, %v3890, %v3537
    %v3900 = vld [vmem:[#allocation11] sm:$0xff]
    %v3901 = vld [vmem:[#allocation11 + $0x8] sm:$0xff]
    %v3902 = vld [vmem:[#allocation11 + $0x10] sm:$0xff]
    %v3903 = vld [vmem:[#allocation11 + $0x18] sm:$0xff]
    %v3904 = vld [vmem:[#allocation11 + $0x20] sm:$0xff]
    %v3905 = vld [vmem:[#allocation11 + $0x28] sm:$0xff]
    %v3906 = vld [vmem:[#allocation11 + $0x30] sm:$0xff]
    %v3907 = vld [vmem:[#allocation11 + $0x38] sm:$0xff]
    %v3908 = vld [vmem:[#allocation11 + $0x40] sm:$0xff]
    %v3909 = vld [vmem:[#allocation11 + $0x48] sm:$0xff]
    %v3910 = vld [vmem:[#allocation11 + $0x50] sm:$0xff]
    %v3911 = vld [vmem:[#allocation11 + $0x58] sm:$0xff]
    %v3912 = vld [vmem:[#allocation11 + $0x60] sm:$0xff]
    %v3913 = vld [vmem:[#allocation11 + $0x68] sm:$0xff]
    %v3914 = vld [vmem:[#allocation11 + $0x70] sm:$0xff]
    %v3915 = vld [vmem:[#allocation11 + $0x78] sm:$0xff]
    %v3916 = vld [vmem:[#allocation11 + $0x80] sm:$0xff]
    %v3917 = vld [vmem:[#allocation11 + $0x88] sm:$0xff]
    %v3918 = vld [vmem:[#allocation11 + $0x90] sm:$0xff]
    %v3919 = vld [vmem:[#allocation11 + $0x98] sm:$0xff]
    %v3920 = vld [vmem:[#allocation11 + $0xa0] sm:$0xff]
    %v3921 = vld [vmem:[#allocation11 + $0xa8] sm:$0xff]
    %v3922 = vld [vmem:[#allocation11 + $0xb0] sm:$0xff]
    %v3923 = vld [vmem:[#allocation11 + $0xb8] sm:$0xff]
    %v3924 = vld [vmem:[#allocation11 + $0xc0] sm:$0xff]
    %v3925 = vld [vmem:[#allocation11 + $0xc8] sm:$0xff]
    %v3926 = vld [vmem:[#allocation11 + $0xd0] sm:$0xff]
    %v3927 = vld [vmem:[#allocation11 + $0xd8] sm:$0xff]
    %v3928 = vld [vmem:[#allocation11 + $0xe0] sm:$0xff]
    %v3929 = vld [vmem:[#allocation11 + $0xe8] sm:$0xff]
    %v3930 = vld [vmem:[#allocation11 + $0xf0] sm:$0xff]
    %v3931 = vld [vmem:[#allocation11 + $0xf8] sm:$0xff]
    %v3932 = vld [vmem:[%s6] sm:$0x1]
    %v3934 = vlaneseq
    %v3935 = vshrl.u32 %v3934, 7
    %v3936 = vsub.s32 0, %v3935
    %v3937 = vrot.slane %v3932, %v3936
    %3939 = vmatprep.subr.mxu0 0.0
    %3940 = vmatpush1.msra.mxu0 %v3900
    %3941 = vmatprep.subr.mxu0 0.0
    %3942 = vmatpush1.msra.mxu0 %v3901
    %3943 = vmatprep.subr.mxu0 0.0
    %3944 = vmatpush1.msra.mxu0 %v3902
    %3945 = vmatprep.subr.mxu0 0.0
    %3946 = vmatpush1.msra.mxu0 %v3903
    %3947 = vmatprep.subr.mxu0 0.0
    %3948 = vmatpush1.msra.mxu0 %v3904
    %3949 = vmatprep.subr.mxu0 0.0
    %3950 = vmatpush1.msra.mxu0 %v3905
    %3951 = vmatprep.subr.mxu0 0.0
    %3952 = vmatpush1.msra.mxu0 %v3906
    %3953 = vmatprep.subr.mxu0 0.0
    %3954 = vmatpush1.msra.mxu0 %v3907
    %3955 = vmatprep.subr.mxu0 0.0
    %3956 = vmatpush1.msra.mxu0 %v3908
    %3957 = vmatprep.subr.mxu0 0.0
    %3958 = vmatpush1.msra.mxu0 %v3909
    %3959 = vmatprep.subr.mxu0 0.0
    %3960 = vmatpush1.msra.mxu0 %v3910
    %3961 = vmatprep.subr.mxu0 0.0
    %3962 = vmatpush1.msra.mxu0 %v3911
    %3963 = vmatprep.subr.mxu0 0.0
    %3964 = vmatpush1.msra.mxu0 %v3912
    %3965 = vmatprep.subr.mxu0 0.0
    %3966 = vmatpush1.msra.mxu0 %v3913
    %3967 = vmatprep.subr.mxu0 0.0
    %3968 = vmatpush1.msra.mxu0 %v3914
    %3969 = vmatprep.subr.mxu0 0.0
    %3970 = vmatpush1.msra.mxu0 %v3915
    %3971 = vmatprep.subr.mxu0 0.0
    %3972 = vmatpush1.msra.mxu0 %v3916
    %3973 = vmatprep.subr.mxu0 0.0
    %3974 = vmatpush1.msra.mxu0 %v3917
    %3975 = vmatprep.subr.mxu0 0.0
    %3976 = vmatpush1.msra.mxu0 %v3918
    %3977 = vmatprep.subr.mxu0 0.0
    %3978 = vmatpush1.msra.mxu0 %v3919
    %3979 = vmatprep.subr.mxu0 0.0
    %3980 = vmatpush1.msra.mxu0 %v3920
    %3981 = vmatprep.subr.mxu0 0.0
    %3982 = vmatpush1.msra.mxu0 %v3921
    %3983 = vmatprep.subr.mxu0 0.0
    %3984 = vmatpush1.msra.mxu0 %v3922
    %3985 = vmatprep.subr.mxu0 0.0
    %3986 = vmatpush1.msra.mxu0 %v3923
    %3987 = vmatprep.subr.mxu0 0.0
    %3988 = vmatpush1.msra.mxu0 %v3924
    %3989 = vmatprep.subr.mxu0 0.0
    %3990 = vmatpush1.msra.mxu0 %v3925
    %3991 = vmatprep.subr.mxu0 0.0
    %3992 = vmatpush1.msra.mxu0 %v3926
    %3993 = vmatprep.subr.mxu0 0.0
    %3994 = vmatpush1.msra.mxu0 %v3927
    %3995 = vmatprep.subr.mxu0 0.0
    %3996 = vmatpush1.msra.mxu0 %v3928
    %3997 = vmatprep.subr.mxu0 0.0
    %3998 = vmatpush1.msra.mxu0 %v3929
    %3999 = vmatprep.subr.mxu0 0.0
    %4000 = vmatpush1.msra.mxu0 %v3930
    %4001 = vmatprep.subr.mxu0 0.0
    %4002 = vmatpush1.msra.mxu0 %v3931
    %4003 = vmatprep.mubr.f32.mxu0 %v3899
    %4004 = vmatmul.mubr.f32.gmra.mrb[0].mxu0 %v3898
    %v4005 = vpop.f32.mrb[0].mxu0
    %v4006 = vadd.f32 %v3937, %v4005
    %v4007 = vpop.f32.mrb[0].mxu0
    %4008 = vdwg.mxu0
    %4009 = vst [vmem:[#allocation12] sm:$0xff] %v4006
    // Predicated region
    $region50: #{tpu_custom_call.1} parent=1 // pred_check
      _
    $region51: #{tpu_custom_call.1} parent=1 // pred_check_branch
      %4011 = sbr.rel (0) target = $region53
    $region52: #{tpu_custom_call.1} parent=1 // pred_region
      %s4013 = ssub.s32 128, 128
      %4014 = vsyncadd [#allocation5], %s4013
      %s4016 = sshll.u32 [#allocation12], 4
      %s4017 = int_to_ptr.vmem [resolvable:$true] %s4016
      %4019 = dma.vmem_to_hbm [thread:$0]  %s4017, 128, %s7, [#allocation5]
    $region53: #{tpu_custom_call.1} parent=1 // pred_fallthru
      _
    // Predicated region
    $region54: #{tpu_custom_call.1} parent=1 // pred_check
      _
    $region55: #{tpu_custom_call.1} parent=1 // pred_check_branch
      %4021 = sbr.rel (0) target = $region57
    $region56: #{tpu_custom_call.1} parent=1 // pred_region
      %4022 = dma.done [#allocation5], 128
    $region57: #{tpu_custom_call.1} parent=1 // pred_fallthru
      _
    %4023 = vsyncpa [#allocation4], 1
    %4024 = vsyncpa [#allocation7], 1
    %4025 = vsyncpa [#allocation10], 1
    %4026 = vsyncpa [#allocation5], 1

</llo_original>
